<compile_context>
chip_gen: v7x
topology: tpu7x:2x2x1
jax: 0.10.0
libtpu: 0.0.40
codegen_flags: <defaults>
</compile_context>

<pallas_src>
import math
from functools import partial

import jax
import jax.numpy as jnp
from jax.experimental import pallas as pl
from jax.experimental.pallas import tpu as pltpu


# ----------------------------- in-kernel helpers -----------------------------

def _layer_norm(x, gamma, beta, eps=1e-5):
    # x: (N, D) f32; gamma/beta: (1, D) f32  (matches nn.LayerNorm(vector_dim))
    mean = jnp.mean(x, axis=-1, keepdims=True)
    var = jnp.mean(jnp.square(x - mean), axis=-1, keepdims=True)
    return (x - mean) * jax.lax.rsqrt(var + eps) * gamma + beta


def _attention(q2d, k2d, v2d, w_o_heads, b_o, bias3, *, n_heads, batch, seq):
    """Scaled dot-product attention over already-projected Q/K/V.

    q2d/k2d/v2d : (B*S, E) f32 projections (fused matmuls done by caller; the
                  1/sqrt(d_head) scale is already folded into the Q weights)
    w_o_heads   : (H, dh, D) bf16 output projection, pre-split per head
    b_o         : (1, D) f32
    bias3       : (B, S, S) f32 additive mask bias (0 / -1e9) or None
    returns     : (B*S, D) f32
    """
    n, e = q2d.shape
    d_out = w_o_heads.shape[-1]
    dh = e // n_heads

    out = jnp.zeros((n, d_out), jnp.float32)
    for h in range(n_heads):                       # static unroll over heads only
        sl = slice(h * dh, (h + 1) * dh)
        q = q2d[:, sl].astype(jnp.bfloat16).reshape(batch, seq, dh)
        k = k2d[:, sl].astype(jnp.bfloat16).reshape(batch, seq, dh)
        v = v2d[:, sl].astype(jnp.bfloat16).reshape(batch, seq, dh)

        # whole-batch score contraction for this head (single batched einsum)
        s = jnp.einsum('bqe,bke->bqk', q, k,
                       preferred_element_type=jnp.float32)              # (B,S,S) f32
        if bias3 is not None:
            s = s + bias3                                               # additive mask
        s = s - jnp.max(s, axis=-1, keepdims=True)
        p = jnp.exp(s)
        p = p * pl.reciprocal(jnp.sum(p, axis=-1, keepdims=True), approx=True)

        ctx = jnp.einsum('bqk,bke->bqe', p.astype(jnp.bfloat16), v,
                         preferred_element_type=jnp.float32)            # (B,S,dh)
        # fold the head-merge (was a lane-axis concat) into the output projection
        out = out + jnp.dot(ctx.reshape(n, dh).astype(jnp.bfloat16),
                            w_o_heads[h], preferred_element_type=jnp.float32)
    return out + b_o


# ------------------------------ fused decoder-stack kernel --------------------

def decoder_stack_kernel(seqs_ref, enc_ref, mask_ref,
                         w1_qkv, b1_qkv, w1_o, b1_o, g1,
                         w2_q, b2_q, w2_kv, b2_kv, w2_o, b2_o, g2,
                         fw1, fb1, fw2, fb2, g3,
                         out_ref, x_ref,
                         *, n_heads, n_layers, batch, seq):
    l = pl.program_id(0)

    # residual-stream carry lives in VMEM scratch across the layer grid axis
    @pl.when(l == 0)
    def _():
        x_ref[...] = seqs_ref[...]

    x = x_ref[...]                                   # (B*S, D) f32 residual stream
    enc = enc_ref[...]                               # (B*S, D) f32 encoder output
    # additive mask bias, broadcast once per layer (not per head)
    bias3 = jnp.broadcast_to(mask_ref[...][None], (batch, seq, seq))
    e_dim = w2_q.shape[-1]

    ln1 = g1[0]                                      # (2, D) f32
    ln2 = g2[0]
    ln3 = g3[0]

    # --- masked self-attention: MaskedAttentionBlock(seqs, seqs, seqs, mask) ---
    xb = x.astype(jnp.bfloat16)
    qkv = jnp.dot(xb, w1_qkv[0], preferred_element_type=jnp.float32) + b1_qkv[0]
    att = _attention(qkv[:, :e_dim], qkv[:, e_dim:2 * e_dim], qkv[:, 2 * e_dim:],
                     w1_o[0], b1_o[0], bias3,
                     n_heads=n_heads, batch=batch, seq=seq)
    x = _layer_norm(att + x, ln1[0:1], ln1[1:2])

    # --- cross-attention: AttentionBlock(v_seqs=enc, k_seqs=enc, q=x, mask=None) ---
    xb = x.astype(jnp.bfloat16)
    eb = enc.astype(jnp.bfloat16)
    q = jnp.dot(xb, w2_q[0], preferred_element_type=jnp.float32) + b2_q[0]
    kv = jnp.dot(eb, w2_kv[0], preferred_element_type=jnp.float32) + b2_kv[0]
    att = _attention(q, kv[:, :e_dim], kv[:, e_dim:],
                     w2_o[0], b2_o[0], None,
                     n_heads=n_heads, batch=batch, seq=seq)
    x = _layer_norm(att + x, ln2[0:1], ln2[1:2])

    # --- position-wise feed-forward (ReLU) ---
    xb = x.astype(jnp.bfloat16)
    h = jnp.dot(xb, fw1[0], preferred_element_type=jnp.float32) + fb1[0]
    h = jnp.maximum(h, 0.0).astype(jnp.bfloat16)
    f = jnp.dot(h, fw2[0], preferred_element_type=jnp.float32) + fb2[0]
    x = _layer_norm(f + x, ln3[0:1], ln3[1:2])

    # TODO(synk): Dropout layers are identity at inference; training-mode dropout not implemented.
    x_ref[...] = x

    @pl.when(l == n_layers - 1)
    def _():
        out_ref[...] = x


def decoder_stack(seqs2d, enc2d, mask_bias, packed, *, n_heads, batch, seq):
    n_layers = packed["w1_qkv"].shape[0]
    N, D = seqs2d.shape

    def wspec(arr):            # per-layer streamed weight (double-buffered by Pallas)
        rest = arr.shape[1:]
        zeros = (0,) * len(rest)
        return pl.BlockSpec((1,) + rest, lambda l, z=zeros: (l,) + z)

    def cspec(arr):            # layer-invariant input: constant block index -> DMA'd once
        zeros = (0,) * arr.ndim
        return pl.BlockSpec(arr.shape, lambda l, z=zeros: z)

    names = ["w1_qkv", "b1_qkv", "w1_o", "b1_o", "g1",
             "w2_q", "b2_q", "w2_kv", "b2_kv", "w2_o", "b2_o", "g2",
             "fw1", "fb1", "fw2", "fb2", "g3"]
    weights = [packed[k] for k in names]

    return pl.pallas_call(
        partial(decoder_stack_kernel, n_heads=n_heads, n_layers=n_layers,
                batch=batch, seq=seq),
        out_shape=jax.ShapeDtypeStruct((N, D), jnp.float32),
        grid=(n_layers,),
        in_specs=[cspec(seqs2d), cspec(enc2d), cspec(mask_bias)]
                 + [wspec(w) for w in weights],
        out_specs=pl.BlockSpec((N, D), lambda l: (0, 0)),
        scratch_shapes=[pltpu.VMEM((N, D), jnp.float32)],      # residual carry
        compiler_params=pltpu.CompilerParams(
            dimension_semantics=("arbitrary",),   # layer axis carries state sequentially
            vmem_limit_bytes=64 * 1024 * 1024),
    )(seqs2d, enc2d, mask_bias, *weights)


# ------------------------------ param packing / plain-JAX glue ----------------

def _pack_params(params, n_heads):
    """Repack per-block params into kernel layout, stacked over the layer axis.

    - QKV (and cross-attn KV) weights fused along the output dim -> one MXU matmul.
    - 1/sqrt(d_head) attention scale folded into the Q projection weights/bias.
    - Output-projection weights pre-split per head -> (H, dh, D) (no in-kernel relayout).
    - Matmul weights cast to bf16; biases / LayerNorm params stay f32.
    """
    bf = jnp.bfloat16
    blocks = params["blocks"]
    D = blocks[0]["a1_wo"].shape[-1]
    E = blocks[0]["a1_w"].shape[-1]
    dh = E // n_heads
    scale = 1.0 / math.sqrt(dh)

    def stk(fn, dtype=None):
        a = jnp.stack([fn(b) for b in blocks], axis=0)
        return a.astype(dtype) if dtype is not None else a

    return {
        # Q columns pre-scaled by 1/sqrt(dh)
        "w1_qkv": stk(lambda b: jnp.concatenate(
            [b["a1_w"][0] * scale, b["a1_w"][1], b["a1_w"][2]], axis=1), bf),  # (L, D, 3E)
        "b1_qkv": stk(lambda b: jnp.concatenate(
            [b["a1_b"][0] * scale, b["a1_b"][1], b["a1_b"][2]],
            axis=0).reshape(1, 3 * E)),                                        # (L, 1, 3E)
        "w1_o":   stk(lambda b: b["a1_wo"].reshape(n_heads, dh, D), bf),       # (L, H, dh, D)
        "b1_o":   stk(lambda b: b["a1_bo"]),                                   # (L, 1, D)
        "g1":     stk(lambda b: b["ln1"]),                                     # (L, 2, D)
        "w2_q":   stk(lambda b: b["a2_w"][0] * scale, bf),                     # (L, D, E)
        "b2_q":   stk(lambda b: (b["a2_b"][0] * scale)[None, :]),              # (L, 1, E)
        "w2_kv":  stk(lambda b: jnp.concatenate(
            [b["a2_w"][1], b["a2_w"][2]], axis=1), bf),                        # (L, D, 2E)
        "b2_kv":  stk(lambda b: jnp.concatenate(
            [b["a2_b"][1], b["a2_b"][2]], axis=0)[None, :]),                   # (L, 1, 2E)
        "w2_o":   stk(lambda b: b["a2_wo"].reshape(n_heads, dh, D), bf),       # (L, H, dh, D)
        "b2_o":   stk(lambda b: b["a2_bo"]),                                   # (L, 1, D)
        "g2":     stk(lambda b: b["ln2"]),                                     # (L, 2, D)
        "fw1":    stk(lambda b: b["f_w1"], bf),                                # (L, D, Hf)
        "fb1":    stk(lambda b: b["f_b1"]),                                    # (L, 1, Hf)
        "fw2":    stk(lambda b: b["f_w2"], bf),                                # (L, Hf, D)
        "fb2":    stk(lambda b: b["f_b2"]),                                    # (L, 1, D)
        "g3":     stk(lambda b: b["ln3"]),                                     # (L, 2, D)
    }


def positional_encoding(S, D):
    pos = jnp.arange(S, dtype=jnp.float32)[:, None]
    i = jnp.arange(0, D, 2, dtype=jnp.float32)
    angle = pos / jnp.power(10000.0, i / D)
    pe = jnp.zeros((S, D), jnp.float32)
    pe = pe.at[:, 0::2].set(jnp.sin(angle))
    pe = pe.at[:, 1::2].set(jnp.cos(angle))
    return pe


def init_params(key, *, n_blocks, vector_dim, embedding_dim, max_vocab_num,
                feedforward_expansion):
    D, E = vector_dim, embedding_dim
    H = D * feedforward_expansion
    keys = jax.random.split(key, 1 + n_blocks)
    params = {"embedding": 0.02 * jax.random.normal(keys[0], (max_vocab_num, D), jnp.float32)}
    blocks = []
    for bi in range(n_blocks):
        ks = jax.random.split(keys[1 + bi], 8)
        blk = {
            "a1_w": 0.02 * jax.random.normal(ks[0], (3, D, E), jnp.float32),
            "a1_b": jnp.zeros((3, E), jnp.float32),
            "a1_wo": 0.02 * jax.random.normal(ks[1], (E, D), jnp.float32),
            "a1_bo": jnp.zeros((1, D), jnp.float32),
            "ln1": jnp.stack([jnp.ones((D,)), jnp.zeros((D,))]).astype(jnp.float32),
            "a2_w": 0.02 * jax.random.normal(ks[2], (3, D, E), jnp.float32),
            "a2_b": jnp.zeros((3, E), jnp.float32),
            "a2_wo": 0.02 * jax.random.normal(ks[3], (E, D), jnp.float32),
            "a2_bo": jnp.zeros((1, D), jnp.float32),
            "ln2": jnp.stack([jnp.ones((D,)), jnp.zeros((D,))]).astype(jnp.float32),
            "f_w1": 0.02 * jax.random.normal(ks[4], (D, H), jnp.float32),
            "f_b1": jnp.zeros((1, H), jnp.float32),
            "f_w2": 0.02 * jax.random.normal(ks[5], (H, D), jnp.float32),
            "f_b2": jnp.zeros((1, D), jnp.float32),
            "ln3": jnp.stack([jnp.ones((D,)), jnp.zeros((D,))]).astype(jnp.float32),
        }
        blocks.append(blk)
    params["blocks"] = blocks
    return params


def decoder_forward(X, encoder_seqs, mask, params, n_heads):
    """X: (B, S) int32 token ids; encoder_seqs: (B, S, D); mask: (S, S)."""
    B, S = X.shape
    D = params["embedding"].shape[1]
    seqs = jnp.take(params["embedding"], X, axis=0)           # embedding gather (glue)
    seqs = seqs + positional_encoding(S, D)[None]              # positional encoding (glue)
    packed = _pack_params(params, n_heads)
    # additive mask bias: 0 where attended, -1e9 where masked out
    mask_bias = jnp.where(mask != 0, 0.0, -1e9).astype(jnp.float32)
    out2d = decoder_stack(seqs.reshape(B * S, D).astype(jnp.float32),
                          encoder_seqs.reshape(B * S, D).astype(jnp.float32),
                          mask_bias, packed, n_heads=n_heads, batch=B, seq=S)
    return out2d.reshape(B, S, D)


# ----------------------------------- main --------------------------------------

if __name__ == "__main__":
    B, S = 2, 8
    vector_dim = 32
    embedding_dim = 32
    n_heads = 4
    n_blocks = 2
    max_vocab_num = 64
    feedforward_expansion = 4

    key = jax.random.PRNGKey(0)
    kp, kx, ke = jax.random.split(key, 3)

    params = init_params(kp,
                         n_blocks=n_blocks, vector_dim=vector_dim,
                         embedding_dim=embedding_dim, max_vocab_num=max_vocab_num,
                         feedforward_expansion=feedforward_expansion)

    X = jax.random.randint(kx, (B, S), 0, max_vocab_num, dtype=jnp.int32)
    encoder_seqs = jax.random.normal(ke, (B, S, vector_dim), jnp.float32)
    causal_mask = jnp.tril(jnp.ones((S, S), jnp.float32))

    fwd = jax.jit(decoder_forward, static_argnames=("n_heads",))
    out = fwd(X, encoder_seqs, causal_mask, params, n_heads=n_heads)
    out = jax.block_until_ready(out)
    assert out.shape == (B, S, vector_dim)
    assert bool(jnp.all(jnp.isfinite(out)))
    print("KERNEL_OK")
</pallas_src>

<mosaic_0001>
module attributes {stable_mosaic.version = 11 : i64} {
  func.func @decoder_stack_kernel(%arg0: i32, %arg1: memref<16x32xf32, #tpu.memory_space<vmem>>, %arg2: memref<16x32xf32, #tpu.memory_space<vmem>>, %arg3: memref<8x8xf32, #tpu.memory_space<vmem>>, %arg4: memref<1x32x96xbf16, #tpu.memory_space<vmem>>, %arg5: memref<1x1x96xf32, #tpu.memory_space<vmem>>, %arg6: memref<1x4x8x32xbf16, #tpu.memory_space<vmem>>, %arg7: memref<1x1x32xf32, #tpu.memory_space<vmem>>, %arg8: memref<1x2x32xf32, #tpu.memory_space<vmem>>, %arg9: memref<1x32x32xbf16, #tpu.memory_space<vmem>>, %arg10: memref<1x1x32xf32, #tpu.memory_space<vmem>>, %arg11: memref<1x32x64xbf16, #tpu.memory_space<vmem>>, %arg12: memref<1x1x64xf32, #tpu.memory_space<vmem>>, %arg13: memref<1x4x8x32xbf16, #tpu.memory_space<vmem>>, %arg14: memref<1x1x32xf32, #tpu.memory_space<vmem>>, %arg15: memref<1x2x32xf32, #tpu.memory_space<vmem>>, %arg16: memref<1x32x128xbf16, #tpu.memory_space<vmem>>, %arg17: memref<1x1x128xf32, #tpu.memory_space<vmem>>, %arg18: memref<1x128x32xbf16, #tpu.memory_space<vmem>>, %arg19: memref<1x1x32xf32, #tpu.memory_space<vmem>>, %arg20: memref<1x2x32xf32, #tpu.memory_space<vmem>>, %arg21: memref<16x32xf32, #tpu.memory_space<vmem>>, %arg22: memref<16x32xf32, #tpu.memory_space<vmem>>) attributes {dimension_semantics = [#tpu.dimension_semantics<arbitrary>], iteration_bounds = array<i64: 2>, scalar_prefetch = 0 : i64, scratch_operands = 1 : i64, tpu.core_type = #tpu.core_type<tc>, window_params = [{pipeline_mode = #tpu.pipeline_mode<synchronous>, transform_indices = @transform_0, window_bounds = array<i64: 16, 32>}, {pipeline_mode = #tpu.pipeline_mode<synchronous>, transform_indices = @transform_1, window_bounds = array<i64: 16, 32>}, {pipeline_mode = #tpu.pipeline_mode<synchronous>, transform_indices = @transform_2, window_bounds = array<i64: 8, 8>}, {transform_indices = @transform_3, window_bounds = array<i64: 1, 32, 96>}, {transform_indices = @transform_4, window_bounds = array<i64: 1, 1, 96>}, {transform_indices = @transform_5, window_bounds = array<i64: 1, 4, 8, 32>}, {transform_indices = @transform_6, window_bounds = array<i64: 1, 1, 32>}, {transform_indices = @transform_7, window_bounds = array<i64: 1, 2, 32>}, {transform_indices = @transform_8, window_bounds = array<i64: 1, 32, 32>}, {transform_indices = @transform_9, window_bounds = array<i64: 1, 1, 32>}, {transform_indices = @transform_10, window_bounds = array<i64: 1, 32, 64>}, {transform_indices = @transform_11, window_bounds = array<i64: 1, 1, 64>}, {transform_indices = @transform_12, window_bounds = array<i64: 1, 4, 8, 32>}, {transform_indices = @transform_13, window_bounds = array<i64: 1, 1, 32>}, {transform_indices = @transform_14, window_bounds = array<i64: 1, 2, 32>}, {transform_indices = @transform_15, window_bounds = array<i64: 1, 32, 128>}, {transform_indices = @transform_16, window_bounds = array<i64: 1, 1, 128>}, {transform_indices = @transform_17, window_bounds = array<i64: 1, 128, 32>}, {transform_indices = @transform_18, window_bounds = array<i64: 1, 1, 32>}, {transform_indices = @transform_19, window_bounds = array<i64: 1, 2, 32>}, {pipeline_mode = #tpu.pipeline_mode<synchronous>, transform_indices = @transform_20, window_bounds = array<i64: 16, 32>}]} {
    %c0_i32 = arith.constant 0 : i32
    %0 = arith.cmpi eq, %arg0, %c0_i32 : i32
    %1 = arith.extui %0 : i1 to i32
    %c0_i32_0 = arith.constant 0 : i32
    %2 = arith.cmpi ne, %1, %c0_i32_0 : i32
    scf.if %2 {
      %c0_124 = arith.constant 0 : index
      %c0_125 = arith.constant 0 : index
      %383 = vector.load %arg1[%c0_124, %c0_125] : memref<16x32xf32, #tpu.memory_space<vmem>>, vector<16x32xf32>
      %c0_126 = arith.constant 0 : index
      %c0_127 = arith.constant 0 : index
      %384 = vector.load %arg22[%c0_126, %c0_127] : memref<16x32xf32, #tpu.memory_space<vmem>>, vector<16x32xf32>
      tpu.vector_store %arg22[%c0_126, %c0_127], %383 {strides = array<i32>} : memref<16x32xf32, #tpu.memory_space<vmem>>, vector<16x32xf32>,
    } else {
    }
    %c0 = arith.constant 0 : index
    %c0_1 = arith.constant 0 : index
    %3 = vector.load %arg22[%c0, %c0_1] : memref<16x32xf32, #tpu.memory_space<vmem>>, vector<16x32xf32>
    %c0_2 = arith.constant 0 : index
    %c0_3 = arith.constant 0 : index
    %4 = vector.load %arg2[%c0_2, %c0_3] : memref<16x32xf32, #tpu.memory_space<vmem>>, vector<16x32xf32>
    %c0_4 = arith.constant 0 : index
    %c0_5 = arith.constant 0 : index
    %5 = vector.load %arg3[%c0_4, %c0_5] : memref<8x8xf32, #tpu.memory_space<vmem>>, vector<8x8xf32>
    %6 = vector.shape_cast %5 : vector<8x8xf32> to vector<1x8x8xf32>
    %7 = vector.shape_cast %6 : vector<1x8x8xf32> to vector<1x8x8xf32>
    %8 = vector.broadcast %7 : vector<1x8x8xf32> to vector<2x8x8xf32>
    %c0_6 = arith.constant 0 : index
    %c0_7 = arith.constant 0 : index
    %c0_8 = arith.constant 0 : index
    %9 = vector.load %arg8[%c0_6, %c0_7, %c0_8] : memref<1x2x32xf32, #tpu.memory_space<vmem>>, vector<1x2x32xf32>
    %10 = vector.shape_cast %9 : vector<1x2x32xf32> to vector<2x32xf32>
    %c0_9 = arith.constant 0 : index
    %c0_10 = arith.constant 0 : index
    %c0_11 = arith.constant 0 : index
    %11 = vector.load %arg15[%c0_9, %c0_10, %c0_11] : memref<1x2x32xf32, #tpu.memory_space<vmem>>, vector<1x2x32xf32>
    %12 = vector.shape_cast %11 : vector<1x2x32xf32> to vector<2x32xf32>
    %c0_12 = arith.constant 0 : index
    %c0_13 = arith.constant 0 : index
    %c0_14 = arith.constant 0 : index
    %13 = vector.load %arg20[%c0_12, %c0_13, %c0_14] : memref<1x2x32xf32, #tpu.memory_space<vmem>>, vector<1x2x32xf32>
    %14 = vector.shape_cast %13 : vector<1x2x32xf32> to vector<2x32xf32>
    %15 = arith.truncf %3 : vector<16x32xf32> to vector<16x32xbf16>
    %c0_15 = arith.constant 0 : index
    %c0_16 = arith.constant 0 : index
    %c0_17 = arith.constant 0 : index
    %16 = vector.load %arg4[%c0_15, %c0_16, %c0_17] : memref<1x32x96xbf16, #tpu.memory_space<vmem>>, vector<1x32x96xbf16>
    %17 = vector.shape_cast %16 : vector<1x32x96xbf16> to vector<32x96xbf16>
    %cst = arith.constant dense<0.000000e+00> : vector<16x96xf32>
    %18 = tpu.matmul %15, %17, %cst {dimension_numbers = #tpu.dot_dimension_numbers<[1], [0], [0], [1], [0, 0, 1, 1], [], []>} : vector<16x32xbf16>, vector<32x96xbf16>, vector<16x96xf32> -> vector<16x96xf32>
    %c0_18 = arith.constant 0 : index
    %c0_19 = arith.constant 0 : index
    %c0_20 = arith.constant 0 : index
    %19 = vector.load %arg5[%c0_18, %c0_19, %c0_20] : memref<1x1x96xf32, #tpu.memory_space<vmem>>, vector<1x1x96xf32>
    %20 = vector.shape_cast %19 : vector<1x1x96xf32> to vector<1x96xf32>
    %21 = vector.broadcast %20 : vector<1x96xf32> to vector<16x96xf32>
    %22 = arith.addf %18, %21 : vector<16x96xf32>
    %23 = vector.extract_strided_slice %22 {offsets = [0, 0], sizes = [16, 32], strides = [1, 1]} : vector<16x96xf32> to vector<16x32xf32>
    %24 = vector.extract_strided_slice %22 {offsets = [0, 32], sizes = [16, 32], strides = [1, 1]} : vector<16x96xf32> to vector<16x32xf32>
    %25 = vector.extract_strided_slice %22 {offsets = [0, 64], sizes = [16, 32], strides = [1, 1]} : vector<16x96xf32> to vector<16x32xf32>
    %c0_21 = arith.constant 0 : index
    %c0_22 = arith.constant 0 : index
    %c0_23 = arith.constant 0 : index
    %c0_24 = arith.constant 0 : index
    %26 = vector.load %arg6[%c0_21, %c0_22, %c0_23, %c0_24] : memref<1x4x8x32xbf16, #tpu.memory_space<vmem>>, vector<1x4x8x32xbf16>
    %27 = vector.shape_cast %26 : vector<1x4x8x32xbf16> to vector<4x8x32xbf16>
    %c0_25 = arith.constant 0 : index
    %c0_26 = arith.constant 0 : index
    %c0_27 = arith.constant 0 : index
    %28 = vector.load %arg7[%c0_25, %c0_26, %c0_27] : memref<1x1x32xf32, #tpu.memory_space<vmem>>, vector<1x1x32xf32>
    %29 = vector.shape_cast %28 : vector<1x1x32xf32> to vector<1x32xf32>
    %cst_28 = arith.constant 0.000000e+00 : f32
    %30 = vector.broadcast %cst_28 : f32 to vector<16x32xf32>
    %31 = vector.extract_strided_slice %23 {offsets = [0, 0], sizes = [16, 8], strides = [1, 1]} : vector<16x32xf32> to vector<16x8xf32>
    %32 = arith.truncf %31 : vector<16x8xf32> to vector<16x8xbf16>
    %33 = vector.shape_cast %32 : vector<16x8xbf16> to vector<2x8x8xbf16>
    %34 = vector.extract_strided_slice %24 {offsets = [0, 0], sizes = [16, 8], strides = [1, 1]} : vector<16x32xf32> to vector<16x8xf32>
    %35 = arith.truncf %34 : vector<16x8xf32> to vector<16x8xbf16>
    %36 = vector.shape_cast %35 : vector<16x8xbf16> to vector<2x8x8xbf16>
    %37 = vector.extract_strided_slice %25 {offsets = [0, 0], sizes = [16, 8], strides = [1, 1]} : vector<16x32xf32> to vector<16x8xf32>
    %38 = arith.truncf %37 : vector<16x8xf32> to vector<16x8xbf16>
    %39 = vector.shape_cast %38 : vector<16x8xbf16> to vector<2x8x8xbf16>
    "tpu.trace_start"() <{level = 10 : i32, message = "bqe,bke->bqk"}> : () -> ()
    %cst_29 = arith.constant dense<0.000000e+00> : vector<2x8x8xf32>
    %40 = tpu.matmul %33, %36, %cst_29 {dimension_numbers = #tpu.dot_dimension_numbers<[2], [2], [1], [1], [0, 0, 0, 1, 1, 1], [0], [0]>} : vector<2x8x8xbf16>, vector<2x8x8xbf16>, vector<2x8x8xf32> -> vector<2x8x8xf32>
    "tpu.trace_stop"() : () -> ()
    %41 = arith.addf %40, %8 : vector<2x8x8xf32>
    %cst_30 = arith.constant dense<0xFF800000> : vector<2x8xf32>
    %42 = vector.multi_reduction <maximumf>, %41, %cst_30 [2] : vector<2x8x8xf32> to vector<2x8xf32>
    %43 = vector.shape_cast %42 : vector<2x8xf32> to vector<2x8x1xf32>
    %44 = vector.broadcast %43 : vector<2x8x1xf32> to vector<2x8x8xf32>
    %45 = arith.subf %41, %44 : vector<2x8x8xf32>
    %46 = math.exp %45 : vector<2x8x8xf32>
    %cst_31 = arith.constant dense<0.000000e+00> : vector<2x8xf32>
    %47 = vector.multi_reduction <add>, %46, %cst_31 [2] : vector<2x8x8xf32> to vector<2x8xf32>
    %48 = vector.shape_cast %47 : vector<2x8xf32> to vector<2x8x1xf32>
    %49 = tpu.reciprocal %48 {approx = true} : vector<2x8x1xf32> -> vector<2x8x1xf32>
    %50 = vector.broadcast %49 : vector<2x8x1xf32> to vector<2x8x8xf32>
    %51 = arith.mulf %46, %50 : vector<2x8x8xf32>
    %52 = arith.truncf %51 : vector<2x8x8xf32> to vector<2x8x8xbf16>
    "tpu.trace_start"() <{level = 10 : i32, message = "bqk,bke->bqe"}> : () -> ()
    %cst_32 = arith.constant dense<0.000000e+00> : vector<2x8x8xf32>
    %53 = tpu.matmul %52, %39, %cst_32 {dimension_numbers = #tpu.dot_dimension_numbers<[2], [1], [1], [2], [0, 0, 0, 1, 1, 2], [0], [0]>} : vector<2x8x8xbf16>, vector<2x8x8xbf16>, vector<2x8x8xf32> -> vector<2x8x8xf32>
    "tpu.trace_stop"() : () -> ()
    %54 = vector.shape_cast %53 : vector<2x8x8xf32> to vector<16x8xf32>
    %55 = arith.truncf %54 : vector<16x8xf32> to vector<16x8xbf16>
    %56 = vector.extract_strided_slice %27 {offsets = [0, 0, 0], sizes = [1, 8, 32], strides = [1, 1, 1]} : vector<4x8x32xbf16> to vector<1x8x32xbf16>
    %57 = vector.shape_cast %56 : vector<1x8x32xbf16> to vector<8x32xbf16>
    %cst_33 = arith.constant dense<0.000000e+00> : vector<16x32xf32>
    %58 = tpu.matmul %55, %57, %cst_33 {dimension_numbers = #tpu.dot_dimension_numbers<[1], [0], [0], [1], [0, 0, 1, 1], [], []>} : vector<16x8xbf16>, vector<8x32xbf16>, vector<16x32xf32> -> vector<16x32xf32>
    %59 = arith.addf %30, %58 : vector<16x32xf32>
    %60 = vector.extract_strided_slice %23 {offsets = [0, 8], sizes = [16, 8], strides = [1, 1]} : vector<16x32xf32> to vector<16x8xf32>
    %61 = arith.truncf %60 : vector<16x8xf32> to vector<16x8xbf16>
    %62 = vector.shape_cast %61 : vector<16x8xbf16> to vector<2x8x8xbf16>
    %63 = vector.extract_strided_slice %24 {offsets = [0, 8], sizes = [16, 8], strides = [1, 1]} : vector<16x32xf32> to vector<16x8xf32>
    %64 = arith.truncf %63 : vector<16x8xf32> to vector<16x8xbf16>
    %65 = vector.shape_cast %64 : vector<16x8xbf16> to vector<2x8x8xbf16>
    %66 = vector.extract_strided_slice %25 {offsets = [0, 8], sizes = [16, 8], strides = [1, 1]} : vector<16x32xf32> to vector<16x8xf32>
    %67 = arith.truncf %66 : vector<16x8xf32> to vector<16x8xbf16>
    %68 = vector.shape_cast %67 : vector<16x8xbf16> to vector<2x8x8xbf16>
    "tpu.trace_start"() <{level = 10 : i32, message = "bqe,bke->bqk"}> : () -> ()
    %cst_34 = arith.constant dense<0.000000e+00> : vector<2x8x8xf32>
    %69 = tpu.matmul %62, %65, %cst_34 {dimension_numbers = #tpu.dot_dimension_numbers<[2], [2], [1], [1], [0, 0, 0, 1, 1, 1], [0], [0]>} : vector<2x8x8xbf16>, vector<2x8x8xbf16>, vector<2x8x8xf32> -> vector<2x8x8xf32>
    "tpu.trace_stop"() : () -> ()
    %70 = arith.addf %69, %8 : vector<2x8x8xf32>
    %cst_35 = arith.constant dense<0xFF800000> : vector<2x8xf32>
    %71 = vector.multi_reduction <maximumf>, %70, %cst_35 [2] : vector<2x8x8xf32> to vector<2x8xf32>
    %72 = vector.shape_cast %71 : vector<2x8xf32> to vector<2x8x1xf32>
    %73 = vector.broadcast %72 : vector<2x8x1xf32> to vector<2x8x8xf32>
    %74 = arith.subf %70, %73 : vector<2x8x8xf32>
    %75 = math.exp %74 : vector<2x8x8xf32>
    %cst_36 = arith.constant dense<0.000000e+00> : vector<2x8xf32>
    %76 = vector.multi_reduction <add>, %75, %cst_36 [2] : vector<2x8x8xf32> to vector<2x8xf32>
    %77 = vector.shape_cast %76 : vector<2x8xf32> to vector<2x8x1xf32>
    %78 = tpu.reciprocal %77 {approx = true} : vector<2x8x1xf32> -> vector<2x8x1xf32>
    %79 = vector.broadcast %78 : vector<2x8x1xf32> to vector<2x8x8xf32>
    %80 = arith.mulf %75, %79 : vector<2x8x8xf32>
    %81 = arith.truncf %80 : vector<2x8x8xf32> to vector<2x8x8xbf16>
    "tpu.trace_start"() <{level = 10 : i32, message = "bqk,bke->bqe"}> : () -> ()
    %cst_37 = arith.constant dense<0.000000e+00> : vector<2x8x8xf32>
    %82 = tpu.matmul %81, %68, %cst_37 {dimension_numbers = #tpu.dot_dimension_numbers<[2], [1], [1], [2], [0, 0, 0, 1, 1, 2], [0], [0]>} : vector<2x8x8xbf16>, vector<2x8x8xbf16>, vector<2x8x8xf32> -> vector<2x8x8xf32>
    "tpu.trace_stop"() : () -> ()
    %83 = vector.shape_cast %82 : vector<2x8x8xf32> to vector<16x8xf32>
    %84 = arith.truncf %83 : vector<16x8xf32> to vector<16x8xbf16>
    %85 = vector.extract_strided_slice %27 {offsets = [1, 0, 0], sizes = [1, 8, 32], strides = [1, 1, 1]} : vector<4x8x32xbf16> to vector<1x8x32xbf16>
    %86 = vector.shape_cast %85 : vector<1x8x32xbf16> to vector<8x32xbf16>
    %cst_38 = arith.constant dense<0.000000e+00> : vector<16x32xf32>
    %87 = tpu.matmul %84, %86, %cst_38 {dimension_numbers = #tpu.dot_dimension_numbers<[1], [0], [0], [1], [0, 0, 1, 1], [], []>} : vector<16x8xbf16>, vector<8x32xbf16>, vector<16x32xf32> -> vector<16x32xf32>
    %88 = arith.addf %59, %87 : vector<16x32xf32>
    %89 = vector.extract_strided_slice %23 {offsets = [0, 16], sizes = [16, 8], strides = [1, 1]} : vector<16x32xf32> to vector<16x8xf32>
    %90 = arith.truncf %89 : vector<16x8xf32> to vector<16x8xbf16>
    %91 = vector.shape_cast %90 : vector<16x8xbf16> to vector<2x8x8xbf16>
    %92 = vector.extract_strided_slice %24 {offsets = [0, 16], sizes = [16, 8], strides = [1, 1]} : vector<16x32xf32> to vector<16x8xf32>
    %93 = arith.truncf %92 : vector<16x8xf32> to vector<16x8xbf16>
    %94 = vector.shape_cast %93 : vector<16x8xbf16> to vector<2x8x8xbf16>
    %95 = vector.extract_strided_slice %25 {offsets = [0, 16], sizes = [16, 8], strides = [1, 1]} : vector<16x32xf32> to vector<16x8xf32>
    %96 = arith.truncf %95 : vector<16x8xf32> to vector<16x8xbf16>
    %97 = vector.shape_cast %96 : vector<16x8xbf16> to vector<2x8x8xbf16>
    "tpu.trace_start"() <{level = 10 : i32, message = "bqe,bke->bqk"}> : () -> ()
    %cst_39 = arith.constant dense<0.000000e+00> : vector<2x8x8xf32>
    %98 = tpu.matmul %91, %94, %cst_39 {dimension_numbers = #tpu.dot_dimension_numbers<[2], [2], [1], [1], [0, 0, 0, 1, 1, 1], [0], [0]>} : vector<2x8x8xbf16>, vector<2x8x8xbf16>, vector<2x8x8xf32> -> vector<2x8x8xf32>
    "tpu.trace_stop"() : () -> ()
    %99 = arith.addf %98, %8 : vector<2x8x8xf32>
    %cst_40 = arith.constant dense<0xFF800000> : vector<2x8xf32>
    %100 = vector.multi_reduction <maximumf>, %99, %cst_40 [2] : vector<2x8x8xf32> to vector<2x8xf32>
    %101 = vector.shape_cast %100 : vector<2x8xf32> to vector<2x8x1xf32>
    %102 = vector.broadcast %101 : vector<2x8x1xf32> to vector<2x8x8xf32>
    %103 = arith.subf %99, %102 : vector<2x8x8xf32>
    %104 = math.exp %103 : vector<2x8x8xf32>
    %cst_41 = arith.constant dense<0.000000e+00> : vector<2x8xf32>
    %105 = vector.multi_reduction <add>, %104, %cst_41 [2] : vector<2x8x8xf32> to vector<2x8xf32>
    %106 = vector.shape_cast %105 : vector<2x8xf32> to vector<2x8x1xf32>
    %107 = tpu.reciprocal %106 {approx = true} : vector<2x8x1xf32> -> vector<2x8x1xf32>
    %108 = vector.broadcast %107 : vector<2x8x1xf32> to vector<2x8x8xf32>
    %109 = arith.mulf %104, %108 : vector<2x8x8xf32>
    %110 = arith.truncf %109 : vector<2x8x8xf32> to vector<2x8x8xbf16>
    "tpu.trace_start"() <{level = 10 : i32, message = "bqk,bke->bqe"}> : () -> ()
    %cst_42 = arith.constant dense<0.000000e+00> : vector<2x8x8xf32>
    %111 = tpu.matmul %110, %97, %cst_42 {dimension_numbers = #tpu.dot_dimension_numbers<[2], [1], [1], [2], [0, 0, 0, 1, 1, 2], [0], [0]>} : vector<2x8x8xbf16>, vector<2x8x8xbf16>, vector<2x8x8xf32> -> vector<2x8x8xf32>
    "tpu.trace_stop"() : () -> ()
    %112 = vector.shape_cast %111 : vector<2x8x8xf32> to vector<16x8xf32>
    %113 = arith.truncf %112 : vector<16x8xf32> to vector<16x8xbf16>
    %114 = vector.extract_strided_slice %27 {offsets = [2, 0, 0], sizes = [1, 8, 32], strides = [1, 1, 1]} : vector<4x8x32xbf16> to vector<1x8x32xbf16>
    %115 = vector.shape_cast %114 : vector<1x8x32xbf16> to vector<8x32xbf16>
    %cst_43 = arith.constant dense<0.000000e+00> : vector<16x32xf32>
    %116 = tpu.matmul %113, %115, %cst_43 {dimension_numbers = #tpu.dot_dimension_numbers<[1], [0], [0], [1], [0, 0, 1, 1], [], []>} : vector<16x8xbf16>, vector<8x32xbf16>, vector<16x32xf32> -> vector<16x32xf32>
    %117 = arith.addf %88, %116 : vector<16x32xf32>
    %118 = vector.extract_strided_slice %23 {offsets = [0, 24], sizes = [16, 8], strides = [1, 1]} : vector<16x32xf32> to vector<16x8xf32>
    %119 = arith.truncf %118 : vector<16x8xf32> to vector<16x8xbf16>
    %120 = vector.shape_cast %119 : vector<16x8xbf16> to vector<2x8x8xbf16>
    %121 = vector.extract_strided_slice %24 {offsets = [0, 24], sizes = [16, 8], strides = [1, 1]} : vector<16x32xf32> to vector<16x8xf32>
    %122 = arith.truncf %121 : vector<16x8xf32> to vector<16x8xbf16>
    %123 = vector.shape_cast %122 : vector<16x8xbf16> to vector<2x8x8xbf16>
    %124 = vector.extract_strided_slice %25 {offsets = [0, 24], sizes = [16, 8], strides = [1, 1]} : vector<16x32xf32> to vector<16x8xf32>
    %125 = arith.truncf %124 : vector<16x8xf32> to vector<16x8xbf16>
    %126 = vector.shape_cast %125 : vector<16x8xbf16> to vector<2x8x8xbf16>
    "tpu.trace_start"() <{level = 10 : i32, message = "bqe,bke->bqk"}> : () -> ()
    %cst_44 = arith.constant dense<0.000000e+00> : vector<2x8x8xf32>
    %127 = tpu.matmul %120, %123, %cst_44 {dimension_numbers = #tpu.dot_dimension_numbers<[2], [2], [1], [1], [0, 0, 0, 1, 1, 1], [0], [0]>} : vector<2x8x8xbf16>, vector<2x8x8xbf16>, vector<2x8x8xf32> -> vector<2x8x8xf32>
    "tpu.trace_stop"() : () -> ()
    %128 = arith.addf %127, %8 : vector<2x8x8xf32>
    %cst_45 = arith.constant dense<0xFF800000> : vector<2x8xf32>
    %129 = vector.multi_reduction <maximumf>, %128, %cst_45 [2] : vector<2x8x8xf32> to vector<2x8xf32>
    %130 = vector.shape_cast %129 : vector<2x8xf32> to vector<2x8x1xf32>
    %131 = vector.broadcast %130 : vector<2x8x1xf32> to vector<2x8x8xf32>
    %132 = arith.subf %128, %131 : vector<2x8x8xf32>
    %133 = math.exp %132 : vector<2x8x8xf32>
    %cst_46 = arith.constant dense<0.000000e+00> : vector<2x8xf32>
    %134 = vector.multi_reduction <add>, %133, %cst_46 [2] : vector<2x8x8xf32> to vector<2x8xf32>
    %135 = vector.shape_cast %134 : vector<2x8xf32> to vector<2x8x1xf32>
    %136 = tpu.reciprocal %135 {approx = true} : vector<2x8x1xf32> -> vector<2x8x1xf32>
    %137 = vector.broadcast %136 : vector<2x8x1xf32> to vector<2x8x8xf32>
    %138 = arith.mulf %133, %137 : vector<2x8x8xf32>
    %139 = arith.truncf %138 : vector<2x8x8xf32> to vector<2x8x8xbf16>
    "tpu.trace_start"() <{level = 10 : i32, message = "bqk,bke->bqe"}> : () -> ()
    %cst_47 = arith.constant dense<0.000000e+00> : vector<2x8x8xf32>
    %140 = tpu.matmul %139, %126, %cst_47 {dimension_numbers = #tpu.dot_dimension_numbers<[2], [1], [1], [2], [0, 0, 0, 1, 1, 2], [0], [0]>} : vector<2x8x8xbf16>, vector<2x8x8xbf16>, vector<2x8x8xf32> -> vector<2x8x8xf32>
    "tpu.trace_stop"() : () -> ()
    %141 = vector.shape_cast %140 : vector<2x8x8xf32> to vector<16x8xf32>
    %142 = arith.truncf %141 : vector<16x8xf32> to vector<16x8xbf16>
    %143 = vector.extract_strided_slice %27 {offsets = [3, 0, 0], sizes = [1, 8, 32], strides = [1, 1, 1]} : vector<4x8x32xbf16> to vector<1x8x32xbf16>
    %144 = vector.shape_cast %143 : vector<1x8x32xbf16> to vector<8x32xbf16>
    %cst_48 = arith.constant dense<0.000000e+00> : vector<16x32xf32>
    %145 = tpu.matmul %142, %144, %cst_48 {dimension_numbers = #tpu.dot_dimension_numbers<[1], [0], [0], [1], [0, 0, 1, 1], [], []>} : vector<16x8xbf16>, vector<8x32xbf16>, vector<16x32xf32> -> vector<16x32xf32>
    %146 = arith.addf %117, %145 : vector<16x32xf32>
    %147 = vector.broadcast %29 : vector<1x32xf32> to vector<16x32xf32>
    %148 = arith.addf %146, %147 : vector<16x32xf32>
    %149 = arith.addf %148, %3 : vector<16x32xf32>
    %150 = vector.extract_strided_slice %10 {offsets = [0, 0], sizes = [1, 32], strides = [1, 1]} : vector<2x32xf32> to vector<1x32xf32>
    %151 = vector.extract_strided_slice %10 {offsets = [1, 0], sizes = [1, 32], strides = [1, 1]} : vector<2x32xf32> to vector<1x32xf32>
    %cst_49 = arith.constant dense<0.000000e+00> : vector<16xf32>
    %152 = vector.multi_reduction <add>, %149, %cst_49 [1] : vector<16x32xf32> to vector<16xf32>
    %153 = vector.shape_cast %152 : vector<16xf32> to vector<16x1xf32>
    %cst_50 = arith.constant 3.200000e+01 : f32
    %154 = vector.broadcast %cst_50 : f32 to vector<16x1xf32>
    %155 = arith.divf %153, %154 : vector<16x1xf32>
    %156 = vector.broadcast %155 : vector<16x1xf32> to vector<16x32xf32>
    %157 = arith.subf %149, %156 : vector<16x32xf32>
    %158 = arith.mulf %157, %157 : vector<16x32xf32>
    %cst_51 = arith.constant dense<0.000000e+00> : vector<16xf32>
    %159 = vector.multi_reduction <add>, %158, %cst_51 [1] : vector<16x32xf32> to vector<16xf32>
    %160 = vector.shape_cast %159 : vector<16xf32> to vector<16x1xf32>
    %cst_52 = arith.constant 3.200000e+01 : f32
    %161 = vector.broadcast %cst_52 : f32 to vector<16x1xf32>
    %162 = arith.divf %160, %161 : vector<16x1xf32>
    %163 = vector.broadcast %155 : vector<16x1xf32> to vector<16x32xf32>
    %164 = arith.subf %149, %163 : vector<16x32xf32>
    %cst_53 = arith.constant 9.99999974E-6 : f32
    %165 = vector.broadcast %cst_53 : f32 to vector<16x1xf32>
    %166 = arith.addf %162, %165 : vector<16x1xf32>
    %167 = math.rsqrt %166 : vector<16x1xf32>
    %168 = vector.broadcast %167 : vector<16x1xf32> to vector<16x32xf32>
    %169 = arith.mulf %164, %168 : vector<16x32xf32>
    %170 = vector.broadcast %150 : vector<1x32xf32> to vector<16x32xf32>
    %171 = arith.mulf %169, %170 : vector<16x32xf32>
    %172 = vector.broadcast %151 : vector<1x32xf32> to vector<16x32xf32>
    %173 = arith.addf %171, %172 : vector<16x32xf32>
    %174 = arith.truncf %173 : vector<16x32xf32> to vector<16x32xbf16>
    %175 = arith.truncf %4 : vector<16x32xf32> to vector<16x32xbf16>
    %c0_54 = arith.constant 0 : index
    %c0_55 = arith.constant 0 : index
    %c0_56 = arith.constant 0 : index
    %176 = vector.load %arg9[%c0_54, %c0_55, %c0_56] : memref<1x32x32xbf16, #tpu.memory_space<vmem>>, vector<1x32x32xbf16>
    %177 = vector.shape_cast %176 : vector<1x32x32xbf16> to vector<32x32xbf16>
    %cst_57 = arith.constant dense<0.000000e+00> : vector<16x32xf32>
    %178 = tpu.matmul %174, %177, %cst_57 {dimension_numbers = #tpu.dot_dimension_numbers<[1], [0], [0], [1], [0, 0, 1, 1], [], []>} : vector<16x32xbf16>, vector<32x32xbf16>, vector<16x32xf32> -> vector<16x32xf32>
    %c0_58 = arith.constant 0 : index
    %c0_59 = arith.constant 0 : index
    %c0_60 = arith.constant 0 : index
    %179 = vector.load %arg10[%c0_58, %c0_59, %c0_60] : memref<1x1x32xf32, #tpu.memory_space<vmem>>, vector<1x1x32xf32>
    %180 = vector.shape_cast %179 : vector<1x1x32xf32> to vector<1x32xf32>
    %181 = vector.broadcast %180 : vector<1x32xf32> to vector<16x32xf32>
    %182 = arith.addf %178, %181 : vector<16x32xf32>
    %c0_61 = arith.constant 0 : index
    %c0_62 = arith.constant 0 : index
    %c0_63 = arith.constant 0 : index
    %183 = vector.load %arg11[%c0_61, %c0_62, %c0_63] : memref<1x32x64xbf16, #tpu.memory_space<vmem>>, vector<1x32x64xbf16>
    %184 = vector.shape_cast %183 : vector<1x32x64xbf16> to vector<32x64xbf16>
    %cst_64 = arith.constant dense<0.000000e+00> : vector<16x64xf32>
    %185 = tpu.matmul %175, %184, %cst_64 {dimension_numbers = #tpu.dot_dimension_numbers<[1], [0], [0], [1], [0, 0, 1, 1], [], []>} : vector<16x32xbf16>, vector<32x64xbf16>, vector<16x64xf32> -> vector<16x64xf32>
    %c0_65 = arith.constant 0 : index
    %c0_66 = arith.constant 0 : index
    %c0_67 = arith.constant 0 : index
    %186 = vector.load %arg12[%c0_65, %c0_66, %c0_67] : memref<1x1x64xf32, #tpu.memory_space<vmem>>, vector<1x1x64xf32>
    %187 = vector.shape_cast %186 : vector<1x1x64xf32> to vector<1x64xf32>
    %188 = vector.broadcast %187 : vector<1x64xf32> to vector<16x64xf32>
    %189 = arith.addf %185, %188 : vector<16x64xf32>
    %190 = vector.extract_strided_slice %189 {offsets = [0, 0], sizes = [16, 32], strides = [1, 1]} : vector<16x64xf32> to vector<16x32xf32>
    %191 = vector.extract_strided_slice %189 {offsets = [0, 32], sizes = [16, 32], strides = [1, 1]} : vector<16x64xf32> to vector<16x32xf32>
    %c0_68 = arith.constant 0 : index
    %c0_69 = arith.constant 0 : index
    %c0_70 = arith.constant 0 : index
    %c0_71 = arith.constant 0 : index
    %192 = vector.load %arg13[%c0_68, %c0_69, %c0_70, %c0_71] : memref<1x4x8x32xbf16, #tpu.memory_space<vmem>>, vector<1x4x8x32xbf16>
    %193 = vector.shape_cast %192 : vector<1x4x8x32xbf16> to vector<4x8x32xbf16>
    %c0_72 = arith.constant 0 : index
    %c0_73 = arith.constant 0 : index
    %c0_74 = arith.constant 0 : index
    %194 = vector.load %arg14[%c0_72, %c0_73, %c0_74] : memref<1x1x32xf32, #tpu.memory_space<vmem>>, vector<1x1x32xf32>
    %195 = vector.shape_cast %194 : vector<1x1x32xf32> to vector<1x32xf32>
    %cst_75 = arith.constant 0.000000e+00 : f32
    %196 = vector.broadcast %cst_75 : f32 to vector<16x32xf32>
    %197 = vector.extract_strided_slice %182 {offsets = [0, 0], sizes = [16, 8], strides = [1, 1]} : vector<16x32xf32> to vector<16x8xf32>
    %198 = arith.truncf %197 : vector<16x8xf32> to vector<16x8xbf16>
    %199 = vector.shape_cast %198 : vector<16x8xbf16> to vector<2x8x8xbf16>
    %200 = vector.extract_strided_slice %190 {offsets = [0, 0], sizes = [16, 8], strides = [1, 1]} : vector<16x32xf32> to vector<16x8xf32>
    %201 = arith.truncf %200 : vector<16x8xf32> to vector<16x8xbf16>
    %202 = vector.shape_cast %201 : vector<16x8xbf16> to vector<2x8x8xbf16>
    %203 = vector.extract_strided_slice %191 {offsets = [0, 0], sizes = [16, 8], strides = [1, 1]} : vector<16x32xf32> to vector<16x8xf32>
    %204 = arith.truncf %203 : vector<16x8xf32> to vector<16x8xbf16>
    %205 = vector.shape_cast %204 : vector<16x8xbf16> to vector<2x8x8xbf16>
    "tpu.trace_start"() <{level = 10 : i32, message = "bqe,bke->bqk"}> : () -> ()
    %cst_76 = arith.constant dense<0.000000e+00> : vector<2x8x8xf32>
    %206 = tpu.matmul %199, %202, %cst_76 {dimension_numbers = #tpu.dot_dimension_numbers<[2], [2], [1], [1], [0, 0, 0, 1, 1, 1], [0], [0]>} : vector<2x8x8xbf16>, vector<2x8x8xbf16>, vector<2x8x8xf32> -> vector<2x8x8xf32>
    "tpu.trace_stop"() : () -> ()
    %cst_77 = arith.constant dense<0xFF800000> : vector<2x8xf32>
    %207 = vector.multi_reduction <maximumf>, %206, %cst_77 [2] : vector<2x8x8xf32> to vector<2x8xf32>
    %208 = vector.shape_cast %207 : vector<2x8xf32> to vector<2x8x1xf32>
    %209 = vector.broadcast %208 : vector<2x8x1xf32> to vector<2x8x8xf32>
    %210 = arith.subf %206, %209 : vector<2x8x8xf32>
    %211 = math.exp %210 : vector<2x8x8xf32>
    %cst_78 = arith.constant dense<0.000000e+00> : vector<2x8xf32>
    %212 = vector.multi_reduction <add>, %211, %cst_78 [2] : vector<2x8x8xf32> to vector<2x8xf32>
    %213 = vector.shape_cast %212 : vector<2x8xf32> to vector<2x8x1xf32>
    %214 = tpu.reciprocal %213 {approx = true} : vector<2x8x1xf32> -> vector<2x8x1xf32>
    %215 = vector.broadcast %214 : vector<2x8x1xf32> to vector<2x8x8xf32>
    %216 = arith.mulf %211, %215 : vector<2x8x8xf32>
    %217 = arith.truncf %216 : vector<2x8x8xf32> to vector<2x8x8xbf16>
    "tpu.trace_start"() <{level = 10 : i32, message = "bqk,bke->bqe"}> : () -> ()
    %cst_79 = arith.constant dense<0.000000e+00> : vector<2x8x8xf32>
    %218 = tpu.matmul %217, %205, %cst_79 {dimension_numbers = #tpu.dot_dimension_numbers<[2], [1], [1], [2], [0, 0, 0, 1, 1, 2], [0], [0]>} : vector<2x8x8xbf16>, vector<2x8x8xbf16>, vector<2x8x8xf32> -> vector<2x8x8xf32>
    "tpu.trace_stop"() : () -> ()
    %219 = vector.shape_cast %218 : vector<2x8x8xf32> to vector<16x8xf32>
    %220 = arith.truncf %219 : vector<16x8xf32> to vector<16x8xbf16>
    %221 = vector.extract_strided_slice %193 {offsets = [0, 0, 0], sizes = [1, 8, 32], strides = [1, 1, 1]} : vector<4x8x32xbf16> to vector<1x8x32xbf16>
    %222 = vector.shape_cast %221 : vector<1x8x32xbf16> to vector<8x32xbf16>
    %cst_80 = arith.constant dense<0.000000e+00> : vector<16x32xf32>
    %223 = tpu.matmul %220, %222, %cst_80 {dimension_numbers = #tpu.dot_dimension_numbers<[1], [0], [0], [1], [0, 0, 1, 1], [], []>} : vector<16x8xbf16>, vector<8x32xbf16>, vector<16x32xf32> -> vector<16x32xf32>
    %224 = arith.addf %196, %223 : vector<16x32xf32>
    %225 = vector.extract_strided_slice %182 {offsets = [0, 8], sizes = [16, 8], strides = [1, 1]} : vector<16x32xf32> to vector<16x8xf32>
    %226 = arith.truncf %225 : vector<16x8xf32> to vector<16x8xbf16>
    %227 = vector.shape_cast %226 : vector<16x8xbf16> to vector<2x8x8xbf16>
    %228 = vector.extract_strided_slice %190 {offsets = [0, 8], sizes = [16, 8], strides = [1, 1]} : vector<16x32xf32> to vector<16x8xf32>
    %229 = arith.truncf %228 : vector<16x8xf32> to vector<16x8xbf16>
    %230 = vector.shape_cast %229 : vector<16x8xbf16> to vector<2x8x8xbf16>
    %231 = vector.extract_strided_slice %191 {offsets = [0, 8], sizes = [16, 8], strides = [1, 1]} : vector<16x32xf32> to vector<16x8xf32>
    %232 = arith.truncf %231 : vector<16x8xf32> to vector<16x8xbf16>
    %233 = vector.shape_cast %232 : vector<16x8xbf16> to vector<2x8x8xbf16>
    "tpu.trace_start"() <{level = 10 : i32, message = "bqe,bke->bqk"}> : () -> ()
    %cst_81 = arith.constant dense<0.000000e+00> : vector<2x8x8xf32>
    %234 = tpu.matmul %227, %230, %cst_81 {dimension_numbers = #tpu.dot_dimension_numbers<[2], [2], [1], [1], [0, 0, 0, 1, 1, 1], [0], [0]>} : vector<2x8x8xbf16>, vector<2x8x8xbf16>, vector<2x8x8xf32> -> vector<2x8x8xf32>
    "tpu.trace_stop"() : () -> ()
    %cst_82 = arith.constant dense<0xFF800000> : vector<2x8xf32>
    %235 = vector.multi_reduction <maximumf>, %234, %cst_82 [2] : vector<2x8x8xf32> to vector<2x8xf32>
    %236 = vector.shape_cast %235 : vector<2x8xf32> to vector<2x8x1xf32>
    %237 = vector.broadcast %236 : vector<2x8x1xf32> to vector<2x8x8xf32>
    %238 = arith.subf %234, %237 : vector<2x8x8xf32>
    %239 = math.exp %238 : vector<2x8x8xf32>
    %cst_83 = arith.constant dense<0.000000e+00> : vector<2x8xf32>
    %240 = vector.multi_reduction <add>, %239, %cst_83 [2] : vector<2x8x8xf32> to vector<2x8xf32>
    %241 = vector.shape_cast %240 : vector<2x8xf32> to vector<2x8x1xf32>
    %242 = tpu.reciprocal %241 {approx = true} : vector<2x8x1xf32> -> vector<2x8x1xf32>
    %243 = vector.broadcast %242 : vector<2x8x1xf32> to vector<2x8x8xf32>
    %244 = arith.mulf %239, %243 : vector<2x8x8xf32>
    %245 = arith.truncf %244 : vector<2x8x8xf32> to vector<2x8x8xbf16>
    "tpu.trace_start"() <{level = 10 : i32, message = "bqk,bke->bqe"}> : () -> ()
    %cst_84 = arith.constant dense<0.000000e+00> : vector<2x8x8xf32>
    %246 = tpu.matmul %245, %233, %cst_84 {dimension_numbers = #tpu.dot_dimension_numbers<[2], [1], [1], [2], [0, 0, 0, 1, 1, 2], [0], [0]>} : vector<2x8x8xbf16>, vector<2x8x8xbf16>, vector<2x8x8xf32> -> vector<2x8x8xf32>
    "tpu.trace_stop"() : () -> ()
    %247 = vector.shape_cast %246 : vector<2x8x8xf32> to vector<16x8xf32>
    %248 = arith.truncf %247 : vector<16x8xf32> to vector<16x8xbf16>
    %249 = vector.extract_strided_slice %193 {offsets = [1, 0, 0], sizes = [1, 8, 32], strides = [1, 1, 1]} : vector<4x8x32xbf16> to vector<1x8x32xbf16>
    %250 = vector.shape_cast %249 : vector<1x8x32xbf16> to vector<8x32xbf16>
    %cst_85 = arith.constant dense<0.000000e+00> : vector<16x32xf32>
    %251 = tpu.matmul %248, %250, %cst_85 {dimension_numbers = #tpu.dot_dimension_numbers<[1], [0], [0], [1], [0, 0, 1, 1], [], []>} : vector<16x8xbf16>, vector<8x32xbf16>, vector<16x32xf32> -> vector<16x32xf32>
    %252 = arith.addf %224, %251 : vector<16x32xf32>
    %253 = vector.extract_strided_slice %182 {offsets = [0, 16], sizes = [16, 8], strides = [1, 1]} : vector<16x32xf32> to vector<16x8xf32>
    %254 = arith.truncf %253 : vector<16x8xf32> to vector<16x8xbf16>
    %255 = vector.shape_cast %254 : vector<16x8xbf16> to vector<2x8x8xbf16>
    %256 = vector.extract_strided_slice %190 {offsets = [0, 16], sizes = [16, 8], strides = [1, 1]} : vector<16x32xf32> to vector<16x8xf32>
    %257 = arith.truncf %256 : vector<16x8xf32> to vector<16x8xbf16>
    %258 = vector.shape_cast %257 : vector<16x8xbf16> to vector<2x8x8xbf16>
    %259 = vector.extract_strided_slice %191 {offsets = [0, 16], sizes = [16, 8], strides = [1, 1]} : vector<16x32xf32> to vector<16x8xf32>
    %260 = arith.truncf %259 : vector<16x8xf32> to vector<16x8xbf16>
    %261 = vector.shape_cast %260 : vector<16x8xbf16> to vector<2x8x8xbf16>
    "tpu.trace_start"() <{level = 10 : i32, message = "bqe,bke->bqk"}> : () -> ()
    %cst_86 = arith.constant dense<0.000000e+00> : vector<2x8x8xf32>
    %262 = tpu.matmul %255, %258, %cst_86 {dimension_numbers = #tpu.dot_dimension_numbers<[2], [2], [1], [1], [0, 0, 0, 1, 1, 1], [0], [0]>} : vector<2x8x8xbf16>, vector<2x8x8xbf16>, vector<2x8x8xf32> -> vector<2x8x8xf32>
    "tpu.trace_stop"() : () -> ()
    %cst_87 = arith.constant dense<0xFF800000> : vector<2x8xf32>
    %263 = vector.multi_reduction <maximumf>, %262, %cst_87 [2] : vector<2x8x8xf32> to vector<2x8xf32>
    %264 = vector.shape_cast %263 : vector<2x8xf32> to vector<2x8x1xf32>
    %265 = vector.broadcast %264 : vector<2x8x1xf32> to vector<2x8x8xf32>
    %266 = arith.subf %262, %265 : vector<2x8x8xf32>
    %267 = math.exp %266 : vector<2x8x8xf32>
    %cst_88 = arith.constant dense<0.000000e+00> : vector<2x8xf32>
    %268 = vector.multi_reduction <add>, %267, %cst_88 [2] : vector<2x8x8xf32> to vector<2x8xf32>
    %269 = vector.shape_cast %268 : vector<2x8xf32> to vector<2x8x1xf32>
    %270 = tpu.reciprocal %269 {approx = true} : vector<2x8x1xf32> -> vector<2x8x1xf32>
    %271 = vector.broadcast %270 : vector<2x8x1xf32> to vector<2x8x8xf32>
    %272 = arith.mulf %267, %271 : vector<2x8x8xf32>
    %273 = arith.truncf %272 : vector<2x8x8xf32> to vector<2x8x8xbf16>
    "tpu.trace_start"() <{level = 10 : i32, message = "bqk,bke->bqe"}> : () -> ()
    %cst_89 = arith.constant dense<0.000000e+00> : vector<2x8x8xf32>
    %274 = tpu.matmul %273, %261, %cst_89 {dimension_numbers = #tpu.dot_dimension_numbers<[2], [1], [1], [2], [0, 0, 0, 1, 1, 2], [0], [0]>} : vector<2x8x8xbf16>, vector<2x8x8xbf16>, vector<2x8x8xf32> -> vector<2x8x8xf32>
    "tpu.trace_stop"() : () -> ()
    %275 = vector.shape_cast %274 : vector<2x8x8xf32> to vector<16x8xf32>
    %276 = arith.truncf %275 : vector<16x8xf32> to vector<16x8xbf16>
    %277 = vector.extract_strided_slice %193 {offsets = [2, 0, 0], sizes = [1, 8, 32], strides = [1, 1, 1]} : vector<4x8x32xbf16> to vector<1x8x32xbf16>
    %278 = vector.shape_cast %277 : vector<1x8x32xbf16> to vector<8x32xbf16>
    %cst_90 = arith.constant dense<0.000000e+00> : vector<16x32xf32>
    %279 = tpu.matmul %276, %278, %cst_90 {dimension_numbers = #tpu.dot_dimension_numbers<[1], [0], [0], [1], [0, 0, 1, 1], [], []>} : vector<16x8xbf16>, vector<8x32xbf16>, vector<16x32xf32> -> vector<16x32xf32>
    %280 = arith.addf %252, %279 : vector<16x32xf32>
    %281 = vector.extract_strided_slice %182 {offsets = [0, 24], sizes = [16, 8], strides = [1, 1]} : vector<16x32xf32> to vector<16x8xf32>
    %282 = arith.truncf %281 : vector<16x8xf32> to vector<16x8xbf16>
    %283 = vector.shape_cast %282 : vector<16x8xbf16> to vector<2x8x8xbf16>
    %284 = vector.extract_strided_slice %190 {offsets = [0, 24], sizes = [16, 8], strides = [1, 1]} : vector<16x32xf32> to vector<16x8xf32>
    %285 = arith.truncf %284 : vector<16x8xf32> to vector<16x8xbf16>
    %286 = vector.shape_cast %285 : vector<16x8xbf16> to vector<2x8x8xbf16>
    %287 = vector.extract_strided_slice %191 {offsets = [0, 24], sizes = [16, 8], strides = [1, 1]} : vector<16x32xf32> to vector<16x8xf32>
    %288 = arith.truncf %287 : vector<16x8xf32> to vector<16x8xbf16>
    %289 = vector.shape_cast %288 : vector<16x8xbf16> to vector<2x8x8xbf16>
    "tpu.trace_start"() <{level = 10 : i32, message = "bqe,bke->bqk"}> : () -> ()
    %cst_91 = arith.constant dense<0.000000e+00> : vector<2x8x8xf32>
    %290 = tpu.matmul %283, %286, %cst_91 {dimension_numbers = #tpu.dot_dimension_numbers<[2], [2], [1], [1], [0, 0, 0, 1, 1, 1], [0], [0]>} : vector<2x8x8xbf16>, vector<2x8x8xbf16>, vector<2x8x8xf32> -> vector<2x8x8xf32>
    "tpu.trace_stop"() : () -> ()
    %cst_92 = arith.constant dense<0xFF800000> : vector<2x8xf32>
    %291 = vector.multi_reduction <maximumf>, %290, %cst_92 [2] : vector<2x8x8xf32> to vector<2x8xf32>
    %292 = vector.shape_cast %291 : vector<2x8xf32> to vector<2x8x1xf32>
    %293 = vector.broadcast %292 : vector<2x8x1xf32> to vector<2x8x8xf32>
    %294 = arith.subf %290, %293 : vector<2x8x8xf32>
    %295 = math.exp %294 : vector<2x8x8xf32>
    %cst_93 = arith.constant dense<0.000000e+00> : vector<2x8xf32>
    %296 = vector.multi_reduction <add>, %295, %cst_93 [2] : vector<2x8x8xf32> to vector<2x8xf32>
    %297 = vector.shape_cast %296 : vector<2x8xf32> to vector<2x8x1xf32>
    %298 = tpu.reciprocal %297 {approx = true} : vector<2x8x1xf32> -> vector<2x8x1xf32>
    %299 = vector.broadcast %298 : vector<2x8x1xf32> to vector<2x8x8xf32>
    %300 = arith.mulf %295, %299 : vector<2x8x8xf32>
    %301 = arith.truncf %300 : vector<2x8x8xf32> to vector<2x8x8xbf16>
    "tpu.trace_start"() <{level = 10 : i32, message = "bqk,bke->bqe"}> : () -> ()
    %cst_94 = arith.constant dense<0.000000e+00> : vector<2x8x8xf32>
    %302 = tpu.matmul %301, %289, %cst_94 {dimension_numbers = #tpu.dot_dimension_numbers<[2], [1], [1], [2], [0, 0, 0, 1, 1, 2], [0], [0]>} : vector<2x8x8xbf16>, vector<2x8x8xbf16>, vector<2x8x8xf32> -> vector<2x8x8xf32>
    "tpu.trace_stop"() : () -> ()
    %303 = vector.shape_cast %302 : vector<2x8x8xf32> to vector<16x8xf32>
    %304 = arith.truncf %303 : vector<16x8xf32> to vector<16x8xbf16>
    %305 = vector.extract_strided_slice %193 {offsets = [3, 0, 0], sizes = [1, 8, 32], strides = [1, 1, 1]} : vector<4x8x32xbf16> to vector<1x8x32xbf16>
    %306 = vector.shape_cast %305 : vector<1x8x32xbf16> to vector<8x32xbf16>
    %cst_95 = arith.constant dense<0.000000e+00> : vector<16x32xf32>
    %307 = tpu.matmul %304, %306, %cst_95 {dimension_numbers = #tpu.dot_dimension_numbers<[1], [0], [0], [1], [0, 0, 1, 1], [], []>} : vector<16x8xbf16>, vector<8x32xbf16>, vector<16x32xf32> -> vector<16x32xf32>
    %308 = arith.addf %280, %307 : vector<16x32xf32>
    %309 = vector.broadcast %195 : vector<1x32xf32> to vector<16x32xf32>
    %310 = arith.addf %308, %309 : vector<16x32xf32>
    %311 = arith.addf %310, %173 : vector<16x32xf32>
    %312 = vector.extract_strided_slice %12 {offsets = [0, 0], sizes = [1, 32], strides = [1, 1]} : vector<2x32xf32> to vector<1x32xf32>
    %313 = vector.extract_strided_slice %12 {offsets = [1, 0], sizes = [1, 32], strides = [1, 1]} : vector<2x32xf32> to vector<1x32xf32>
    %cst_96 = arith.constant dense<0.000000e+00> : vector<16xf32>
    %314 = vector.multi_reduction <add>, %311, %cst_96 [1] : vector<16x32xf32> to vector<16xf32>
    %315 = vector.shape_cast %314 : vector<16xf32> to vector<16x1xf32>
    %cst_97 = arith.constant 3.200000e+01 : f32
    %316 = vector.broadcast %cst_97 : f32 to vector<16x1xf32>
    %317 = arith.divf %315, %316 : vector<16x1xf32>
    %318 = vector.broadcast %317 : vector<16x1xf32> to vector<16x32xf32>
    %319 = arith.subf %311, %318 : vector<16x32xf32>
    %320 = arith.mulf %319, %319 : vector<16x32xf32>
    %cst_98 = arith.constant dense<0.000000e+00> : vector<16xf32>
    %321 = vector.multi_reduction <add>, %320, %cst_98 [1] : vector<16x32xf32> to vector<16xf32>
    %322 = vector.shape_cast %321 : vector<16xf32> to vector<16x1xf32>
    %cst_99 = arith.constant 3.200000e+01 : f32
    %323 = vector.broadcast %cst_99 : f32 to vector<16x1xf32>
    %324 = arith.divf %322, %323 : vector<16x1xf32>
    %325 = vector.broadcast %317 : vector<16x1xf32> to vector<16x32xf32>
    %326 = arith.subf %311, %325 : vector<16x32xf32>
    %cst_100 = arith.constant 9.99999974E-6 : f32
    %327 = vector.broadcast %cst_100 : f32 to vector<16x1xf32>
    %328 = arith.addf %324, %327 : vector<16x1xf32>
    %329 = math.rsqrt %328 : vector<16x1xf32>
    %330 = vector.broadcast %329 : vector<16x1xf32> to vector<16x32xf32>
    %331 = arith.mulf %326, %330 : vector<16x32xf32>
    %332 = vector.broadcast %312 : vector<1x32xf32> to vector<16x32xf32>
    %333 = arith.mulf %331, %332 : vector<16x32xf32>
    %334 = vector.broadcast %313 : vector<1x32xf32> to vector<16x32xf32>
    %335 = arith.addf %333, %334 : vector<16x32xf32>
    %336 = arith.truncf %335 : vector<16x32xf32> to vector<16x32xbf16>
    %c0_101 = arith.constant 0 : index
    %c0_102 = arith.constant 0 : index
    %c0_103 = arith.constant 0 : index
    %337 = vector.load %arg16[%c0_101, %c0_102, %c0_103] : memref<1x32x128xbf16, #tpu.memory_space<vmem>>, vector<1x32x128xbf16>
    %338 = vector.shape_cast %337 : vector<1x32x128xbf16> to vector<32x128xbf16>
    %cst_104 = arith.constant dense<0.000000e+00> : vector<16x128xf32>
    %339 = tpu.matmul %336, %338, %cst_104 {dimension_numbers = #tpu.dot_dimension_numbers<[1], [0], [0], [1], [0, 0, 1, 1], [], []>} : vector<16x32xbf16>, vector<32x128xbf16>, vector<16x128xf32> -> vector<16x128xf32>
    %c0_105 = arith.constant 0 : index
    %c0_106 = arith.constant 0 : index
    %c0_107 = arith.constant 0 : index
    %340 = vector.load %arg17[%c0_105, %c0_106, %c0_107] : memref<1x1x128xf32, #tpu.memory_space<vmem>>, vector<1x1x128xf32>
    %341 = vector.shape_cast %340 : vector<1x1x128xf32> to vector<1x128xf32>
    %342 = vector.broadcast %341 : vector<1x128xf32> to vector<16x128xf32>
    %343 = arith.addf %339, %342 : vector<16x128xf32>
    %cst_108 = arith.constant 0.000000e+00 : f32
    %344 = vector.broadcast %cst_108 : f32 to vector<16x128xf32>
    %345 = arith.maximumf %343, %344 : vector<16x128xf32>
    %346 = arith.truncf %345 : vector<16x128xf32> to vector<16x128xbf16>
    %c0_109 = arith.constant 0 : index
    %c0_110 = arith.constant 0 : index
    %c0_111 = arith.constant 0 : index
    %347 = vector.load %arg18[%c0_109, %c0_110, %c0_111] : memref<1x128x32xbf16, #tpu.memory_space<vmem>>, vector<1x128x32xbf16>
    %348 = vector.shape_cast %347 : vector<1x128x32xbf16> to vector<128x32xbf16>
    %cst_112 = arith.constant dense<0.000000e+00> : vector<16x32xf32>
    %349 = tpu.matmul %346, %348, %cst_112 {dimension_numbers = #tpu.dot_dimension_numbers<[1], [0], [0], [1], [0, 0, 1, 1], [], []>} : vector<16x128xbf16>, vector<128x32xbf16>, vector<16x32xf32> -> vector<16x32xf32>
    %c0_113 = arith.constant 0 : index
    %c0_114 = arith.constant 0 : index
    %c0_115 = arith.constant 0 : index
    %350 = vector.load %arg19[%c0_113, %c0_114, %c0_115] : memref<1x1x32xf32, #tpu.memory_space<vmem>>, vector<1x1x32xf32>
    %351 = vector.shape_cast %350 : vector<1x1x32xf32> to vector<1x32xf32>
    %352 = vector.broadcast %351 : vector<1x32xf32> to vector<16x32xf32>
    %353 = arith.addf %349, %352 : vector<16x32xf32>
    %354 = arith.addf %353, %335 : vector<16x32xf32>
    %355 = vector.extract_strided_slice %14 {offsets = [0, 0], sizes = [1, 32], strides = [1, 1]} : vector<2x32xf32> to vector<1x32xf32>
    %356 = vector.extract_strided_slice %14 {offsets = [1, 0], sizes = [1, 32], strides = [1, 1]} : vector<2x32xf32> to vector<1x32xf32>
    %cst_116 = arith.constant dense<0.000000e+00> : vector<16xf32>
    %357 = vector.multi_reduction <add>, %354, %cst_116 [1] : vector<16x32xf32> to vector<16xf32>
    %358 = vector.shape_cast %357 : vector<16xf32> to vector<16x1xf32>
    %cst_117 = arith.constant 3.200000e+01 : f32
    %359 = vector.broadcast %cst_117 : f32 to vector<16x1xf32>
    %360 = arith.divf %358, %359 : vector<16x1xf32>
    %361 = vector.broadcast %360 : vector<16x1xf32> to vector<16x32xf32>
    %362 = arith.subf %354, %361 : vector<16x32xf32>
    %363 = arith.mulf %362, %362 : vector<16x32xf32>
    %cst_118 = arith.constant dense<0.000000e+00> : vector<16xf32>
    %364 = vector.multi_reduction <add>, %363, %cst_118 [1] : vector<16x32xf32> to vector<16xf32>
    %365 = vector.shape_cast %364 : vector<16xf32> to vector<16x1xf32>
    %cst_119 = arith.constant 3.200000e+01 : f32
    %366 = vector.broadcast %cst_119 : f32 to vector<16x1xf32>
    %367 = arith.divf %365, %366 : vector<16x1xf32>
    %368 = vector.broadcast %360 : vector<16x1xf32> to vector<16x32xf32>
    %369 = arith.subf %354, %368 : vector<16x32xf32>
    %cst_120 = arith.constant 9.99999974E-6 : f32
    %370 = vector.broadcast %cst_120 : f32 to vector<16x1xf32>
    %371 = arith.addf %367, %370 : vector<16x1xf32>
    %372 = math.rsqrt %371 : vector<16x1xf32>
    %373 = vector.broadcast %372 : vector<16x1xf32> to vector<16x32xf32>
    %374 = arith.mulf %369, %373 : vector<16x32xf32>
    %375 = vector.broadcast %355 : vector<1x32xf32> to vector<16x32xf32>
    %376 = arith.mulf %374, %375 : vector<16x32xf32>
    %377 = vector.broadcast %356 : vector<1x32xf32> to vector<16x32xf32>
    %378 = arith.addf %376, %377 : vector<16x32xf32>
    %c0_121 = arith.constant 0 : index
    %c0_122 = arith.constant 0 : index
    %379 = vector.load %arg22[%c0_121, %c0_122] : memref<16x32xf32, #tpu.memory_space<vmem>>, vector<16x32xf32>
    tpu.vector_store %arg22[%c0_121, %c0_122], %378 {strides = array<i32>} : memref<16x32xf32, #tpu.memory_space<vmem>>, vector<16x32xf32>,
    %c1_i32 = arith.constant 1 : i32
    %380 = arith.cmpi eq, %arg0, %c1_i32 : i32
    %381 = arith.extui %380 : i1 to i32
    %c0_i32_123 = arith.constant 0 : i32
    %382 = arith.cmpi ne, %381, %c0_i32_123 : i32
    scf.if %382 {
      %c0_124 = arith.constant 0 : index
      %c0_125 = arith.constant 0 : index
      %383 = vector.load %arg21[%c0_124, %c0_125] : memref<16x32xf32, #tpu.memory_space<vmem>>, vector<16x32xf32>
      tpu.vector_store %arg21[%c0_124, %c0_125], %378 {strides = array<i32>} : memref<16x32xf32, #tpu.memory_space<vmem>>, vector<16x32xf32>,
    } else {
    }
    return
  }
  func.func @transform_0(%arg0: i32) -> (i32, i32) {
    %c0_i32 = arith.constant 0 : i32
    %c0_i32_0 = arith.constant 0 : i32
    %c0_i32_1 = arith.constant 0 : i32
    return %c0_i32, %c0_i32_0 : i32, i32
  }
  func.func @transform_1(%arg0: i32) -> (i32, i32) {
    %c0_i32 = arith.constant 0 : i32
    %c0_i32_0 = arith.constant 0 : i32
    %c0_i32_1 = arith.constant 0 : i32
    return %c0_i32, %c0_i32_0 : i32, i32
  }
  func.func @transform_2(%arg0: i32) -> (i32, i32) {
    %c0_i32 = arith.constant 0 : i32
    %c0_i32_0 = arith.constant 0 : i32
    %c0_i32_1 = arith.constant 0 : i32
    return %c0_i32, %c0_i32_0 : i32, i32
  }
  func.func @transform_3(%arg0: i32) -> (i32, i32, i32) {
    %c0_i32 = arith.constant 0 : i32
    %c0_i32_0 = arith.constant 0 : i32
    %c0_i32_1 = arith.constant 0 : i32
    return %arg0, %c0_i32, %c0_i32_0 : i32, i32, i32
  }
  func.func @transform_4(%arg0: i32) -> (i32, i32, i32) {
    %c0_i32 = arith.constant 0 : i32
    %c0_i32_0 = arith.constant 0 : i32
    %c0_i32_1 = arith.constant 0 : i32
    return %arg0, %c0_i32, %c0_i32_0 : i32, i32, i32
  }
  func.func @transform_5(%arg0: i32) -> (i32, i32, i32, i32) {
    %c0_i32 = arith.constant 0 : i32
    %c0_i32_0 = arith.constant 0 : i32
    %c0_i32_1 = arith.constant 0 : i32
    %c0_i32_2 = arith.constant 0 : i32
    return %arg0, %c0_i32, %c0_i32_0, %c0_i32_1 : i32, i32, i32, i32
  }
  func.func @transform_6(%arg0: i32) -> (i32, i32, i32) {
    %c0_i32 = arith.constant 0 : i32
    %c0_i32_0 = arith.constant 0 : i32
    %c0_i32_1 = arith.constant 0 : i32
    return %arg0, %c0_i32, %c0_i32_0 : i32, i32, i32
  }
  func.func @transform_7(%arg0: i32) -> (i32, i32, i32) {
    %c0_i32 = arith.constant 0 : i32
    %c0_i32_0 = arith.constant 0 : i32
    %c0_i32_1 = arith.constant 0 : i32
    return %arg0, %c0_i32, %c0_i32_0 : i32, i32, i32
  }
  func.func @transform_8(%arg0: i32) -> (i32, i32, i32) {
    %c0_i32 = arith.constant 0 : i32
    %c0_i32_0 = arith.constant 0 : i32
    %c0_i32_1 = arith.constant 0 : i32
    return %arg0, %c0_i32, %c0_i32_0 : i32, i32, i32
  }
  func.func @transform_9(%arg0: i32) -> (i32, i32, i32) {
    %c0_i32 = arith.constant 0 : i32
    %c0_i32_0 = arith.constant 0 : i32
    %c0_i32_1 = arith.constant 0 : i32
    return %arg0, %c0_i32, %c0_i32_0 : i32, i32, i32
  }
  func.func @transform_10(%arg0: i32) -> (i32, i32, i32) {
    %c0_i32 = arith.constant 0 : i32
    %c0_i32_0 = arith.constant 0 : i32
    %c0_i32_1 = arith.constant 0 : i32
    return %arg0, %c0_i32, %c0_i32_0 : i32, i32, i32
  }
  func.func @transform_11(%arg0: i32) -> (i32, i32, i32) {
    %c0_i32 = arith.constant 0 : i32
    %c0_i32_0 = arith.constant 0 : i32
    %c0_i32_1 = arith.constant 0 : i32
    return %arg0, %c0_i32, %c0_i32_0 : i32, i32, i32
  }
  func.func @transform_12(%arg0: i32) -> (i32, i32, i32, i32) {
    %c0_i32 = arith.constant 0 : i32
    %c0_i32_0 = arith.constant 0 : i32
    %c0_i32_1 = arith.constant 0 : i32
    %c0_i32_2 = arith.constant 0 : i32
    return %arg0, %c0_i32, %c0_i32_0, %c0_i32_1 : i32, i32, i32, i32
  }
  func.func @transform_13(%arg0: i32) -> (i32, i32, i32) {
    %c0_i32 = arith.constant 0 : i32
    %c0_i32_0 = arith.constant 0 : i32
    %c0_i32_1 = arith.constant 0 : i32
    return %arg0, %c0_i32, %c0_i32_0 : i32, i32, i32
  }
  func.func @transform_14(%arg0: i32) -> (i32, i32, i32) {
    %c0_i32 = arith.constant 0 : i32
    %c0_i32_0 = arith.constant 0 : i32
    %c0_i32_1 = arith.constant 0 : i32
    return %arg0, %c0_i32, %c0_i32_0 : i32, i32, i32
  }
  func.func @transform_15(%arg0: i32) -> (i32, i32, i32) {
    %c0_i32 = arith.constant 0 : i32
    %c0_i32_0 = arith.constant 0 : i32
    %c0_i32_1 = arith.constant 0 : i32
    return %arg0, %c0_i32, %c0_i32_0 : i32, i32, i32
  }
  func.func @transform_16(%arg0: i32) -> (i32, i32, i32) {
    %c0_i32 = arith.constant 0 : i32
    %c0_i32_0 = arith.constant 0 : i32
    %c0_i32_1 = arith.constant 0 : i32
    return %arg0, %c0_i32, %c0_i32_0 : i32, i32, i32
  }
  func.func @transform_17(%arg0: i32) -> (i32, i32, i32) {
    %c0_i32 = arith.constant 0 : i32
    %c0_i32_0 = arith.constant 0 : i32
    %c0_i32_1 = arith.constant 0 : i32
    return %arg0, %c0_i32, %c0_i32_0 : i32, i32, i32
  }
  func.func @transform_18(%arg0: i32) -> (i32, i32, i32) {
    %c0_i32 = arith.constant 0 : i32
    %c0_i32_0 = arith.constant 0 : i32
    %c0_i32_1 = arith.constant 0 : i32
    return %arg0, %c0_i32, %c0_i32_0 : i32, i32, i32
  }
  func.func @transform_19(%arg0: i32) -> (i32, i32, i32) {
    %c0_i32 = arith.constant 0 : i32
    %c0_i32_0 = arith.constant 0 : i32
    %c0_i32_1 = arith.constant 0 : i32
    return %arg0, %c0_i32, %c0_i32_0 : i32, i32, i32
  }
  func.func @transform_20(%arg0: i32) -> (i32, i32) {
    %c0_i32 = arith.constant 0 : i32
    %c0_i32_0 = arith.constant 0 : i32
    %c0_i32_1 = arith.constant 0 : i32
    return %c0_i32, %c0_i32_0 : i32, i32
  }
}

</mosaic_0001>

<llo_original>
// kernel: decoder_forward.1
$region0: #{decoder_forward.1}
  #allocation0 [shape = 'u32[]', space=smem, size = 0x4, offset = 0x4, fixed_abs, tag = 'smem constant byte address 0x4 - core index']
  #allocation1 [shape = 'u32[144,128]{1,0:T(1,128)}', space=vmem, size = 0x12000, scoped, tag = 'internal scratch']
  #allocation2 [shape = 'f32[16,32]{1,0:T(8,128)}', space=vmem, size = 0x2000, scoped, tag = 'scratch operand']
  %s0 = inlined_call_operand.hbm [shape: f32[16,32], index: 0, kind: input, shape index: {}]
  %s1 = inlined_call_operand.hbm [shape: f32[16,32], index: 1, kind: input, shape index: {}]
  %s2 = inlined_call_operand.hbm [shape: f32[8,8], index: 2, kind: input, shape index: {}]
  %s3 = inlined_call_operand.hbm [shape: bf16[2,32,96], index: 3, kind: input, shape index: {}]
  %s4 = inlined_call_operand.hbm [shape: f32[2,1,96], index: 4, kind: input, shape index: {}]
  %s5 = inlined_call_operand.hbm [shape: bf16[2,4,8,32], index: 5, kind: input, shape index: {}]
  %s6 = inlined_call_operand.hbm [shape: f32[2,1,32], index: 6, kind: input, shape index: {}]
  %s7 = inlined_call_operand.hbm [shape: f32[2,2,32], index: 7, kind: input, shape index: {}]
  %s8 = inlined_call_operand.hbm [shape: bf16[2,32,32], index: 8, kind: input, shape index: {}]
  %s9 = inlined_call_operand.hbm [shape: f32[2,1,32], index: 9, kind: input, shape index: {}]
  %s10 = inlined_call_operand.hbm [shape: bf16[2,32,64], index: 10, kind: input, shape index: {}]
  %s11 = inlined_call_operand.hbm [shape: f32[2,1,64], index: 11, kind: input, shape index: {}]
  %s12 = inlined_call_operand.hbm [shape: bf16[2,4,8,32], index: 12, kind: input, shape index: {}]
  %s13 = inlined_call_operand.hbm [shape: f32[2,1,32], index: 13, kind: input, shape index: {}]
  %s14 = inlined_call_operand.hbm [shape: f32[2,2,32], index: 14, kind: input, shape index: {}]
  %s15 = inlined_call_operand.hbm [shape: bf16[2,32,128], index: 15, kind: input, shape index: {}]
  %s16 = inlined_call_operand.hbm [shape: f32[2,1,128], index: 16, kind: input, shape index: {}]
  %s17 = inlined_call_operand.hbm [shape: bf16[2,128,32], index: 17, kind: input, shape index: {}]
  %s18 = inlined_call_operand.hbm [shape: f32[2,1,32], index: 18, kind: input, shape index: {}]
  %s19 = inlined_call_operand.hbm [shape: f32[2,2,32], index: 19, kind: input, shape index: {}]
  %s20 = inlined_call_operand.hbm [shape: f32[16,32], index: 20, kind: output, shape index: {}]
  %s21 = sld [smem:[#allocation0]]
  $region201: #{decoder_forward.1} parent=0
    _
  %s23 = ssub.s32 1, %s21
  %s24 = scalar_select 0, %s23, %s21
  $region1: #{decoder_forward.1} parent=0
    #allocation3 [shape = 'u8[8192]{0}', space=vmem, size = 0x2000, scoped, tag = 'input window, operand 0, single buffered']
    #allocation4 [shape = 's32[2]{0}', space=sflag, size = 0x8, scoped, tag = 'scoped memory for decoder_forward.1']
    #allocation5 [shape = 's32[2]{0}', space=sflag, size = 0x8, scoped, tag = 'scoped memory for decoder_forward.1']
    #allocation6 [shape = 'u8[8192]{0}', space=vmem, size = 0x2000, scoped, tag = 'input window, operand 1, single buffered']
    #allocation7 [shape = 's32[1]{0}', space=sflag, size = 0x4, scoped, tag = 'scoped memory for decoder_forward.1']
    #allocation8 [shape = 'u8[4096]{0}', space=vmem, size = 0x1000, scoped, tag = 'input window, operand 2, single buffered']
    #allocation9 [shape = 'u8[16384]{0}', space=vmem, size = 0x4000, scoped, tag = 'input window, operand 3']
    #allocation10 [shape = 's32[2]{0}', space=sflag, size = 0x8, scoped, tag = 'scoped memory for decoder_forward.1']
    #allocation11 [shape = 'u8[1024]{0}', space=vmem, size = 0x400, scoped, tag = 'input window, operand 4']
    #allocation12 [shape = 'u8[16384]{0}', space=vmem, size = 0x4000, scoped, tag = 'input window, operand 5']
    #allocation13 [shape = 's32[2]{0}', space=sflag, size = 0x8, scoped, tag = 'scoped memory for decoder_forward.1']
    #allocation14 [shape = 'u8[1024]{0}', space=vmem, size = 0x400, scoped, tag = 'input window, operand 6']
    #allocation15 [shape = 'u8[2048]{0}', space=vmem, size = 0x800, scoped, tag = 'input window, operand 7']
    #allocation16 [shape = 's32[2]{0}', space=sflag, size = 0x8, scoped, tag = 'scoped memory for decoder_forward.1']
    #allocation17 [shape = 'u8[16384]{0}', space=vmem, size = 0x4000, scoped, tag = 'input window, operand 8']
    #allocation18 [shape = 'u8[1024]{0}', space=vmem, size = 0x400, scoped, tag = 'input window, operand 9']
    #allocation19 [shape = 's32[2]{0}', space=sflag, size = 0x8, scoped, tag = 'scoped memory for decoder_forward.1']
    #allocation20 [shape = 'u8[16384]{0}', space=vmem, size = 0x4000, scoped, tag = 'input window, operand 10']
    #allocation21 [shape = 'u8[1024]{0}', space=vmem, size = 0x400, scoped, tag = 'input window, operand 11']
    #allocation22 [shape = 's32[2]{0}', space=sflag, size = 0x8, scoped, tag = 'scoped memory for decoder_forward.1']
    #allocation23 [shape = 'u8[16384]{0}', space=vmem, size = 0x4000, scoped, tag = 'input window, operand 12']
    #allocation24 [shape = 'u8[1024]{0}', space=vmem, size = 0x400, scoped, tag = 'input window, operand 13']
    #allocation25 [shape = 's32[2]{0}', space=sflag, size = 0x8, scoped, tag = 'scoped memory for decoder_forward.1']
    #allocation26 [shape = 'u8[2048]{0}', space=vmem, size = 0x800, scoped, tag = 'input window, operand 14']
    #allocation27 [shape = 'u8[16384]{0}', space=vmem, size = 0x4000, scoped, tag = 'input window, operand 15']
    #allocation28 [shape = 's32[2]{0}', space=sflag, size = 0x8, scoped, tag = 'scoped memory for decoder_forward.1']
    #allocation29 [shape = 'u8[1024]{0}', space=vmem, size = 0x400, scoped, tag = 'input window, operand 16']
    #allocation30 [shape = 'u8[65536]{0}', space=vmem, size = 0x10000, scoped, tag = 'input window, operand 17']
    #allocation31 [shape = 's32[2]{0}', space=sflag, size = 0x8, scoped, tag = 'scoped memory for decoder_forward.1']
    #allocation32 [shape = 'u8[1024]{0}', space=vmem, size = 0x400, scoped, tag = 'input window, operand 18']
    #allocation33 [shape = 'u8[2048]{0}', space=vmem, size = 0x800, scoped, tag = 'input window, operand 19']
    #allocation34 [shape = 's32[2]{0}', space=sflag, size = 0x8, scoped, tag = 'scoped memory for decoder_forward.1']
    #allocation35 [shape = 'u8[8192]{0}', space=vmem, size = 0x2000, scoped, tag = 'output window, operand 0, single buffered']
    %25 = vsyncpa [#allocation4], 0
    %26 = vsyncpa [#allocation7], 0
    %27 = vsyncpa [#allocation10], 0
    %s28 = scalar_lea.sflag [#allocation10], 1
    %29 = vsyncpa %s28, 0
    %30 = vsyncpa [#allocation13], 0
    %s31 = scalar_lea.sflag [#allocation13], 1
    %32 = vsyncpa %s31, 0
    %33 = vsyncpa [#allocation16], 0
    %s34 = scalar_lea.sflag [#allocation16], 1
    %35 = vsyncpa %s34, 0
    %36 = vsyncpa [#allocation19], 0
    %s37 = scalar_lea.sflag [#allocation19], 1
    %38 = vsyncpa %s37, 0
    %39 = vsyncpa [#allocation22], 0
    %s40 = scalar_lea.sflag [#allocation22], 1
    %41 = vsyncpa %s40, 0
    %42 = vsyncpa [#allocation25], 0
    %s43 = scalar_lea.sflag [#allocation25], 1
    %44 = vsyncpa %s43, 0
    %45 = vsyncpa [#allocation28], 0
    %s46 = scalar_lea.sflag [#allocation28], 1
    %47 = vsyncpa %s46, 0
    %48 = vsyncpa [#allocation31], 0
    %s49 = scalar_lea.sflag [#allocation31], 1
    %50 = vsyncpa %s49, 0
    %51 = vsyncpa [#allocation34], 0
    %s52 = scalar_lea.sflag [#allocation34], 1
    %53 = vsyncpa %s52, 0
    %54 = vsyncpa [#allocation5], 0
    loop: start=0, step=1, limit=4
    $region2: #{decoder_forward.1} parent=1 // loop_pre_header
      _
    $region3: #{decoder_forward.1} parent=1 // loop_header
      %s56 = sphi 0, %s60
      %p57 = scmp.ge.s32.totalorder %s56, 4
      %s64 = sphi 0, %s64
      %s66 = sphi 0, %s64
      %s67 = sphi 0, %s66
      %s81 = sphi 0, %s67
      %s85 = sphi 0, %s85
      %s87 = sphi 0, %s85
      %s88 = sphi 0, %s87
      %s102 = sphi 0, %s88
      %s106 = sphi 0, %s106
      %s108 = sphi 0, %s106
      %s109 = sphi 0, %s108
      %s123 = sphi 0, %s109
      %s129 = sphi 0, %s131
      %s132 = sphi 0, %s129
      %s133 = sphi 0, %s132
      %s149 = sphi 0, %s133
      %s155 = sphi 0, %s157
      %s158 = sphi 0, %s155
      %s159 = sphi 0, %s158
      %s175 = sphi 0, %s159
      %s181 = sphi 0, %s183
      %s184 = sphi 0, %s181
      %s185 = sphi 0, %s184
      %s201 = sphi 0, %s185
      %s207 = sphi 0, %s209
      %s210 = sphi 0, %s207
      %s211 = sphi 0, %s210
      %s227 = sphi 0, %s211
      %s233 = sphi 0, %s235
      %s236 = sphi 0, %s233
      %s237 = sphi 0, %s236
      %s253 = sphi 0, %s237
      %s259 = sphi 0, %s261
      %s262 = sphi 0, %s259
      %s263 = sphi 0, %s262
      %s279 = sphi 0, %s263
      %s285 = sphi 0, %s287
      %s288 = sphi 0, %s285
      %s289 = sphi 0, %s288
      %s305 = sphi 0, %s289
      %s311 = sphi 0, %s313
      %s314 = sphi 0, %s311
      %s315 = sphi 0, %s314
      %s331 = sphi 0, %s315
      %s337 = sphi 0, %s339
      %s340 = sphi 0, %s337
      %s341 = sphi 0, %s340
      %s357 = sphi 0, %s341
      %s363 = sphi 0, %s365
      %s366 = sphi 0, %s363
      %s367 = sphi 0, %s366
      %s383 = sphi 0, %s367
      %s389 = sphi 0, %s391
      %s392 = sphi 0, %s389
      %s393 = sphi 0, %s392
      %s409 = sphi 0, %s393
      %s415 = sphi 0, %s417
      %s418 = sphi 0, %s415
      %s419 = sphi 0, %s418
      %s435 = sphi 0, %s419
      %s441 = sphi 0, %s443
      %s444 = sphi 0, %s441
      %s445 = sphi 0, %s444
      %s461 = sphi 0, %s445
      %s467 = sphi 0, %s469
      %s470 = sphi 0, %s467
      %s471 = sphi 0, %s470
      %s487 = sphi 0, %s471
      %s493 = sphi 0, %s495
      %s496 = sphi 0, %s493
      %s497 = sphi 0, %s496
      %s513 = sphi 0, %s497
      %s519 = sphi 0, %s521
      %s522 = sphi 0, %s519
      %s523 = sphi 0, %s522
      %s539 = sphi 0, %s523
      %s545 = sphi 0, %s547
      %s548 = sphi 0, %s545
      %s549 = sphi 0, %s548
      %s565 = sphi 0, %s549
      %s569 = sphi 0, %s569
      %s571 = sphi 0, %s569
      %s572 = sphi 0, %s571
      %s586 = sphi 0, %s572
    $region4: #{decoder_forward.1} parent=1 // loop_header_branch
      %59 = sbr.rel (%p57) target = $region8
    $region5: #{decoder_forward.1} parent=1 // loop_body
      %s61 = ssub.s32 %s56, 1
      %s62 = ssub.s32 %s56, 2
      %s63 = sadd.s32 %s56, 1
      %s65 = sadd.s32 %s64, 1
      %p68 = scmp.eq.s32.totalorder %s56, 1
      %p69 = scmp.ne.s32.totalorder %s64, %s66
      %p70 = scmp.eq.s32.totalorder %s56, 0
      %p71 = por %p69, %p70
      %p72 = scmp.ne.s32.totalorder %s64, %s66
      %p73 = scmp.eq.s32.totalorder %s61, 1
      %p74 = por %p72, %p73
      %p75 = scmp.ne.s32.totalorder %s66, %s67
      %p76 = scmp.eq.s32.totalorder %s61, 0
      %p77 = por %p75, %p76
      %p78 = scmp.ne.s32.totalorder %s66, %s67
      %p79 = scmp.eq.s32.totalorder %s62, 1
      %p80 = por %p78, %p79
      %p82 = scmp.ne.s32.totalorder %s67, %s81
      %p83 = scmp.eq.s32.totalorder %s62, 0
      %p84 = por %p82, %p83
      %s86 = sadd.s32 %s85, 1
      %p89 = scmp.eq.s32.totalorder %s56, 1
      %p90 = scmp.ne.s32.totalorder %s85, %s87
      %p91 = scmp.eq.s32.totalorder %s56, 0
      %p92 = por %p90, %p91
      %p93 = scmp.ne.s32.totalorder %s85, %s87
      %p94 = scmp.eq.s32.totalorder %s61, 1
      %p95 = por %p93, %p94
      %p96 = scmp.ne.s32.totalorder %s87, %s88
      %p97 = scmp.eq.s32.totalorder %s61, 0
      %p98 = por %p96, %p97
      %p99 = scmp.ne.s32.totalorder %s87, %s88
      %p100 = scmp.eq.s32.totalorder %s62, 1
      %p101 = por %p99, %p100
      %p103 = scmp.ne.s32.totalorder %s88, %s102
      %p104 = scmp.eq.s32.totalorder %s62, 0
      %p105 = por %p103, %p104
      %s107 = sadd.s32 %s106, 1
      %p110 = scmp.eq.s32.totalorder %s56, 1
      %p111 = scmp.ne.s32.totalorder %s106, %s108
      %p112 = scmp.eq.s32.totalorder %s56, 0
      %p113 = por %p111, %p112
      %p114 = scmp.ne.s32.totalorder %s106, %s108
      %p115 = scmp.eq.s32.totalorder %s61, 1
      %p116 = por %p114, %p115
      %p117 = scmp.ne.s32.totalorder %s108, %s109
      %p118 = scmp.eq.s32.totalorder %s61, 0
      %p119 = por %p117, %p118
      %p120 = scmp.ne.s32.totalorder %s108, %s109
      %p121 = scmp.eq.s32.totalorder %s62, 1
      %p122 = por %p120, %p121
      %p124 = scmp.ne.s32.totalorder %s109, %s123
      %p125 = scmp.eq.s32.totalorder %s62, 0
      %p126 = por %p124, %p125
      %s127 = ssub.s32 %s56, %s63
      %p128 = scmp.eq.s32.totalorder %s127, 0
      %s130 = sadd.s32 %s129, 1
      %s131 = scalar_select %p128, %s129, %s130
      %p134 = pneg %p128
      %p135 = scmp.eq.s32.totalorder %s56, 1
      %p136 = por %p134, %p135
      %p137 = scmp.ne.s32.totalorder %s129, %s132
      %p138 = scmp.eq.s32.totalorder %s56, 0
      %p139 = por %p137, %p138
      %p140 = scmp.ne.s32.totalorder %s129, %s132
      %p141 = scmp.eq.s32.totalorder %s61, 1
      %p142 = por %p140, %p141
      %p143 = scmp.ne.s32.totalorder %s132, %s133
      %p144 = scmp.eq.s32.totalorder %s61, 0
      %p145 = por %p143, %p144
      %p146 = scmp.ne.s32.totalorder %s132, %s133
      %p147 = scmp.eq.s32.totalorder %s62, 1
      %p148 = por %p146, %p147
      %p150 = scmp.ne.s32.totalorder %s133, %s149
      %p151 = scmp.eq.s32.totalorder %s62, 0
      %p152 = por %p150, %p151
      %s153 = ssub.s32 %s56, %s63
      %p154 = scmp.eq.s32.totalorder %s153, 0
      %s156 = sadd.s32 %s155, 1
      %s157 = scalar_select %p154, %s155, %s156
      %p160 = pneg %p154
      %p161 = scmp.eq.s32.totalorder %s56, 1
      %p162 = por %p160, %p161
      %p163 = scmp.ne.s32.totalorder %s155, %s158
      %p164 = scmp.eq.s32.totalorder %s56, 0
      %p165 = por %p163, %p164
      %p166 = scmp.ne.s32.totalorder %s155, %s158
      %p167 = scmp.eq.s32.totalorder %s61, 1
      %p168 = por %p166, %p167
      %p169 = scmp.ne.s32.totalorder %s158, %s159
      %p170 = scmp.eq.s32.totalorder %s61, 0
      %p171 = por %p169, %p170
      %p172 = scmp.ne.s32.totalorder %s158, %s159
      %p173 = scmp.eq.s32.totalorder %s62, 1
      %p174 = por %p172, %p173
      %p176 = scmp.ne.s32.totalorder %s159, %s175
      %p177 = scmp.eq.s32.totalorder %s62, 0
      %p178 = por %p176, %p177
      %s179 = ssub.s32 %s56, %s63
      %p180 = scmp.eq.s32.totalorder %s179, 0
      %s182 = sadd.s32 %s181, 1
      %s183 = scalar_select %p180, %s181, %s182
      %p186 = pneg %p180
      %p187 = scmp.eq.s32.totalorder %s56, 1
      %p188 = por %p186, %p187
      %p189 = scmp.ne.s32.totalorder %s181, %s184
      %p190 = scmp.eq.s32.totalorder %s56, 0
      %p191 = por %p189, %p190
      %p192 = scmp.ne.s32.totalorder %s181, %s184
      %p193 = scmp.eq.s32.totalorder %s61, 1
      %p194 = por %p192, %p193
      %p195 = scmp.ne.s32.totalorder %s184, %s185
      %p196 = scmp.eq.s32.totalorder %s61, 0
      %p197 = por %p195, %p196
      %p198 = scmp.ne.s32.totalorder %s184, %s185
      %p199 = scmp.eq.s32.totalorder %s62, 1
      %p200 = por %p198, %p199
      %p202 = scmp.ne.s32.totalorder %s185, %s201
      %p203 = scmp.eq.s32.totalorder %s62, 0
      %p204 = por %p202, %p203
      %s205 = ssub.s32 %s56, %s63
      %p206 = scmp.eq.s32.totalorder %s205, 0
      %s208 = sadd.s32 %s207, 1
      %s209 = scalar_select %p206, %s207, %s208
      %p212 = pneg %p206
      %p213 = scmp.eq.s32.totalorder %s56, 1
      %p214 = por %p212, %p213
      %p215 = scmp.ne.s32.totalorder %s207, %s210
      %p216 = scmp.eq.s32.totalorder %s56, 0
      %p217 = por %p215, %p216
      %p218 = scmp.ne.s32.totalorder %s207, %s210
      %p219 = scmp.eq.s32.totalorder %s61, 1
      %p220 = por %p218, %p219
      %p221 = scmp.ne.s32.totalorder %s210, %s211
      %p222 = scmp.eq.s32.totalorder %s61, 0
      %p223 = por %p221, %p222
      %p224 = scmp.ne.s32.totalorder %s210, %s211
      %p225 = scmp.eq.s32.totalorder %s62, 1
      %p226 = por %p224, %p225
      %p228 = scmp.ne.s32.totalorder %s211, %s227
      %p229 = scmp.eq.s32.totalorder %s62, 0
      %p230 = por %p228, %p229
      %s231 = ssub.s32 %s56, %s63
      %p232 = scmp.eq.s32.totalorder %s231, 0
      %s234 = sadd.s32 %s233, 1
      %s235 = scalar_select %p232, %s233, %s234
      %p238 = pneg %p232
      %p239 = scmp.eq.s32.totalorder %s56, 1
      %p240 = por %p238, %p239
      %p241 = scmp.ne.s32.totalorder %s233, %s236
      %p242 = scmp.eq.s32.totalorder %s56, 0
      %p243 = por %p241, %p242
      %p244 = scmp.ne.s32.totalorder %s233, %s236
      %p245 = scmp.eq.s32.totalorder %s61, 1
      %p246 = por %p244, %p245
      %p247 = scmp.ne.s32.totalorder %s236, %s237
      %p248 = scmp.eq.s32.totalorder %s61, 0
      %p249 = por %p247, %p248
      %p250 = scmp.ne.s32.totalorder %s236, %s237
      %p251 = scmp.eq.s32.totalorder %s62, 1
      %p252 = por %p250, %p251
      %p254 = scmp.ne.s32.totalorder %s237, %s253
      %p255 = scmp.eq.s32.totalorder %s62, 0
      %p256 = por %p254, %p255
      %s257 = ssub.s32 %s56, %s63
      %p258 = scmp.eq.s32.totalorder %s257, 0
      %s260 = sadd.s32 %s259, 1
      %s261 = scalar_select %p258, %s259, %s260
      %p264 = pneg %p258
      %p265 = scmp.eq.s32.totalorder %s56, 1
      %p266 = por %p264, %p265
      %p267 = scmp.ne.s32.totalorder %s259, %s262
      %p268 = scmp.eq.s32.totalorder %s56, 0
      %p269 = por %p267, %p268
      %p270 = scmp.ne.s32.totalorder %s259, %s262
      %p271 = scmp.eq.s32.totalorder %s61, 1
      %p272 = por %p270, %p271
      %p273 = scmp.ne.s32.totalorder %s262, %s263
      %p274 = scmp.eq.s32.totalorder %s61, 0
      %p275 = por %p273, %p274
      %p276 = scmp.ne.s32.totalorder %s262, %s263
      %p277 = scmp.eq.s32.totalorder %s62, 1
      %p278 = por %p276, %p277
      %p280 = scmp.ne.s32.totalorder %s263, %s279
      %p281 = scmp.eq.s32.totalorder %s62, 0
      %p282 = por %p280, %p281
      %s283 = ssub.s32 %s56, %s63
      %p284 = scmp.eq.s32.totalorder %s283, 0
      %s286 = sadd.s32 %s285, 1
      %s287 = scalar_select %p284, %s285, %s286
      %p290 = pneg %p284
      %p291 = scmp.eq.s32.totalorder %s56, 1
      %p292 = por %p290, %p291
      %p293 = scmp.ne.s32.totalorder %s285, %s288
      %p294 = scmp.eq.s32.totalorder %s56, 0
      %p295 = por %p293, %p294
      %p296 = scmp.ne.s32.totalorder %s285, %s288
      %p297 = scmp.eq.s32.totalorder %s61, 1
      %p298 = por %p296, %p297
      %p299 = scmp.ne.s32.totalorder %s288, %s289
      %p300 = scmp.eq.s32.totalorder %s61, 0
      %p301 = por %p299, %p300
      %p302 = scmp.ne.s32.totalorder %s288, %s289
      %p303 = scmp.eq.s32.totalorder %s62, 1
      %p304 = por %p302, %p303
      %p306 = scmp.ne.s32.totalorder %s289, %s305
      %p307 = scmp.eq.s32.totalorder %s62, 0
      %p308 = por %p306, %p307
      %s309 = ssub.s32 %s56, %s63
      %p310 = scmp.eq.s32.totalorder %s309, 0
      %s312 = sadd.s32 %s311, 1
      %s313 = scalar_select %p310, %s311, %s312
      %p316 = pneg %p310
      %p317 = scmp.eq.s32.totalorder %s56, 1
      %p318 = por %p316, %p317
      %p319 = scmp.ne.s32.totalorder %s311, %s314
      %p320 = scmp.eq.s32.totalorder %s56, 0
      %p321 = por %p319, %p320
      %p322 = scmp.ne.s32.totalorder %s311, %s314
      %p323 = scmp.eq.s32.totalorder %s61, 1
      %p324 = por %p322, %p323
      %p325 = scmp.ne.s32.totalorder %s314, %s315
      %p326 = scmp.eq.s32.totalorder %s61, 0
      %p327 = por %p325, %p326
      %p328 = scmp.ne.s32.totalorder %s314, %s315
      %p329 = scmp.eq.s32.totalorder %s62, 1
      %p330 = por %p328, %p329
      %p332 = scmp.ne.s32.totalorder %s315, %s331
      %p333 = scmp.eq.s32.totalorder %s62, 0
      %p334 = por %p332, %p333
      %s335 = ssub.s32 %s56, %s63
      %p336 = scmp.eq.s32.totalorder %s335, 0
      %s338 = sadd.s32 %s337, 1
      %s339 = scalar_select %p336, %s337, %s338
      %p342 = pneg %p336
      %p343 = scmp.eq.s32.totalorder %s56, 1
      %p344 = por %p342, %p343
      %p345 = scmp.ne.s32.totalorder %s337, %s340
      %p346 = scmp.eq.s32.totalorder %s56, 0
      %p347 = por %p345, %p346
      %p348 = scmp.ne.s32.totalorder %s337, %s340
      %p349 = scmp.eq.s32.totalorder %s61, 1
      %p350 = por %p348, %p349
      %p351 = scmp.ne.s32.totalorder %s340, %s341
      %p352 = scmp.eq.s32.totalorder %s61, 0
      %p353 = por %p351, %p352
      %p354 = scmp.ne.s32.totalorder %s340, %s341
      %p355 = scmp.eq.s32.totalorder %s62, 1
      %p356 = por %p354, %p355
      %p358 = scmp.ne.s32.totalorder %s341, %s357
      %p359 = scmp.eq.s32.totalorder %s62, 0
      %p360 = por %p358, %p359
      %s361 = ssub.s32 %s56, %s63
      %p362 = scmp.eq.s32.totalorder %s361, 0
      %s364 = sadd.s32 %s363, 1
      %s365 = scalar_select %p362, %s363, %s364
      %p368 = pneg %p362
      %p369 = scmp.eq.s32.totalorder %s56, 1
      %p370 = por %p368, %p369
      %p371 = scmp.ne.s32.totalorder %s363, %s366
      %p372 = scmp.eq.s32.totalorder %s56, 0
      %p373 = por %p371, %p372
      %p374 = scmp.ne.s32.totalorder %s363, %s366
      %p375 = scmp.eq.s32.totalorder %s61, 1
      %p376 = por %p374, %p375
      %p377 = scmp.ne.s32.totalorder %s366, %s367
      %p378 = scmp.eq.s32.totalorder %s61, 0
      %p379 = por %p377, %p378
      %p380 = scmp.ne.s32.totalorder %s366, %s367
      %p381 = scmp.eq.s32.totalorder %s62, 1
      %p382 = por %p380, %p381
      %p384 = scmp.ne.s32.totalorder %s367, %s383
      %p385 = scmp.eq.s32.totalorder %s62, 0
      %p386 = por %p384, %p385
      %s387 = ssub.s32 %s56, %s63
      %p388 = scmp.eq.s32.totalorder %s387, 0
      %s390 = sadd.s32 %s389, 1
      %s391 = scalar_select %p388, %s389, %s390
      %p394 = pneg %p388
      %p395 = scmp.eq.s32.totalorder %s56, 1
      %p396 = por %p394, %p395
      %p397 = scmp.ne.s32.totalorder %s389, %s392
      %p398 = scmp.eq.s32.totalorder %s56, 0
      %p399 = por %p397, %p398
      %p400 = scmp.ne.s32.totalorder %s389, %s392
      %p401 = scmp.eq.s32.totalorder %s61, 1
      %p402 = por %p400, %p401
      %p403 = scmp.ne.s32.totalorder %s392, %s393
      %p404 = scmp.eq.s32.totalorder %s61, 0
      %p405 = por %p403, %p404
      %p406 = scmp.ne.s32.totalorder %s392, %s393
      %p407 = scmp.eq.s32.totalorder %s62, 1
      %p408 = por %p406, %p407
      %p410 = scmp.ne.s32.totalorder %s393, %s409
      %p411 = scmp.eq.s32.totalorder %s62, 0
      %p412 = por %p410, %p411
      %s413 = ssub.s32 %s56, %s63
      %p414 = scmp.eq.s32.totalorder %s413, 0
      %s416 = sadd.s32 %s415, 1
      %s417 = scalar_select %p414, %s415, %s416
      %p420 = pneg %p414
      %p421 = scmp.eq.s32.totalorder %s56, 1
      %p422 = por %p420, %p421
      %p423 = scmp.ne.s32.totalorder %s415, %s418
      %p424 = scmp.eq.s32.totalorder %s56, 0
      %p425 = por %p423, %p424
      %p426 = scmp.ne.s32.totalorder %s415, %s418
      %p427 = scmp.eq.s32.totalorder %s61, 1
      %p428 = por %p426, %p427
      %p429 = scmp.ne.s32.totalorder %s418, %s419
      %p430 = scmp.eq.s32.totalorder %s61, 0
      %p431 = por %p429, %p430
      %p432 = scmp.ne.s32.totalorder %s418, %s419
      %p433 = scmp.eq.s32.totalorder %s62, 1
      %p434 = por %p432, %p433
      %p436 = scmp.ne.s32.totalorder %s419, %s435
      %p437 = scmp.eq.s32.totalorder %s62, 0
      %p438 = por %p436, %p437
      %s439 = ssub.s32 %s56, %s63
      %p440 = scmp.eq.s32.totalorder %s439, 0
      %s442 = sadd.s32 %s441, 1
      %s443 = scalar_select %p440, %s441, %s442
      %p446 = pneg %p440
      %p447 = scmp.eq.s32.totalorder %s56, 1
      %p448 = por %p446, %p447
      %p449 = scmp.ne.s32.totalorder %s441, %s444
      %p450 = scmp.eq.s32.totalorder %s56, 0
      %p451 = por %p449, %p450
      %p452 = scmp.ne.s32.totalorder %s441, %s444
      %p453 = scmp.eq.s32.totalorder %s61, 1
      %p454 = por %p452, %p453
      %p455 = scmp.ne.s32.totalorder %s444, %s445
      %p456 = scmp.eq.s32.totalorder %s61, 0
      %p457 = por %p455, %p456
      %p458 = scmp.ne.s32.totalorder %s444, %s445
      %p459 = scmp.eq.s32.totalorder %s62, 1
      %p460 = por %p458, %p459
      %p462 = scmp.ne.s32.totalorder %s445, %s461
      %p463 = scmp.eq.s32.totalorder %s62, 0
      %p464 = por %p462, %p463
      %s465 = ssub.s32 %s56, %s63
      %p466 = scmp.eq.s32.totalorder %s465, 0
      %s468 = sadd.s32 %s467, 1
      %s469 = scalar_select %p466, %s467, %s468
      %p472 = pneg %p466
      %p473 = scmp.eq.s32.totalorder %s56, 1
      %p474 = por %p472, %p473
      %p475 = scmp.ne.s32.totalorder %s467, %s470
      %p476 = scmp.eq.s32.totalorder %s56, 0
      %p477 = por %p475, %p476
      %p478 = scmp.ne.s32.totalorder %s467, %s470
      %p479 = scmp.eq.s32.totalorder %s61, 1
      %p480 = por %p478, %p479
      %p481 = scmp.ne.s32.totalorder %s470, %s471
      %p482 = scmp.eq.s32.totalorder %s61, 0
      %p483 = por %p481, %p482
      %p484 = scmp.ne.s32.totalorder %s470, %s471
      %p485 = scmp.eq.s32.totalorder %s62, 1
      %p486 = por %p484, %p485
      %p488 = scmp.ne.s32.totalorder %s471, %s487
      %p489 = scmp.eq.s32.totalorder %s62, 0
      %p490 = por %p488, %p489
      %s491 = ssub.s32 %s56, %s63
      %p492 = scmp.eq.s32.totalorder %s491, 0
      %s494 = sadd.s32 %s493, 1
      %s495 = scalar_select %p492, %s493, %s494
      %p498 = pneg %p492
      %p499 = scmp.eq.s32.totalorder %s56, 1
      %p500 = por %p498, %p499
      %p501 = scmp.ne.s32.totalorder %s493, %s496
      %p502 = scmp.eq.s32.totalorder %s56, 0
      %p503 = por %p501, %p502
      %p504 = scmp.ne.s32.totalorder %s493, %s496
      %p505 = scmp.eq.s32.totalorder %s61, 1
      %p506 = por %p504, %p505
      %p507 = scmp.ne.s32.totalorder %s496, %s497
      %p508 = scmp.eq.s32.totalorder %s61, 0
      %p509 = por %p507, %p508
      %p510 = scmp.ne.s32.totalorder %s496, %s497
      %p511 = scmp.eq.s32.totalorder %s62, 1
      %p512 = por %p510, %p511
      %p514 = scmp.ne.s32.totalorder %s497, %s513
      %p515 = scmp.eq.s32.totalorder %s62, 0
      %p516 = por %p514, %p515
      %s517 = ssub.s32 %s56, %s63
      %p518 = scmp.eq.s32.totalorder %s517, 0
      %s520 = sadd.s32 %s519, 1
      %s521 = scalar_select %p518, %s519, %s520
      %p524 = pneg %p518
      %p525 = scmp.eq.s32.totalorder %s56, 1
      %p526 = por %p524, %p525
      %p527 = scmp.ne.s32.totalorder %s519, %s522
      %p528 = scmp.eq.s32.totalorder %s56, 0
      %p529 = por %p527, %p528
      %p530 = scmp.ne.s32.totalorder %s519, %s522
      %p531 = scmp.eq.s32.totalorder %s61, 1
      %p532 = por %p530, %p531
      %p533 = scmp.ne.s32.totalorder %s522, %s523
      %p534 = scmp.eq.s32.totalorder %s61, 0
      %p535 = por %p533, %p534
      %p536 = scmp.ne.s32.totalorder %s522, %s523
      %p537 = scmp.eq.s32.totalorder %s62, 1
      %p538 = por %p536, %p537
      %p540 = scmp.ne.s32.totalorder %s523, %s539
      %p541 = scmp.eq.s32.totalorder %s62, 0
      %p542 = por %p540, %p541
      %s543 = ssub.s32 %s56, %s63
      %p544 = scmp.eq.s32.totalorder %s543, 0
      %s546 = sadd.s32 %s545, 1
      %s547 = scalar_select %p544, %s545, %s546
      %p550 = pneg %p544
      %p551 = scmp.eq.s32.totalorder %s56, 1
      %p552 = por %p550, %p551
      %p553 = scmp.ne.s32.totalorder %s545, %s548
      %p554 = scmp.eq.s32.totalorder %s56, 0
      %p555 = por %p553, %p554
      %p556 = scmp.ne.s32.totalorder %s545, %s548
      %p557 = scmp.eq.s32.totalorder %s61, 1
      %p558 = por %p556, %p557
      %p559 = scmp.ne.s32.totalorder %s548, %s549
      %p560 = scmp.eq.s32.totalorder %s61, 0
      %p561 = por %p559, %p560
      %p562 = scmp.ne.s32.totalorder %s548, %s549
      %p563 = scmp.eq.s32.totalorder %s62, 1
      %p564 = por %p562, %p563
      %p566 = scmp.ne.s32.totalorder %s549, %s565
      %p567 = scmp.eq.s32.totalorder %s62, 0
      %p568 = por %p566, %p567
      %s570 = sadd.s32 %s569, 1
      %p573 = scmp.eq.s32.totalorder %s56, 1
      %p574 = scmp.ne.s32.totalorder %s569, %s571
      %p575 = scmp.eq.s32.totalorder %s56, 0
      %p576 = por %p574, %p575
      %p577 = scmp.ne.s32.totalorder %s569, %s571
      %p578 = scmp.eq.s32.totalorder %s61, 1
      %p579 = por %p577, %p578
      %p580 = scmp.ne.s32.totalorder %s571, %s572
      %p581 = scmp.eq.s32.totalorder %s61, 0
      %p582 = por %p580, %p581
      %p583 = scmp.ne.s32.totalorder %s571, %s572
      %p584 = scmp.eq.s32.totalorder %s62, 1
      %p585 = por %p583, %p584
      %p587 = scmp.ne.s32.totalorder %s572, %s586
      %p588 = scmp.eq.s32.totalorder %s62, 0
      %p589 = por %p587, %p588
      %p590 = scmp.le.s32.totalorder 1, %s56
      %p591 = scmp.lt.s32.totalorder %s56, 3
      %p592 = pnand %p590, %p591
      %p593 = pneg %p592
      // Predicated region
      $region9: #{decoder_forward.1} parent=5 // pred_check
        _
      $region10: #{decoder_forward.1} parent=5 // pred_check_branch
        %595 = sbr.rel (%p592) target = $region12
      $region11: #{decoder_forward.1} parent=5 // pred_region
        %s596 = ssub.s32 %s56, 1
        // Predicated region
        $region13: #{decoder_forward.1} parent=11 // pred_check
          %p597 = pneg %p77
        $region14: #{decoder_forward.1} parent=11 // pred_check_branch
          %599 = sbr.rel (%p597) target = $region16
        $region15: #{decoder_forward.1} parent=11 // pred_region
          %s601 = ssub.s32 256, 256
          %602 = vsyncadd [#allocation4], %s601
          %s603 = sshll.u32 [#allocation3], 4
          %s604 = int_to_ptr.vmem [resolvable:$true] %s603
          %609 = dma.hbm_to_vmem [thread:$0]  %s0, 256, %s604, [#allocation4], 128, 128, 8
        $region16: #{decoder_forward.1} parent=11 // pred_fallthru
          _
        // Predicated region
        $region17: #{decoder_forward.1} parent=11 // pred_check
          %p610 = pneg %p98
        $region18: #{decoder_forward.1} parent=11 // pred_check_branch
          %612 = sbr.rel (%p610) target = $region20
        $region19: #{decoder_forward.1} parent=11 // pred_region
          %s614 = ssub.s32 256, 256
          %615 = vsyncadd [#allocation7], %s614
          %s616 = sshll.u32 [#allocation6], 4
          %s617 = int_to_ptr.vmem [resolvable:$true] %s616
          %622 = dma.hbm_to_vmem [thread:$0]  %s1, 256, %s617, [#allocation7], 128, 128, 8
        $region20: #{decoder_forward.1} parent=11 // pred_fallthru
          _
        // Predicated region
        $region21: #{decoder_forward.1} parent=11 // pred_check
          %p623 = pneg %p119
        $region22: #{decoder_forward.1} parent=11 // pred_check_branch
          %625 = sbr.rel (%p623) target = $region24
        $region23: #{decoder_forward.1} parent=11 // pred_region
          %s627 = ssub.s32 128, 128
          %628 = vsyncadd [#allocation7], %s627
          %s630 = sshll.u32 [#allocation8], 4
          %s631 = int_to_ptr.vmem [resolvable:$true] %s630
          %633 = dma.hbm_to_vmem [thread:$0]  %s2, 128, %s631, [#allocation7]
        $region24: #{decoder_forward.1} parent=11 // pred_fallthru
          _
      $region12: #{decoder_forward.1} parent=5 // pred_fallthru
        _
      %p634 = scmp.lt.s32.totalorder %s56, 2
      // Predicated region
      $region25: #{decoder_forward.1} parent=5 // pred_check
        %p635 = pneg %p634
      $region26: #{decoder_forward.1} parent=5 // pred_check_branch
        %637 = sbr.rel (%p635) target = $region28
      $region27: #{decoder_forward.1} parent=5 // pred_region
        // Predicated region
        $region29: #{decoder_forward.1} parent=27 // pred_check
          %p638 = pneg %p139
        $region30: #{decoder_forward.1} parent=27 // pred_check_branch
          %640 = sbr.rel (%p638) target = $region32
        $region31: #{decoder_forward.1} parent=27 // pred_region
          %s641 = sand.u32 %s56, 1
          %s642 = scalar_lea.sflag [#allocation10], %s641
          %s643 = sand.u32 %s129, 1
          %s644 = smul.addr %s643, 16
          %s645 = scalar_lea.vmem [#allocation9], %s644
          %s647 = ssub.s32 256, 256
          %648 = vsyncadd %s642, %s647
          %s649 = smul.addr %s56, 4
          %s650 = smul.addr %s649, 64
          %s651 = scalar_lea.hbm %s3, %s650
          %s652 = sshll.u32 %s645, 4
          %s653 = int_to_ptr.vmem [resolvable:$true] %s652
          %658 = dma.hbm_to_vmem [thread:$0]  %s651, 256, %s653, %s642, 64, 64, 4
        $region32: #{decoder_forward.1} parent=27 // pred_fallthru
          _
        // Predicated region
        $region33: #{decoder_forward.1} parent=27 // pred_check
          %p659 = pneg %p165
        $region34: #{decoder_forward.1} parent=27 // pred_check_branch
          %661 = sbr.rel (%p659) target = $region36
        $region35: #{decoder_forward.1} parent=27 // pred_region
          %s662 = sand.u32 %s56, 1
          %s663 = scalar_lea.sflag [#allocation10], %s662
          %s664 = sand.u32 %s155, 1
          %s665 = scalar_lea.vmem [#allocation11], %s664
          %s667 = ssub.s32 16, 16
          %668 = vsyncadd %s663, %s667
          %s669 = smul.addr %s56, 16
          %s670 = scalar_lea.hbm %s4, %s669
          %s672 = sshll.u32 %s665, 4
          %s673 = int_to_ptr.vmem [resolvable:$true] %s672
          %675 = dma.hbm_to_vmem [thread:$0]  %s670, 16, %s673, %s663
        $region36: #{decoder_forward.1} parent=27 // pred_fallthru
          _
        // Predicated region
        $region37: #{decoder_forward.1} parent=27 // pred_check
          %p676 = pneg %p191
        $region38: #{decoder_forward.1} parent=27 // pred_check_branch
          %678 = sbr.rel (%p676) target = $region40
        $region39: #{decoder_forward.1} parent=27 // pred_region
          %s679 = sand.u32 %s56, 1
          %s680 = scalar_lea.sflag [#allocation13], %s679
          %s681 = sand.u32 %s181, 1
          %s682 = smul.addr %s681, 16
          %s683 = scalar_lea.vmem [#allocation12], %s682
          %s685 = ssub.s32 256, 256
          %686 = vsyncadd %s680, %s685
          %s687 = smul.addr %s56, 4
          %s688 = smul.addr %s687, 64
          %s689 = scalar_lea.hbm %s5, %s688
          %s690 = sshll.u32 %s683, 4
          %s691 = int_to_ptr.vmem [resolvable:$true] %s690
          %696 = dma.hbm_to_vmem [thread:$0]  %s689, 256, %s691, %s680, 64, 64, 4
        $region40: #{decoder_forward.1} parent=27 // pred_fallthru
          _
        // Predicated region
        $region41: #{decoder_forward.1} parent=27 // pred_check
          %p697 = pneg %p217
        $region42: #{decoder_forward.1} parent=27 // pred_check_branch
          %699 = sbr.rel (%p697) target = $region44
        $region43: #{decoder_forward.1} parent=27 // pred_region
          %s700 = sand.u32 %s56, 1
          %s701 = scalar_lea.sflag [#allocation13], %s700
          %s702 = sand.u32 %s207, 1
          %s703 = scalar_lea.vmem [#allocation14], %s702
          %s705 = ssub.s32 16, 16
          %706 = vsyncadd %s701, %s705
          %s707 = smul.addr %s56, 16
          %s708 = scalar_lea.hbm %s6, %s707
          %s710 = sshll.u32 %s703, 4
          %s711 = int_to_ptr.vmem [resolvable:$true] %s710
          %713 = dma.hbm_to_vmem [thread:$0]  %s708, 16, %s711, %s701
        $region44: #{decoder_forward.1} parent=27 // pred_fallthru
          _
        // Predicated region
        $region45: #{decoder_forward.1} parent=27 // pred_check
          %p714 = pneg %p243
        $region46: #{decoder_forward.1} parent=27 // pred_check_branch
          %716 = sbr.rel (%p714) target = $region48
        $region47: #{decoder_forward.1} parent=27 // pred_region
          %s717 = sand.u32 %s56, 1
          %s718 = scalar_lea.sflag [#allocation16], %s717
          %s719 = sand.u32 %s233, 1
          %s720 = smul.addr %s719, 2
          %s721 = scalar_lea.vmem [#allocation15], %s720
          %s723 = ssub.s32 32, 32
          %724 = vsyncadd %s718, %s723
          %s725 = smul.addr %s56, 32
          %s726 = scalar_lea.hbm %s7, %s725
          %s728 = sshll.u32 %s721, 4
          %s729 = int_to_ptr.vmem [resolvable:$true] %s728
          %731 = dma.hbm_to_vmem [thread:$0]  %s726, 32, %s729, %s718
        $region48: #{decoder_forward.1} parent=27 // pred_fallthru
          _
        // Predicated region
        $region49: #{decoder_forward.1} parent=27 // pred_check
          %p732 = pneg %p269
        $region50: #{decoder_forward.1} parent=27 // pred_check_branch
          %734 = sbr.rel (%p732) target = $region52
        $region51: #{decoder_forward.1} parent=27 // pred_region
          %s735 = sand.u32 %s56, 1
          %s736 = scalar_lea.sflag [#allocation16], %s735
          %s737 = sand.u32 %s259, 1
          %s738 = smul.addr %s737, 16
          %s739 = scalar_lea.vmem [#allocation17], %s738
          %s741 = ssub.s32 256, 256
          %742 = vsyncadd %s736, %s741
          %s743 = smul.addr %s56, 4
          %s744 = smul.addr %s743, 64
          %s745 = scalar_lea.hbm %s8, %s744
          %s746 = sshll.u32 %s739, 4
          %s747 = int_to_ptr.vmem [resolvable:$true] %s746
          %752 = dma.hbm_to_vmem [thread:$0]  %s745, 256, %s747, %s736, 64, 64, 4
        $region52: #{decoder_forward.1} parent=27 // pred_fallthru
          _
        // Predicated region
        $region53: #{decoder_forward.1} parent=27 // pred_check
          %p753 = pneg %p295
        $region54: #{decoder_forward.1} parent=27 // pred_check_branch
          %755 = sbr.rel (%p753) target = $region56
        $region55: #{decoder_forward.1} parent=27 // pred_region
          %s756 = sand.u32 %s56, 1
          %s757 = scalar_lea.sflag [#allocation19], %s756
          %s758 = sand.u32 %s285, 1
          %s759 = scalar_lea.vmem [#allocation18], %s758
          %s761 = ssub.s32 16, 16
          %762 = vsyncadd %s757, %s761
          %s763 = smul.addr %s56, 16
          %s764 = scalar_lea.hbm %s9, %s763
          %s766 = sshll.u32 %s759, 4
          %s767 = int_to_ptr.vmem [resolvable:$true] %s766
          %769 = dma.hbm_to_vmem [thread:$0]  %s764, 16, %s767, %s757
        $region56: #{decoder_forward.1} parent=27 // pred_fallthru
          _
        // Predicated region
        $region57: #{decoder_forward.1} parent=27 // pred_check
          %p770 = pneg %p321
        $region58: #{decoder_forward.1} parent=27 // pred_check_branch
          %772 = sbr.rel (%p770) target = $region60
        $region59: #{decoder_forward.1} parent=27 // pred_region
          %s773 = sand.u32 %s56, 1
          %s774 = scalar_lea.sflag [#allocation19], %s773
          %s775 = sand.u32 %s311, 1
          %s776 = smul.addr %s775, 16
          %s777 = scalar_lea.vmem [#allocation20], %s776
          %s779 = ssub.s32 256, 256
          %780 = vsyncadd %s774, %s779
          %s781 = smul.addr %s56, 4
          %s782 = smul.addr %s781, 64
          %s783 = scalar_lea.hbm %s10, %s782
          %s784 = sshll.u32 %s777, 4
          %s785 = int_to_ptr.vmem [resolvable:$true] %s784
          %790 = dma.hbm_to_vmem [thread:$0]  %s783, 256, %s785, %s774, 64, 64, 4
        $region60: #{decoder_forward.1} parent=27 // pred_fallthru
          _
        // Predicated region
        $region61: #{decoder_forward.1} parent=27 // pred_check
          %p791 = pneg %p347
        $region62: #{decoder_forward.1} parent=27 // pred_check_branch
          %793 = sbr.rel (%p791) target = $region64
        $region63: #{decoder_forward.1} parent=27 // pred_region
          %s794 = sand.u32 %s56, 1
          %s795 = scalar_lea.sflag [#allocation22], %s794
          %s796 = sand.u32 %s337, 1
          %s797 = scalar_lea.vmem [#allocation21], %s796
          %s799 = ssub.s32 16, 16
          %800 = vsyncadd %s795, %s799
          %s801 = smul.addr %s56, 16
          %s802 = scalar_lea.hbm %s11, %s801
          %s804 = sshll.u32 %s797, 4
          %s805 = int_to_ptr.vmem [resolvable:$true] %s804
          %807 = dma.hbm_to_vmem [thread:$0]  %s802, 16, %s805, %s795
        $region64: #{decoder_forward.1} parent=27 // pred_fallthru
          _
        // Predicated region
        $region65: #{decoder_forward.1} parent=27 // pred_check
          %p808 = pneg %p373
        $region66: #{decoder_forward.1} parent=27 // pred_check_branch
          %810 = sbr.rel (%p808) target = $region68
        $region67: #{decoder_forward.1} parent=27 // pred_region
          %s811 = sand.u32 %s56, 1
          %s812 = scalar_lea.sflag [#allocation22], %s811
          %s813 = sand.u32 %s363, 1
          %s814 = smul.addr %s813, 16
          %s815 = scalar_lea.vmem [#allocation23], %s814
          %s817 = ssub.s32 256, 256
          %818 = vsyncadd %s812, %s817
          %s819 = smul.addr %s56, 4
          %s820 = smul.addr %s819, 64
          %s821 = scalar_lea.hbm %s12, %s820
          %s822 = sshll.u32 %s815, 4
          %s823 = int_to_ptr.vmem [resolvable:$true] %s822
          %828 = dma.hbm_to_vmem [thread:$0]  %s821, 256, %s823, %s812, 64, 64, 4
        $region68: #{decoder_forward.1} parent=27 // pred_fallthru
          _
        // Predicated region
        $region69: #{decoder_forward.1} parent=27 // pred_check
          %p829 = pneg %p399
        $region70: #{decoder_forward.1} parent=27 // pred_check_branch
          %831 = sbr.rel (%p829) target = $region72
        $region71: #{decoder_forward.1} parent=27 // pred_region
          %s832 = sand.u32 %s56, 1
          %s833 = scalar_lea.sflag [#allocation25], %s832
          %s834 = sand.u32 %s389, 1
          %s835 = scalar_lea.vmem [#allocation24], %s834
          %s837 = ssub.s32 16, 16
          %838 = vsyncadd %s833, %s837
          %s839 = smul.addr %s56, 16
          %s840 = scalar_lea.hbm %s13, %s839
          %s842 = sshll.u32 %s835, 4
          %s843 = int_to_ptr.vmem [resolvable:$true] %s842
          %845 = dma.hbm_to_vmem [thread:$0]  %s840, 16, %s843, %s833
        $region72: #{decoder_forward.1} parent=27 // pred_fallthru
          _
        // Predicated region
        $region73: #{decoder_forward.1} parent=27 // pred_check
          %p846 = pneg %p425
        $region74: #{decoder_forward.1} parent=27 // pred_check_branch
          %848 = sbr.rel (%p846) target = $region76
        $region75: #{decoder_forward.1} parent=27 // pred_region
          %s849 = sand.u32 %s56, 1
          %s850 = scalar_lea.sflag [#allocation25], %s849
          %s851 = sand.u32 %s415, 1
          %s852 = smul.addr %s851, 2
          %s853 = scalar_lea.vmem [#allocation26], %s852
          %s855 = ssub.s32 32, 32
          %856 = vsyncadd %s850, %s855
          %s857 = smul.addr %s56, 32
          %s858 = scalar_lea.hbm %s14, %s857
          %s860 = sshll.u32 %s853, 4
          %s861 = int_to_ptr.vmem [resolvable:$true] %s860
          %863 = dma.hbm_to_vmem [thread:$0]  %s858, 32, %s861, %s850
        $region76: #{decoder_forward.1} parent=27 // pred_fallthru
          _
        // Predicated region
        $region77: #{decoder_forward.1} parent=27 // pred_check
          %p864 = pneg %p451
        $region78: #{decoder_forward.1} parent=27 // pred_check_branch
          %866 = sbr.rel (%p864) target = $region80
        $region79: #{decoder_forward.1} parent=27 // pred_region
          %s867 = sand.u32 %s56, 1
          %s868 = scalar_lea.sflag [#allocation28], %s867
          %s869 = sand.u32 %s441, 1
          %s870 = smul.addr %s869, 16
          %s871 = scalar_lea.vmem [#allocation27], %s870
          %s873 = ssub.s32 256, 256
          %874 = vsyncadd %s868, %s873
          %s875 = smul.addr %s56, 4
          %s876 = smul.addr %s875, 64
          %s877 = scalar_lea.hbm %s15, %s876
          %s878 = sshll.u32 %s871, 4
          %s879 = int_to_ptr.vmem [resolvable:$true] %s878
          %884 = dma.hbm_to_vmem [thread:$0]  %s877, 256, %s879, %s868, 64, 64, 4
        $region80: #{decoder_forward.1} parent=27 // pred_fallthru
          _
        // Predicated region
        $region81: #{decoder_forward.1} parent=27 // pred_check
          %p885 = pneg %p477
        $region82: #{decoder_forward.1} parent=27 // pred_check_branch
          %887 = sbr.rel (%p885) target = $region84
        $region83: #{decoder_forward.1} parent=27 // pred_region
          %s888 = sand.u32 %s56, 1
          %s889 = scalar_lea.sflag [#allocation28], %s888
          %s890 = sand.u32 %s467, 1
          %s891 = scalar_lea.vmem [#allocation29], %s890
          %s893 = ssub.s32 16, 16
          %894 = vsyncadd %s889, %s893
          %s895 = smul.addr %s56, 16
          %s896 = scalar_lea.hbm %s16, %s895
          %s898 = sshll.u32 %s891, 4
          %s899 = int_to_ptr.vmem [resolvable:$true] %s898
          %901 = dma.hbm_to_vmem [thread:$0]  %s896, 16, %s899, %s889
        $region84: #{decoder_forward.1} parent=27 // pred_fallthru
          _
        // Predicated region
        $region85: #{decoder_forward.1} parent=27 // pred_check
          %p902 = pneg %p503
        $region86: #{decoder_forward.1} parent=27 // pred_check_branch
          %904 = sbr.rel (%p902) target = $region88
        $region87: #{decoder_forward.1} parent=27 // pred_region
          %s905 = sand.u32 %s56, 1
          %s906 = scalar_lea.sflag [#allocation31], %s905
          %s907 = sand.u32 %s493, 1
          %s908 = smul.addr %s907, 64
          %s909 = scalar_lea.vmem [#allocation30], %s908
          %s911 = ssub.s32 1024, 1024
          %912 = vsyncadd %s906, %s911
          %s913 = smul.addr %s56, 16
          %s914 = smul.addr %s913, 64
          %s915 = scalar_lea.hbm %s17, %s914
          %s916 = sshll.u32 %s909, 4
          %s917 = int_to_ptr.vmem [resolvable:$true] %s916
          %922 = dma.hbm_to_vmem [thread:$0]  %s915, 1024, %s917, %s906, 64, 64, 4
        $region88: #{decoder_forward.1} parent=27 // pred_fallthru
          _
        // Predicated region
        $region89: #{decoder_forward.1} parent=27 // pred_check
          %p923 = pneg %p529
        $region90: #{decoder_forward.1} parent=27 // pred_check_branch
          %925 = sbr.rel (%p923) target = $region92
        $region91: #{decoder_forward.1} parent=27 // pred_region
          %s926 = sand.u32 %s56, 1
          %s927 = scalar_lea.sflag [#allocation31], %s926
          %s928 = sand.u32 %s519, 1
          %s929 = scalar_lea.vmem [#allocation32], %s928
          %s931 = ssub.s32 16, 16
          %932 = vsyncadd %s927, %s931
          %s933 = smul.addr %s56, 16
          %s934 = scalar_lea.hbm %s18, %s933
          %s936 = sshll.u32 %s929, 4
          %s937 = int_to_ptr.vmem [resolvable:$true] %s936
          %939 = dma.hbm_to_vmem [thread:$0]  %s934, 16, %s937, %s927
        $region92: #{decoder_forward.1} parent=27 // pred_fallthru
          _
        // Predicated region
        $region93: #{decoder_forward.1} parent=27 // pred_check
          %p940 = pneg %p555
        $region94: #{decoder_forward.1} parent=27 // pred_check_branch
          %942 = sbr.rel (%p940) target = $region96
        $region95: #{decoder_forward.1} parent=27 // pred_region
          %s943 = sand.u32 %s545, 1
          %s944 = scalar_lea.sflag [#allocation34], %s943
          %s945 = sand.u32 %s545, 1
          %s946 = smul.addr %s945, 2
          %s947 = scalar_lea.vmem [#allocation33], %s946
          %s949 = ssub.s32 32, 32
          %950 = vsyncadd %s944, %s949
          %s951 = smul.addr %s56, 32
          %s952 = scalar_lea.hbm %s19, %s951
          %s954 = sshll.u32 %s947, 4
          %s955 = int_to_ptr.vmem [resolvable:$true] %s954
          %957 = dma.hbm_to_vmem [thread:$0]  %s952, 32, %s955, %s944
        $region96: #{decoder_forward.1} parent=27 // pred_fallthru
          _
      $region28: #{decoder_forward.1} parent=5 // pred_fallthru
        _
      %p958 = scmp.le.s32.totalorder 1, %s56
      %p959 = scmp.lt.s32.totalorder %s56, 3
      %p960 = pnand %p958, %p959
      %p961 = pneg %p960
      // Predicated region
      $region97: #{decoder_forward.1} parent=5 // pred_check
        _
      $region98: #{decoder_forward.1} parent=5 // pred_check_branch
        %963 = sbr.rel (%p960) target = $region100
      $region99: #{decoder_forward.1} parent=5 // pred_region
        %s964 = ssub.s32 %s56, 1
        // Predicated region
        $region101: #{decoder_forward.1} parent=99 // pred_check
          %p965 = pneg %p77
        $region102: #{decoder_forward.1} parent=99 // pred_check_branch
          %967 = sbr.rel (%p965) target = $region104
        $region103: #{decoder_forward.1} parent=99 // pred_region
          %968 = dma.done [#allocation4], 256
        $region104: #{decoder_forward.1} parent=99 // pred_fallthru
          _
        // Predicated region
        $region105: #{decoder_forward.1} parent=99 // pred_check
          %p969 = pneg %p98
        $region106: #{decoder_forward.1} parent=99 // pred_check_branch
          %971 = sbr.rel (%p969) target = $region108
        $region107: #{decoder_forward.1} parent=99 // pred_region
          %972 = dma.done [#allocation7], 256
        $region108: #{decoder_forward.1} parent=99 // pred_fallthru
          _
        // Predicated region
        $region109: #{decoder_forward.1} parent=99 // pred_check
          %p973 = pneg %p119
        $region110: #{decoder_forward.1} parent=99 // pred_check_branch
          %975 = sbr.rel (%p973) target = $region112
        $region111: #{decoder_forward.1} parent=99 // pred_region
          %976 = dma.done [#allocation7], 128
        $region112: #{decoder_forward.1} parent=99 // pred_fallthru
          _
        %s977 = sand.u32 %s61, 1
        %s978 = scalar_lea.sflag [#allocation10], %s977
        %s979 = sand.u32 %s132, 1
        %s980 = smul.addr %s979, 16
        %s981 = scalar_lea.vmem [#allocation9], %s980
        // Predicated region
        $region113: #{decoder_forward.1} parent=99 // pred_check
          %p982 = pneg %p145
        $region114: #{decoder_forward.1} parent=99 // pred_check_branch
          %984 = sbr.rel (%p982) target = $region116
        $region115: #{decoder_forward.1} parent=99 // pred_region
          %985 = dma.done %s978, 256
        $region116: #{decoder_forward.1} parent=99 // pred_fallthru
          _
        %s986 = sand.u32 %s61, 1
        %s987 = scalar_lea.sflag [#allocation10], %s986
        %s988 = sand.u32 %s158, 1
        %s989 = scalar_lea.vmem [#allocation11], %s988
        // Predicated region
        $region117: #{decoder_forward.1} parent=99 // pred_check
          %p990 = pneg %p171
        $region118: #{decoder_forward.1} parent=99 // pred_check_branch
          %992 = sbr.rel (%p990) target = $region120
        $region119: #{decoder_forward.1} parent=99 // pred_region
          %993 = dma.done %s987, 16
        $region120: #{decoder_forward.1} parent=99 // pred_fallthru
          _
        %s994 = sand.u32 %s61, 1
        %s995 = scalar_lea.sflag [#allocation13], %s994
        %s996 = sand.u32 %s184, 1
        %s997 = smul.addr %s996, 16
        %s998 = scalar_lea.vmem [#allocation12], %s997
        // Predicated region
        $region121: #{decoder_forward.1} parent=99 // pred_check
          %p999 = pneg %p197
        $region122: #{decoder_forward.1} parent=99 // pred_check_branch
          %1001 = sbr.rel (%p999) target = $region124
        $region123: #{decoder_forward.1} parent=99 // pred_region
          %1002 = dma.done %s995, 256
        $region124: #{decoder_forward.1} parent=99 // pred_fallthru
          _
        %s1003 = sand.u32 %s61, 1
        %s1004 = scalar_lea.sflag [#allocation13], %s1003
        %s1005 = sand.u32 %s210, 1
        %s1006 = scalar_lea.vmem [#allocation14], %s1005
        // Predicated region
        $region125: #{decoder_forward.1} parent=99 // pred_check
          %p1007 = pneg %p223
        $region126: #{decoder_forward.1} parent=99 // pred_check_branch
          %1009 = sbr.rel (%p1007) target = $region128
        $region127: #{decoder_forward.1} parent=99 // pred_region
          %1010 = dma.done %s1004, 16
        $region128: #{decoder_forward.1} parent=99 // pred_fallthru
          _
        %s1011 = sand.u32 %s61, 1
        %s1012 = scalar_lea.sflag [#allocation16], %s1011
        %s1013 = sand.u32 %s236, 1
        %s1014 = smul.addr %s1013, 2
        %s1015 = scalar_lea.vmem [#allocation15], %s1014
        // Predicated region
        $region129: #{decoder_forward.1} parent=99 // pred_check
          %p1016 = pneg %p249
        $region130: #{decoder_forward.1} parent=99 // pred_check_branch
          %1018 = sbr.rel (%p1016) target = $region132
        $region131: #{decoder_forward.1} parent=99 // pred_region
          %1019 = dma.done %s1012, 32
        $region132: #{decoder_forward.1} parent=99 // pred_fallthru
          _
        %s1020 = sand.u32 %s61, 1
        %s1021 = scalar_lea.sflag [#allocation16], %s1020
        %s1022 = sand.u32 %s262, 1
        %s1023 = smul.addr %s1022, 16
        %s1024 = scalar_lea.vmem [#allocation17], %s1023
        // Predicated region
        $region133: #{decoder_forward.1} parent=99 // pred_check
          %p1025 = pneg %p275
        $region134: #{decoder_forward.1} parent=99 // pred_check_branch
          %1027 = sbr.rel (%p1025) target = $region136
        $region135: #{decoder_forward.1} parent=99 // pred_region
          %1028 = dma.done %s1021, 256
        $region136: #{decoder_forward.1} parent=99 // pred_fallthru
          _
        %s1029 = sand.u32 %s61, 1
        %s1030 = scalar_lea.sflag [#allocation19], %s1029
        %s1031 = sand.u32 %s288, 1
        %s1032 = scalar_lea.vmem [#allocation18], %s1031
        // Predicated region
        $region137: #{decoder_forward.1} parent=99 // pred_check
          %p1033 = pneg %p301
        $region138: #{decoder_forward.1} parent=99 // pred_check_branch
          %1035 = sbr.rel (%p1033) target = $region140
        $region139: #{decoder_forward.1} parent=99 // pred_region
          %1036 = dma.done %s1030, 16
        $region140: #{decoder_forward.1} parent=99 // pred_fallthru
          _
        %s1037 = sand.u32 %s61, 1
        %s1038 = scalar_lea.sflag [#allocation19], %s1037
        %s1039 = sand.u32 %s314, 1
        %s1040 = smul.addr %s1039, 16
        %s1041 = scalar_lea.vmem [#allocation20], %s1040
        // Predicated region
        $region141: #{decoder_forward.1} parent=99 // pred_check
          %p1042 = pneg %p327
        $region142: #{decoder_forward.1} parent=99 // pred_check_branch
          %1044 = sbr.rel (%p1042) target = $region144
        $region143: #{decoder_forward.1} parent=99 // pred_region
          %1045 = dma.done %s1038, 256
        $region144: #{decoder_forward.1} parent=99 // pred_fallthru
          _
        %s1046 = sand.u32 %s61, 1
        %s1047 = scalar_lea.sflag [#allocation22], %s1046
        %s1048 = sand.u32 %s340, 1
        %s1049 = scalar_lea.vmem [#allocation21], %s1048
        // Predicated region
        $region145: #{decoder_forward.1} parent=99 // pred_check
          %p1050 = pneg %p353
        $region146: #{decoder_forward.1} parent=99 // pred_check_branch
          %1052 = sbr.rel (%p1050) target = $region148
        $region147: #{decoder_forward.1} parent=99 // pred_region
          %1053 = dma.done %s1047, 16
        $region148: #{decoder_forward.1} parent=99 // pred_fallthru
          _
        %s1054 = sand.u32 %s61, 1
        %s1055 = scalar_lea.sflag [#allocation22], %s1054
        %s1056 = sand.u32 %s366, 1
        %s1057 = smul.addr %s1056, 16
        %s1058 = scalar_lea.vmem [#allocation23], %s1057
        // Predicated region
        $region149: #{decoder_forward.1} parent=99 // pred_check
          %p1059 = pneg %p379
        $region150: #{decoder_forward.1} parent=99 // pred_check_branch
          %1061 = sbr.rel (%p1059) target = $region152
        $region151: #{decoder_forward.1} parent=99 // pred_region
          %1062 = dma.done %s1055, 256
        $region152: #{decoder_forward.1} parent=99 // pred_fallthru
          _
        %s1063 = sand.u32 %s61, 1
        %s1064 = scalar_lea.sflag [#allocation25], %s1063
        %s1065 = sand.u32 %s392, 1
        %s1066 = scalar_lea.vmem [#allocation24], %s1065
        // Predicated region
        $region153: #{decoder_forward.1} parent=99 // pred_check
          %p1067 = pneg %p405
        $region154: #{decoder_forward.1} parent=99 // pred_check_branch
          %1069 = sbr.rel (%p1067) target = $region156
        $region155: #{decoder_forward.1} parent=99 // pred_region
          %1070 = dma.done %s1064, 16
        $region156: #{decoder_forward.1} parent=99 // pred_fallthru
          _
        %s1071 = sand.u32 %s61, 1
        %s1072 = scalar_lea.sflag [#allocation25], %s1071
        %s1073 = sand.u32 %s418, 1
        %s1074 = smul.addr %s1073, 2
        %s1075 = scalar_lea.vmem [#allocation26], %s1074
        // Predicated region
        $region157: #{decoder_forward.1} parent=99 // pred_check
          %p1076 = pneg %p431
        $region158: #{decoder_forward.1} parent=99 // pred_check_branch
          %1078 = sbr.rel (%p1076) target = $region160
        $region159: #{decoder_forward.1} parent=99 // pred_region
          %1079 = dma.done %s1072, 32
        $region160: #{decoder_forward.1} parent=99 // pred_fallthru
          _
        %s1080 = sand.u32 %s61, 1
        %s1081 = scalar_lea.sflag [#allocation28], %s1080
        %s1082 = sand.u32 %s444, 1
        %s1083 = smul.addr %s1082, 16
        %s1084 = scalar_lea.vmem [#allocation27], %s1083
        // Predicated region
        $region161: #{decoder_forward.1} parent=99 // pred_check
          %p1085 = pneg %p457
        $region162: #{decoder_forward.1} parent=99 // pred_check_branch
          %1087 = sbr.rel (%p1085) target = $region164
        $region163: #{decoder_forward.1} parent=99 // pred_region
          %1088 = dma.done %s1081, 256
        $region164: #{decoder_forward.1} parent=99 // pred_fallthru
          _
        %s1089 = sand.u32 %s61, 1
        %s1090 = scalar_lea.sflag [#allocation28], %s1089
        %s1091 = sand.u32 %s470, 1
        %s1092 = scalar_lea.vmem [#allocation29], %s1091
        // Predicated region
        $region165: #{decoder_forward.1} parent=99 // pred_check
          %p1093 = pneg %p483
        $region166: #{decoder_forward.1} parent=99 // pred_check_branch
          %1095 = sbr.rel (%p1093) target = $region168
        $region167: #{decoder_forward.1} parent=99 // pred_region
          %1096 = dma.done %s1090, 16
        $region168: #{decoder_forward.1} parent=99 // pred_fallthru
          _
        %s1097 = sand.u32 %s61, 1
        %s1098 = scalar_lea.sflag [#allocation31], %s1097
        %s1099 = sand.u32 %s496, 1
        %s1100 = smul.addr %s1099, 64
        %s1101 = scalar_lea.vmem [#allocation30], %s1100
        // Predicated region
        $region169: #{decoder_forward.1} parent=99 // pred_check
          %p1102 = pneg %p509
        $region170: #{decoder_forward.1} parent=99 // pred_check_branch
          %1104 = sbr.rel (%p1102) target = $region172
        $region171: #{decoder_forward.1} parent=99 // pred_region
          %1105 = dma.done %s1098, 1024
        $region172: #{decoder_forward.1} parent=99 // pred_fallthru
          _
        %s1106 = sand.u32 %s61, 1
        %s1107 = scalar_lea.sflag [#allocation31], %s1106
        %s1108 = sand.u32 %s522, 1
        %s1109 = scalar_lea.vmem [#allocation32], %s1108
        // Predicated region
        $region173: #{decoder_forward.1} parent=99 // pred_check
          %p1110 = pneg %p535
        $region174: #{decoder_forward.1} parent=99 // pred_check_branch
          %1112 = sbr.rel (%p1110) target = $region176
        $region175: #{decoder_forward.1} parent=99 // pred_region
          %1113 = dma.done %s1107, 16
        $region176: #{decoder_forward.1} parent=99 // pred_fallthru
          _
        %s1114 = sand.u32 %s548, 1
        %s1115 = scalar_lea.sflag [#allocation34], %s1114
        %s1116 = sand.u32 %s548, 1
        %s1117 = smul.addr %s1116, 2
        %s1118 = scalar_lea.vmem [#allocation33], %s1117
        // Predicated region
        $region177: #{decoder_forward.1} parent=99 // pred_check
          %p1119 = pneg %p561
        $region178: #{decoder_forward.1} parent=99 // pred_check_branch
          %1121 = sbr.rel (%p1119) target = $region180
        $region179: #{decoder_forward.1} parent=99 // pred_region
          %1122 = dma.done %s1115, 32
        $region180: #{decoder_forward.1} parent=99 // pred_fallthru
          _
        %p1123 = pneg %p77
        %p1124 = pneg %p74
        %p1125 = pneg %p98
        %p1126 = pneg %p95
        %p1127 = pneg %p119
        %p1128 = pneg %p116
        %s1129 = sand.u32 %s61, 1
        %s1130 = scalar_lea.sflag [#allocation10], %s1129
        %s1131 = sand.u32 %s132, 1
        %s1132 = smul.addr %s1131, 16
        %s1133 = scalar_lea.vmem [#allocation9], %s1132
        %p1134 = pneg %p145
        %p1135 = pneg %p142
        %s1136 = sand.u32 %s61, 1
        %s1137 = scalar_lea.sflag [#allocation10], %s1136
        %s1138 = sand.u32 %s158, 1
        %s1139 = scalar_lea.vmem [#allocation11], %s1138
        %p1140 = pneg %p171
        %p1141 = pneg %p168
        %s1142 = sand.u32 %s61, 1
        %s1143 = scalar_lea.sflag [#allocation13], %s1142
        %s1144 = sand.u32 %s184, 1
        %s1145 = smul.addr %s1144, 16
        %s1146 = scalar_lea.vmem [#allocation12], %s1145
        %p1147 = pneg %p197
        %p1148 = pneg %p194
        %s1149 = sand.u32 %s61, 1
        %s1150 = scalar_lea.sflag [#allocation13], %s1149
        %s1151 = sand.u32 %s210, 1
        %s1152 = scalar_lea.vmem [#allocation14], %s1151
        %p1153 = pneg %p223
        %p1154 = pneg %p220
        %s1155 = sand.u32 %s61, 1
        %s1156 = scalar_lea.sflag [#allocation16], %s1155
        %s1157 = sand.u32 %s236, 1
        %s1158 = smul.addr %s1157, 2
        %s1159 = scalar_lea.vmem [#allocation15], %s1158
        %p1160 = pneg %p249
        %p1161 = pneg %p246
        %s1162 = sand.u32 %s61, 1
        %s1163 = scalar_lea.sflag [#allocation16], %s1162
        %s1164 = sand.u32 %s262, 1
        %s1165 = smul.addr %s1164, 16
        %s1166 = scalar_lea.vmem [#allocation17], %s1165
        %p1167 = pneg %p275
        %p1168 = pneg %p272
        %s1169 = sand.u32 %s61, 1
        %s1170 = scalar_lea.sflag [#allocation19], %s1169
        %s1171 = sand.u32 %s288, 1
        %s1172 = scalar_lea.vmem [#allocation18], %s1171
        %p1173 = pneg %p301
        %p1174 = pneg %p298
        %s1175 = sand.u32 %s61, 1
        %s1176 = scalar_lea.sflag [#allocation19], %s1175
        %s1177 = sand.u32 %s314, 1
        %s1178 = smul.addr %s1177, 16
        %s1179 = scalar_lea.vmem [#allocation20], %s1178
        %p1180 = pneg %p327
        %p1181 = pneg %p324
        %s1182 = sand.u32 %s61, 1
        %s1183 = scalar_lea.sflag [#allocation22], %s1182
        %s1184 = sand.u32 %s340, 1
        %s1185 = scalar_lea.vmem [#allocation21], %s1184
        %p1186 = pneg %p353
        %p1187 = pneg %p350
        %s1188 = sand.u32 %s61, 1
        %s1189 = scalar_lea.sflag [#allocation22], %s1188
        %s1190 = sand.u32 %s366, 1
        %s1191 = smul.addr %s1190, 16
        %s1192 = scalar_lea.vmem [#allocation23], %s1191
        %p1193 = pneg %p379
        %p1194 = pneg %p376
        %s1195 = sand.u32 %s61, 1
        %s1196 = scalar_lea.sflag [#allocation25], %s1195
        %s1197 = sand.u32 %s392, 1
        %s1198 = scalar_lea.vmem [#allocation24], %s1197
        %p1199 = pneg %p405
        %p1200 = pneg %p402
        %s1201 = sand.u32 %s61, 1
        %s1202 = scalar_lea.sflag [#allocation25], %s1201
        %s1203 = sand.u32 %s418, 1
        %s1204 = smul.addr %s1203, 2
        %s1205 = scalar_lea.vmem [#allocation26], %s1204
        %p1206 = pneg %p431
        %p1207 = pneg %p428
        %s1208 = sand.u32 %s61, 1
        %s1209 = scalar_lea.sflag [#allocation28], %s1208
        %s1210 = sand.u32 %s444, 1
        %s1211 = smul.addr %s1210, 16
        %s1212 = scalar_lea.vmem [#allocation27], %s1211
        %p1213 = pneg %p457
        %p1214 = pneg %p454
        %s1215 = sand.u32 %s61, 1
        %s1216 = scalar_lea.sflag [#allocation28], %s1215
        %s1217 = sand.u32 %s470, 1
        %s1218 = scalar_lea.vmem [#allocation29], %s1217
        %p1219 = pneg %p483
        %p1220 = pneg %p480
        %s1221 = sand.u32 %s61, 1
        %s1222 = scalar_lea.sflag [#allocation31], %s1221
        %s1223 = sand.u32 %s496, 1
        %s1224 = smul.addr %s1223, 64
        %s1225 = scalar_lea.vmem [#allocation30], %s1224
        %p1226 = pneg %p509
        %p1227 = pneg %p506
        %s1228 = sand.u32 %s61, 1
        %s1229 = scalar_lea.sflag [#allocation31], %s1228
        %s1230 = sand.u32 %s522, 1
        %s1231 = scalar_lea.vmem [#allocation32], %s1230
        %p1232 = pneg %p535
        %p1233 = pneg %p532
        %s1234 = sand.u32 %s548, 1
        %s1235 = scalar_lea.sflag [#allocation34], %s1234
        %s1236 = sand.u32 %s548, 1
        %s1237 = smul.addr %s1236, 2
        %s1238 = scalar_lea.vmem [#allocation33], %s1237
        %p1239 = pneg %p561
        %p1240 = pneg %p558
        %p1241 = pneg %p582
        %p1242 = pneg %p579
        %p1244 = scmp.eq.s32.totalorder %s61, 0
        // Predicated region
        $region181: #{decoder_forward.1} parent=99 // pred_check
          %p1245 = pneg %p1244
        $region182: #{decoder_forward.1} parent=99 // pred_check_branch
          %1247 = sbr.rel (%p1245) target = $region184
        $region183: #{decoder_forward.1} parent=99 // pred_region
          %v1248 = vld [vmem:[#allocation3] sm:$0xff]
          %v1249 = vld [vmem:[#allocation3 + $0x8] sm:$0xff]
          %vm1250 = vcmask 261120
          %1251 = vst.msk [vmem:[#allocation2] sm:$0xff] %vm1250, %v1248
          %1252 = vst.msk [vmem:[#allocation2 + $0x8] sm:$0xff] %vm1250, %v1249
        $region184: #{decoder_forward.1} parent=99 // pred_fallthru
          _
        %v1253 = vld [vmem:[#allocation2] sm:$0xff]
        %v1254 = vld [vmem:[#allocation2 + $0x8] sm:$0xff]
        %v1255 = vld [vmem:[#allocation6] sm:$0xff]
        %v1256 = vld [vmem:[#allocation6 + $0x8] sm:$0xff]
        %v1257 = vld [vmem:[#allocation8] sm:$0xff]
        %v1258 = vld [vmem:[%s1015] sm:$0x3]
        %v1259 = vld [vmem:[%s1075] sm:$0x3]
        %v1260 = vld [vmem:[%s1118] sm:$0x3]
        %v1261 = vpack.c.bf16 %v1254, %v1253
        %v1262 = vld [vmem:[%s981] sm:$0xf]
        %v1263 = vld [vmem:[%s981 + $0x4] sm:$0xf]
        %v1264 = vld [vmem:[%s981 + $0x8] sm:$0xf]
        %v1265 = vld [vmem:[%s981 + $0xc] sm:$0xf]
        %v1266 = vld [vmem:[%s989] sm:$0x1]
        %v1268 = vlaneseq
        %v1269 = vshrl.u32 %v1268, 7
        %v1270 = vsub.s32 0, %v1269
        %v1271 = vrot.slane %v1266, %v1270
        %v1277 = vunpack.c.l.b16 %v1262
        %v1278 = vunpack.c.l.b16 %v1263
        %v1279 = vunpack.c.l.b16 %v1264
        %v1280 = vunpack.c.l.b16 %v1265
        %v1281 = vpack.c.b16 %v1278, %v1277
        %v1282 = vpack.c.b16 %v1280, %v1279
        %vm1285 = vcmask 261120
        %v1287 = vsel %vm1285, %v1261, 0
        %1289 = vmatprep.subr.bf16.mxu0 0
        %1290 = vmatpush1.bf16.msra.mxu0 %v1281
        %1291 = vmatprep.subr.bf16.mxu0 0
        %1292 = vmatpush1.bf16.msra.mxu0 %v1282
        %1293 = vmatprep.subr.bf16.mxu0 0
        %1294 = vmatpush1.bf16.msra.mxu0 0
        %1295 = vmatprep.subr.bf16.mxu0 0
        %1296 = vmatpush1.bf16.msra.mxu0 0
        %1297 = vmatprep.subr.bf16.mxu0 0
        %1298 = vmatpush1.bf16.msra.mxu0 0
        %1299 = vmatprep.subr.bf16.mxu0 0
        %1300 = vmatpush1.bf16.msra.mxu0 0
        %1301 = vmatprep.subr.bf16.mxu0 0
        %1302 = vmatpush1.bf16.msra.mxu0 0
        %1303 = vmatprep.subr.bf16.mxu0 0
        %1304 = vmatpush1.bf16.msra.mxu0 0
        %1305 = vmatprep.subr.bf16.mxu0 0
        %1306 = vmatpush1.bf16.msra.mxu0 0
        %1307 = vmatprep.subr.bf16.mxu0 0
        %1308 = vmatpush1.bf16.msra.mxu0 0
        %1309 = vmatprep.subr.bf16.mxu0 0
        %1310 = vmatpush1.bf16.msra.mxu0 0
        %1311 = vmatprep.subr.bf16.mxu0 0
        %1312 = vmatpush1.bf16.msra.mxu0 0
        %1313 = vmatprep.subr.bf16.mxu0 0
        %1314 = vmatpush1.bf16.msra.mxu0 0
        %1315 = vmatprep.subr.bf16.mxu0 0
        %1316 = vmatpush1.bf16.msra.mxu0 0
        %1317 = vmatprep.subr.bf16.mxu0 0
        %1318 = vmatpush1.bf16.msra.mxu0 0
        %1319 = vmatprep.subr.bf16.mxu0 0
        %1320 = vmatpush1.bf16.msra.mxu0 0
        %1321 = vmatprep.mubr.bf16.mxu0 0
        %1322 = vmatmul.mubr.bf16.gmra.mrb[0].mxu0 %v1287
        %v1323 = vpop.f32.mrb[0].mxu0
        %v1324 = vadd.f32 %v1271, %v1323
        %v1325 = vpop.f32.mrb[0].mxu0
        %v1326 = vpop.f32.mrb[0].mxu0
        %v1327 = vadd.f32 %v1271, %v1326
        %v1328 = vpop.f32.mrb[0].mxu0
        %1329 = vdwg.mxu0
        %v1330 = vld [vmem:[%s998] sm:$0xf]
        %v1331 = vld [vmem:[%s998 + $0x4] sm:$0xf]
        %v1332 = vld [vmem:[%s998 + $0x8] sm:$0xf]
        %v1333 = vld [vmem:[%s998 + $0xc] sm:$0xf]
        %v1334 = vld [vmem:[%s1006] sm:$0x1]
        %v1335 = vpack.c.bf16 %v1327, %v1324
        %v1337 = vunpack.c.l.b16 %v1335
        %v1338 = vunpack.c.h.b16 %v1335
        %v1339 = vpack.c.b16 %v1337, %v1337
        %v1340 = vpack.c.b16 %v1338, %v1338
        %1341 = vrot.lane.b32.xlu0 %v1339, 96
        %v1342 = vpop.permute.xlu0 %1341
        %vm1343 = vcmask 64512
        %v1345 = vsel %vm1343, %v1339, 0
        %v1348 = vsel %vm1343, %v1342, 0
        %1350 = vmatprep.subr.bf16.mxu0 0
        %1351 = vmatpush1.bf16.xpose.msra.mxu0 %v1348
        %1352 = vmatprep.subr.bf16.mxu0 0
        %1353 = vmatpush1.bf16.xpose.msra.mxu0 0
        %1354 = vmatprep.subr.bf16.mxu0 0
        %1355 = vmatpush1.bf16.xpose.msra.mxu0 0
        %1356 = vmatprep.subr.bf16.mxu0 0
        %1357 = vmatpush1.bf16.xpose.msra.mxu0 0
        %1358 = vmatprep.subr.bf16.mxu0 0
        %1359 = vmatpush1.bf16.xpose.msra.mxu0 0
        %1360 = vmatprep.subr.bf16.mxu0 0
        %1361 = vmatpush1.bf16.xpose.msra.mxu0 0
        %1362 = vmatprep.subr.bf16.mxu0 0
        %1363 = vmatpush1.bf16.xpose.msra.mxu0 0
        %1364 = vmatprep.subr.bf16.mxu0 0
        %1365 = vmatpush1.bf16.xpose.msra.mxu0 0
        %1366 = vmatprep.subr.bf16.mxu0 0
        %1367 = vmatpush1.bf16.xpose.msra.mxu0 0
        %1368 = vmatprep.subr.bf16.mxu0 0
        %1369 = vmatpush1.bf16.xpose.msra.mxu0 0
        %1370 = vmatprep.subr.bf16.mxu0 0
        %1371 = vmatpush1.bf16.xpose.msra.mxu0 0
        %1372 = vmatprep.subr.bf16.mxu0 0
        %1373 = vmatpush1.bf16.xpose.msra.mxu0 0
        %1374 = vmatprep.subr.bf16.mxu0 0
        %1375 = vmatpush1.bf16.xpose.msra.mxu0 0
        %1376 = vmatprep.subr.bf16.mxu0 0
        %1377 = vmatpush1.bf16.xpose.msra.mxu0 0
        %1378 = vmatprep.subr.bf16.mxu0 0
        %1379 = vmatpush1.bf16.xpose.msra.mxu0 0
        %1380 = vmatprep.subr.bf16.mxu0 0
        %1381 = vmatpush1.bf16.xpose.msra.mxu0 0
        %1382 = vmatprep.mubr.bf16.mxu0 0
        %1383 = vmatmul.mubr.bf16.gmra.mrb[0].mxu0 %v1345
        %v1384 = vpop.f32.mrb[0].mxu0
        %v1385 = vadd.f32 %v1257, %v1384
        %v1386 = vpop.f32.mrb[0].mxu0
        %v1387 = vpop.f32.mrb[0].mxu0
        %v1388 = vpop.f32.mrb[0].mxu0
        %1389 = vdwg.mxu0
        %1390 = vrot.lane.b32.xlu0 %v1340, 96
        %v1391 = vpop.permute.xlu0 %1390
        %v1393 = vsel %vm1343, %v1340, 0
        %v1396 = vsel %vm1343, %v1391, 0
        %1398 = vmatprep.subr.bf16.mxu0 0
        %1399 = vmatpush1.bf16.xpose.msra.mxu0 %v1396
        %1400 = vmatprep.subr.bf16.mxu0 0
        %1401 = vmatpush1.bf16.xpose.msra.mxu0 0
        %1402 = vmatprep.subr.bf16.mxu0 0
        %1403 = vmatpush1.bf16.xpose.msra.mxu0 0
        %1404 = vmatprep.subr.bf16.mxu0 0
        %1405 = vmatpush1.bf16.xpose.msra.mxu0 0
        %1406 = vmatprep.subr.bf16.mxu0 0
        %1407 = vmatpush1.bf16.xpose.msra.mxu0 0
        %1408 = vmatprep.subr.bf16.mxu0 0
        %1409 = vmatpush1.bf16.xpose.msra.mxu0 0
        %1410 = vmatprep.subr.bf16.mxu0 0
        %1411 = vmatpush1.bf16.xpose.msra.mxu0 0
        %1412 = vmatprep.subr.bf16.mxu0 0
        %1413 = vmatpush1.bf16.xpose.msra.mxu0 0
        %1414 = vmatprep.subr.bf16.mxu0 0
        %1415 = vmatpush1.bf16.xpose.msra.mxu0 0
        %1416 = vmatprep.subr.bf16.mxu0 0
        %1417 = vmatpush1.bf16.xpose.msra.mxu0 0
        %1418 = vmatprep.subr.bf16.mxu0 0
        %1419 = vmatpush1.bf16.xpose.msra.mxu0 0
        %1420 = vmatprep.subr.bf16.mxu0 0
        %1421 = vmatpush1.bf16.xpose.msra.mxu0 0
        %1422 = vmatprep.subr.bf16.mxu0 0
        %1423 = vmatpush1.bf16.xpose.msra.mxu0 0
        %1424 = vmatprep.subr.bf16.mxu0 0
        %1425 = vmatpush1.bf16.xpose.msra.mxu0 0
        %1426 = vmatprep.subr.bf16.mxu0 0
        %1427 = vmatpush1.bf16.xpose.msra.mxu0 0
        %1428 = vmatprep.subr.bf16.mxu0 0
        %1429 = vmatpush1.bf16.xpose.msra.mxu0 0
        %1430 = vmatprep.mubr.bf16.mxu0 0
        %1431 = vmatmul.mubr.bf16.gmra.mrb[0].mxu0 %v1393
        %v1432 = vpop.f32.mrb[0].mxu0
        %v1433 = vadd.f32 %v1257, %v1432
        %v1434 = vpop.f32.mrb[0].mxu0
        %v1435 = vpop.f32.mrb[0].mxu0
        %v1436 = vpop.f32.mrb[0].mxu0
        %1437 = vdwg.mxu0
        %v1438 = vsel %vm1343, %v1385, -inf
        %1439 = vmax.xlane.f32.xlu0 %v1438
        %v1440 = vpop.xlane.xlu0 %1439
        %v1441 = vsel %vm1343, %v1433, -inf
        %1442 = vmax.xlane.f32.xlu0 %v1441
        %v1443 = vpop.xlane.xlu0 %1442
        %v1444 = vsub.f32 %v1385, %v1440
        %v1445 = vsub.f32 %v1433, %v1443
        %v1446 = vmul.f32 %v1444, 1.442695
        %v1447 = vpow.pop %v1446
        %v1448 = vmul.f32 %v1445, 1.442695
        %v1449 = vpow.pop %v1448
        %v1450 = vsel %vm1343, %v1447, 0.0
        %1451 = vadd.xlane.f32.xlu0 %v1450
        %v1452 = vpop.xlane.xlu0 %1451
        %v1453 = vsel %vm1343, %v1449, 0.0
        %1454 = vadd.xlane.f32.xlu0 %v1453
        %v1455 = vpop.xlane.xlu0 %1454
        %v1456 = vrcp.pop %v1452
        %v1457 = vrcp.pop %v1455
        %v1458 = vmul.f32 %v1447, %v1456
        %v1459 = vmul.f32 %v1449, %v1457
        %v1460 = vpack.c.bf16 %v1458, %v1458
        %v1461 = vpack.c.bf16 %v1459, %v1459
        %1462 = vrot.lane.b32.xlu0 %v1339, 64
        %v1463 = vpop.permute.xlu0 %1462
        %v1465 = vsel %vm1343, %v1460, 0
        %vm1467 = vcmask 1043456
        %v1469 = vsel %vm1467, %v1463, 0
        %1471 = vmatprep.subr.bf16.mxu0 0
        %1472 = vmatpush1.bf16.msra.mxu0 %v1469
        %1473 = vmatprep.subr.bf16.mxu0 0
        %1474 = vmatpush1.bf16.msra.mxu0 0
        %1475 = vmatprep.subr.bf16.mxu0 0
        %1476 = vmatpush1.bf16.msra.mxu0 0
        %1477 = vmatprep.subr.bf16.mxu0 0
        %1478 = vmatpush1.bf16.msra.mxu0 0
        %1479 = vmatprep.subr.bf16.mxu0 0
        %1480 = vmatpush1.bf16.msra.mxu0 0
        %1481 = vmatprep.subr.bf16.mxu0 0
        %1482 = vmatpush1.bf16.msra.mxu0 0
        %1483 = vmatprep.subr.bf16.mxu0 0
        %1484 = vmatpush1.bf16.msra.mxu0 0
        %1485 = vmatprep.subr.bf16.mxu0 0
        %1486 = vmatpush1.bf16.msra.mxu0 0
        %1487 = vmatprep.subr.bf16.mxu0 0
        %1488 = vmatpush1.bf16.msra.mxu0 0
        %1489 = vmatprep.subr.bf16.mxu0 0
        %1490 = vmatpush1.bf16.msra.mxu0 0
        %1491 = vmatprep.subr.bf16.mxu0 0
        %1492 = vmatpush1.bf16.msra.mxu0 0
        %1493 = vmatprep.subr.bf16.mxu0 0
        %1494 = vmatpush1.bf16.msra.mxu0 0
        %1495 = vmatprep.subr.bf16.mxu0 0
        %1496 = vmatpush1.bf16.msra.mxu0 0
        %1497 = vmatprep.subr.bf16.mxu0 0
        %1498 = vmatpush1.bf16.msra.mxu0 0
        %1499 = vmatprep.subr.bf16.mxu0 0
        %1500 = vmatpush1.bf16.msra.mxu0 0
        %1501 = vmatprep.subr.bf16.mxu0 0
        %1502 = vmatpush1.bf16.msra.mxu0 0
        %1503 = vmatprep.mubr.bf16.mxu0 0
        %1504 = vmatmul.mubr.bf16.gmra.mrb[0].mxu0 %v1465
        %v1505 = vpop.f32.mrb[0].mxu0
        %v1506 = vadd.f32 0.0, %v1505
        %v1507 = vpop.f32.mrb[0].mxu0
        %v1508 = vpop.f32.mrb[0].mxu0
        %v1509 = vpop.f32.mrb[0].mxu0
        %1510 = vdwg.mxu0
        %1511 = vrot.lane.b32.xlu0 %v1340, 64
        %v1512 = vpop.permute.xlu0 %1511
        %v1514 = vsel %vm1343, %v1461, 0
        %v1517 = vsel %vm1467, %v1512, 0
        %1519 = vmatprep.subr.bf16.mxu0 0
        %1520 = vmatpush1.bf16.msra.mxu0 %v1517
        %1521 = vmatprep.subr.bf16.mxu0 0
        %1522 = vmatpush1.bf16.msra.mxu0 0
        %1523 = vmatprep.subr.bf16.mxu0 0
        %1524 = vmatpush1.bf16.msra.mxu0 0
        %1525 = vmatprep.subr.bf16.mxu0 0
        %1526 = vmatpush1.bf16.msra.mxu0 0
        %1527 = vmatprep.subr.bf16.mxu0 0
        %1528 = vmatpush1.bf16.msra.mxu0 0
        %1529 = vmatprep.subr.bf16.mxu0 0
        %1530 = vmatpush1.bf16.msra.mxu0 0
        %1531 = vmatprep.subr.bf16.mxu0 0
        %1532 = vmatpush1.bf16.msra.mxu0 0
        %1533 = vmatprep.subr.bf16.mxu0 0
        %1534 = vmatpush1.bf16.msra.mxu0 0
        %1535 = vmatprep.subr.bf16.mxu0 0
        %1536 = vmatpush1.bf16.msra.mxu0 0
        %1537 = vmatprep.subr.bf16.mxu0 0
        %1538 = vmatpush1.bf16.msra.mxu0 0
        %1539 = vmatprep.subr.bf16.mxu0 0
        %1540 = vmatpush1.bf16.msra.mxu0 0
        %1541 = vmatprep.subr.bf16.mxu0 0
        %1542 = vmatpush1.bf16.msra.mxu0 0
        %1543 = vmatprep.subr.bf16.mxu0 0
        %1544 = vmatpush1.bf16.msra.mxu0 0
        %1545 = vmatprep.subr.bf16.mxu0 0
        %1546 = vmatpush1.bf16.msra.mxu0 0
        %1547 = vmatprep.subr.bf16.mxu0 0
        %1548 = vmatpush1.bf16.msra.mxu0 0
        %1549 = vmatprep.subr.bf16.mxu0 0
        %1550 = vmatpush1.bf16.msra.mxu0 0
        %1551 = vmatprep.mubr.bf16.mxu0 0
        %1552 = vmatmul.mubr.bf16.gmra.mrb[0].mxu0 %v1514
        %v1553 = vpop.f32.mrb[0].mxu0
        %v1554 = vadd.f32 0.0, %v1553
        %v1555 = vpop.f32.mrb[0].mxu0
        %v1556 = vpop.f32.mrb[0].mxu0
        %v1557 = vpop.f32.mrb[0].mxu0
        %1558 = vdwg.mxu0
        %v1559 = vpack.c.bf16 %v1554, %v1506
        %1560 = vrot.lane.b32.xlu0 %v1339, 120
        %v1561 = vpop.permute.xlu0 %1560
        %1562 = vrot.lane.b32.xlu0 %v1339, 88
        %v1563 = vpop.permute.xlu0 %1562
        %v1565 = vsel %vm1343, %v1561, 0
        %v1568 = vsel %vm1343, %v1563, 0
        %1570 = vmatprep.subr.bf16.mxu0 0
        %1571 = vmatpush1.bf16.xpose.msra.mxu0 %v1568
        %1572 = vmatprep.subr.bf16.mxu0 0
        %1573 = vmatpush1.bf16.xpose.msra.mxu0 0
        %1574 = vmatprep.subr.bf16.mxu0 0
        %1575 = vmatpush1.bf16.xpose.msra.mxu0 0
        %1576 = vmatprep.subr.bf16.mxu0 0
        %1577 = vmatpush1.bf16.xpose.msra.mxu0 0
        %1578 = vmatprep.subr.bf16.mxu0 0
        %1579 = vmatpush1.bf16.xpose.msra.mxu0 0
        %1580 = vmatprep.subr.bf16.mxu0 0
        %1581 = vmatpush1.bf16.xpose.msra.mxu0 0
        %1582 = vmatprep.subr.bf16.mxu0 0
        %1583 = vmatpush1.bf16.xpose.msra.mxu0 0
        %1584 = vmatprep.subr.bf16.mxu0 0
        %1585 = vmatpush1.bf16.xpose.msra.mxu0 0
        %1586 = vmatprep.subr.bf16.mxu0 0
        %1587 = vmatpush1.bf16.xpose.msra.mxu0 0
        %1588 = vmatprep.subr.bf16.mxu0 0
        %1589 = vmatpush1.bf16.xpose.msra.mxu0 0
        %1590 = vmatprep.subr.bf16.mxu0 0
        %1591 = vmatpush1.bf16.xpose.msra.mxu0 0
        %1592 = vmatprep.subr.bf16.mxu0 0
        %1593 = vmatpush1.bf16.xpose.msra.mxu0 0
        %1594 = vmatprep.subr.bf16.mxu0 0
        %1595 = vmatpush1.bf16.xpose.msra.mxu0 0
        %1596 = vmatprep.subr.bf16.mxu0 0
        %1597 = vmatpush1.bf16.xpose.msra.mxu0 0
        %1598 = vmatprep.subr.bf16.mxu0 0
        %1599 = vmatpush1.bf16.xpose.msra.mxu0 0
        %1600 = vmatprep.subr.bf16.mxu0 0
        %1601 = vmatpush1.bf16.xpose.msra.mxu0 0
        %1602 = vmatprep.mubr.bf16.mxu0 0
        %1603 = vmatmul.mubr.bf16.gmra.mrb[0].mxu0 %v1565
        %v1604 = vpop.f32.mrb[0].mxu0
        %v1605 = vadd.f32 %v1257, %v1604
        %v1606 = vpop.f32.mrb[0].mxu0
        %v1607 = vpop.f32.mrb[0].mxu0
        %v1608 = vpop.f32.mrb[0].mxu0
        %1609 = vdwg.mxu0
        %1610 = vrot.lane.b32.xlu0 %v1340, 120
        %v1611 = vpop.permute.xlu0 %1610
        %1612 = vrot.lane.b32.xlu0 %v1340, 88
        %v1613 = vpop.permute.xlu0 %1612
        %v1615 = vsel %vm1343, %v1611, 0
        %v1618 = vsel %vm1343, %v1613, 0
        %1620 = vmatprep.subr.bf16.mxu0 0
        %1621 = vmatpush1.bf16.xpose.msra.mxu0 %v1618
        %1622 = vmatprep.subr.bf16.mxu0 0
        %1623 = vmatpush1.bf16.xpose.msra.mxu0 0
        %1624 = vmatprep.subr.bf16.mxu0 0
        %1625 = vmatpush1.bf16.xpose.msra.mxu0 0
        %1626 = vmatprep.subr.bf16.mxu0 0
        %1627 = vmatpush1.bf16.xpose.msra.mxu0 0
        %1628 = vmatprep.subr.bf16.mxu0 0
        %1629 = vmatpush1.bf16.xpose.msra.mxu0 0
        %1630 = vmatprep.subr.bf16.mxu0 0
        %1631 = vmatpush1.bf16.xpose.msra.mxu0 0
        %1632 = vmatprep.subr.bf16.mxu0 0
        %1633 = vmatpush1.bf16.xpose.msra.mxu0 0
        %1634 = vmatprep.subr.bf16.mxu0 0
        %1635 = vmatpush1.bf16.xpose.msra.mxu0 0
        %1636 = vmatprep.subr.bf16.mxu0 0
        %1637 = vmatpush1.bf16.xpose.msra.mxu0 0
        %1638 = vmatprep.subr.bf16.mxu0 0
        %1639 = vmatpush1.bf16.xpose.msra.mxu0 0
        %1640 = vmatprep.subr.bf16.mxu0 0
        %1641 = vmatpush1.bf16.xpose.msra.mxu0 0
        %1642 = vmatprep.subr.bf16.mxu0 0
        %1643 = vmatpush1.bf16.xpose.msra.mxu0 0
        %1644 = vmatprep.subr.bf16.mxu0 0
        %1645 = vmatpush1.bf16.xpose.msra.mxu0 0
        %1646 = vmatprep.subr.bf16.mxu0 0
        %1647 = vmatpush1.bf16.xpose.msra.mxu0 0
        %1648 = vmatprep.subr.bf16.mxu0 0
        %1649 = vmatpush1.bf16.xpose.msra.mxu0 0
        %1650 = vmatprep.subr.bf16.mxu0 0
        %1651 = vmatpush1.bf16.xpose.msra.mxu0 0
        %1652 = vmatprep.mubr.bf16.mxu0 0
        %1653 = vmatmul.mubr.bf16.gmra.mrb[0].mxu0 %v1615
        %v1654 = vpop.f32.mrb[0].mxu0
        %v1655 = vadd.f32 %v1257, %v1654
        %v1656 = vpop.f32.mrb[0].mxu0
        %v1657 = vpop.f32.mrb[0].mxu0
        %v1658 = vpop.f32.mrb[0].mxu0
        %1659 = vdwg.mxu0
        %v1660 = vsel %vm1343, %v1605, -inf
        %1661 = vmax.xlane.f32.xlu0 %v1660
        %v1662 = vpop.xlane.xlu0 %1661
        %v1663 = vsel %vm1343, %v1655, -inf
        %1664 = vmax.xlane.f32.xlu0 %v1663
        %v1665 = vpop.xlane.xlu0 %1664
        %v1666 = vsub.f32 %v1605, %v1662
        %v1667 = vsub.f32 %v1655, %v1665
        %v1668 = vmul.f32 %v1666, 1.442695
        %v1669 = vpow.pop %v1668
        %v1670 = vmul.f32 %v1667, 1.442695
        %v1671 = vpow.pop %v1670
        %v1672 = vsel %vm1343, %v1669, 0.0
        %1673 = vadd.xlane.f32.xlu0 %v1672
        %v1674 = vpop.xlane.xlu0 %1673
        %v1675 = vsel %vm1343, %v1671, 0.0
        %1676 = vadd.xlane.f32.xlu0 %v1675
        %v1677 = vpop.xlane.xlu0 %1676
        %v1678 = vrcp.pop %v1674
        %v1679 = vrcp.pop %v1677
        %v1680 = vmul.f32 %v1669, %v1678
        %v1681 = vmul.f32 %v1671, %v1679
        %v1682 = vpack.c.bf16 %v1680, %v1680
        %v1683 = vpack.c.bf16 %v1681, %v1681
        %1684 = vrot.lane.b32.xlu0 %v1339, 56
        %v1685 = vpop.permute.xlu0 %1684
        %v1687 = vsel %vm1343, %v1682, 0
        %v1690 = vsel %vm1467, %v1685, 0
        %1692 = vmatprep.subr.bf16.mxu0 0
        %1693 = vmatpush1.bf16.msra.mxu0 %v1690
        %1694 = vmatprep.subr.bf16.mxu0 0
        %1695 = vmatpush1.bf16.msra.mxu0 0
        %1696 = vmatprep.subr.bf16.mxu0 0
        %1697 = vmatpush1.bf16.msra.mxu0 0
        %1698 = vmatprep.subr.bf16.mxu0 0
        %1699 = vmatpush1.bf16.msra.mxu0 0
        %1700 = vmatprep.subr.bf16.mxu0 0
        %1701 = vmatpush1.bf16.msra.mxu0 0
        %1702 = vmatprep.subr.bf16.mxu0 0
        %1703 = vmatpush1.bf16.msra.mxu0 0
        %1704 = vmatprep.subr.bf16.mxu0 0
        %1705 = vmatpush1.bf16.msra.mxu0 0
        %1706 = vmatprep.subr.bf16.mxu0 0
        %1707 = vmatpush1.bf16.msra.mxu0 0
        %1708 = vmatprep.subr.bf16.mxu0 0
        %1709 = vmatpush1.bf16.msra.mxu0 0
        %1710 = vmatprep.subr.bf16.mxu0 0
        %1711 = vmatpush1.bf16.msra.mxu0 0
        %1712 = vmatprep.subr.bf16.mxu0 0
        %1713 = vmatpush1.bf16.msra.mxu0 0
        %1714 = vmatprep.subr.bf16.mxu0 0
        %1715 = vmatpush1.bf16.msra.mxu0 0
        %1716 = vmatprep.subr.bf16.mxu0 0
        %1717 = vmatpush1.bf16.msra.mxu0 0
        %1718 = vmatprep.subr.bf16.mxu0 0
        %1719 = vmatpush1.bf16.msra.mxu0 0
        %1720 = vmatprep.subr.bf16.mxu0 0
        %1721 = vmatpush1.bf16.msra.mxu0 0
        %1722 = vmatprep.subr.bf16.mxu0 0
        %1723 = vmatpush1.bf16.msra.mxu0 0
        %1724 = vmatprep.mubr.bf16.mxu0 0
        %1725 = vmatmul.mubr.bf16.gmra.mrb[0].mxu0 %v1687
        %v1726 = vpop.f32.mrb[0].mxu0
        %v1727 = vadd.f32 0.0, %v1726
        %v1728 = vpop.f32.mrb[0].mxu0
        %v1729 = vpop.f32.mrb[0].mxu0
        %v1730 = vpop.f32.mrb[0].mxu0
        %1731 = vdwg.mxu0
        %1732 = vrot.lane.b32.xlu0 %v1340, 56
        %v1733 = vpop.permute.xlu0 %1732
        %v1735 = vsel %vm1343, %v1683, 0
        %v1738 = vsel %vm1467, %v1733, 0
        %1740 = vmatprep.subr.bf16.mxu0 0
        %1741 = vmatpush1.bf16.msra.mxu0 %v1738
        %1742 = vmatprep.subr.bf16.mxu0 0
        %1743 = vmatpush1.bf16.msra.mxu0 0
        %1744 = vmatprep.subr.bf16.mxu0 0
        %1745 = vmatpush1.bf16.msra.mxu0 0
        %1746 = vmatprep.subr.bf16.mxu0 0
        %1747 = vmatpush1.bf16.msra.mxu0 0
        %1748 = vmatprep.subr.bf16.mxu0 0
        %1749 = vmatpush1.bf16.msra.mxu0 0
        %1750 = vmatprep.subr.bf16.mxu0 0
        %1751 = vmatpush1.bf16.msra.mxu0 0
        %1752 = vmatprep.subr.bf16.mxu0 0
        %1753 = vmatpush1.bf16.msra.mxu0 0
        %1754 = vmatprep.subr.bf16.mxu0 0
        %1755 = vmatpush1.bf16.msra.mxu0 0
        %1756 = vmatprep.subr.bf16.mxu0 0
        %1757 = vmatpush1.bf16.msra.mxu0 0
        %1758 = vmatprep.subr.bf16.mxu0 0
        %1759 = vmatpush1.bf16.msra.mxu0 0
        %1760 = vmatprep.subr.bf16.mxu0 0
        %1761 = vmatpush1.bf16.msra.mxu0 0
        %1762 = vmatprep.subr.bf16.mxu0 0
        %1763 = vmatpush1.bf16.msra.mxu0 0
        %1764 = vmatprep.subr.bf16.mxu0 0
        %1765 = vmatpush1.bf16.msra.mxu0 0
        %1766 = vmatprep.subr.bf16.mxu0 0
        %1767 = vmatpush1.bf16.msra.mxu0 0
        %1768 = vmatprep.subr.bf16.mxu0 0
        %1769 = vmatpush1.bf16.msra.mxu0 0
        %1770 = vmatprep.subr.bf16.mxu0 0
        %1771 = vmatpush1.bf16.msra.mxu0 0
        %1772 = vmatprep.mubr.bf16.mxu0 0
        %1773 = vmatmul.mubr.bf16.gmra.mrb[0].mxu0 %v1735
        %v1774 = vpop.f32.mrb[0].mxu0
        %v1775 = vadd.f32 0.0, %v1774
        %v1776 = vpop.f32.mrb[0].mxu0
        %v1777 = vpop.f32.mrb[0].mxu0
        %v1778 = vpop.f32.mrb[0].mxu0
        %1779 = vdwg.mxu0
        %v1780 = vpack.c.bf16 %v1775, %v1727
        %v1782 = vsel %vm1343, %v1780, 0
        %v1785 = vsel %vm1467, %v1331, 0
        %1787 = vmatprep.subr.bf16.mxu0 0
        %1788 = vmatpush1.bf16.msra.mxu0 %v1785
        %1789 = vmatprep.subr.bf16.mxu0 0
        %1790 = vmatpush1.bf16.msra.mxu0 0
        %1791 = vmatprep.subr.bf16.mxu0 0
        %1792 = vmatpush1.bf16.msra.mxu0 0
        %1793 = vmatprep.subr.bf16.mxu0 0
        %1794 = vmatpush1.bf16.msra.mxu0 0
        %1795 = vmatprep.subr.bf16.mxu0 0
        %1796 = vmatpush1.bf16.msra.mxu0 0
        %1797 = vmatprep.subr.bf16.mxu0 0
        %1798 = vmatpush1.bf16.msra.mxu0 0
        %1799 = vmatprep.subr.bf16.mxu0 0
        %1800 = vmatpush1.bf16.msra.mxu0 0
        %1801 = vmatprep.subr.bf16.mxu0 0
        %1802 = vmatpush1.bf16.msra.mxu0 0
        %1803 = vmatprep.subr.bf16.mxu0 0
        %1804 = vmatpush1.bf16.msra.mxu0 0
        %1805 = vmatprep.subr.bf16.mxu0 0
        %1806 = vmatpush1.bf16.msra.mxu0 0
        %1807 = vmatprep.subr.bf16.mxu0 0
        %1808 = vmatpush1.bf16.msra.mxu0 0
        %1809 = vmatprep.subr.bf16.mxu0 0
        %1810 = vmatpush1.bf16.msra.mxu0 0
        %1811 = vmatprep.subr.bf16.mxu0 0
        %1812 = vmatpush1.bf16.msra.mxu0 0
        %1813 = vmatprep.subr.bf16.mxu0 0
        %1814 = vmatpush1.bf16.msra.mxu0 0
        %1815 = vmatprep.subr.bf16.mxu0 0
        %1816 = vmatpush1.bf16.msra.mxu0 0
        %1817 = vmatprep.subr.bf16.mxu0 0
        %1818 = vmatpush1.bf16.msra.mxu0 0
        %1819 = vmatprep.mubr.bf16.mxu0 0
        %1820 = vmatmul.mubr.bf16.gmra.mrb[0].mxu0 %v1782
        %v1821 = vpop.f32.mrb[0].mxu0
        %v1822 = vadd.f32 0.0, %v1821
        %v1823 = vpop.f32.mrb[0].mxu0
        %v1824 = vpop.f32.mrb[0].mxu0
        %v1825 = vadd.f32 0.0, %v1824
        %v1826 = vpop.f32.mrb[0].mxu0
        %1827 = vdwg.mxu0
        %v1829 = vsel %vm1343, %v1559, 0
        %v1832 = vsel %vm1467, %v1330, 0
        %1834 = vmatprep.subr.bf16.mxu0 0
        %1835 = vmatpush1.bf16.msra.mxu0 %v1832
        %1836 = vmatprep.subr.bf16.mxu0 0
        %1837 = vmatpush1.bf16.msra.mxu0 0
        %1838 = vmatprep.subr.bf16.mxu0 0
        %1839 = vmatpush1.bf16.msra.mxu0 0
        %1840 = vmatprep.subr.bf16.mxu0 0
        %1841 = vmatpush1.bf16.msra.mxu0 0
        %1842 = vmatprep.subr.bf16.mxu0 0
        %1843 = vmatpush1.bf16.msra.mxu0 0
        %1844 = vmatprep.subr.bf16.mxu0 0
        %1845 = vmatpush1.bf16.msra.mxu0 0
        %1846 = vmatprep.subr.bf16.mxu0 0
        %1847 = vmatpush1.bf16.msra.mxu0 0
        %1848 = vmatprep.subr.bf16.mxu0 0
        %1849 = vmatpush1.bf16.msra.mxu0 0
        %1850 = vmatprep.subr.bf16.mxu0 0
        %1851 = vmatpush1.bf16.msra.mxu0 0
        %1852 = vmatprep.subr.bf16.mxu0 0
        %1853 = vmatpush1.bf16.msra.mxu0 0
        %1854 = vmatprep.subr.bf16.mxu0 0
        %1855 = vmatpush1.bf16.msra.mxu0 0
        %1856 = vmatprep.subr.bf16.mxu0 0
        %1857 = vmatpush1.bf16.msra.mxu0 0
        %1858 = vmatprep.subr.bf16.mxu0 0
        %1859 = vmatpush1.bf16.msra.mxu0 0
        %1860 = vmatprep.subr.bf16.mxu0 0
        %1861 = vmatpush1.bf16.msra.mxu0 0
        %1862 = vmatprep.subr.bf16.mxu0 0
        %1863 = vmatpush1.bf16.msra.mxu0 0
        %1864 = vmatprep.subr.bf16.mxu0 0
        %1865 = vmatpush1.bf16.msra.mxu0 0
        %1866 = vmatprep.mubr.bf16.mxu0 0
        %1867 = vmatmul.mubr.bf16.gmra.mrb[0].mxu0 %v1829
        %v1868 = vpop.f32.mrb[0].mxu0
        %v1869 = vadd.f32 %v1822, %v1868
        %v1870 = vpop.f32.mrb[0].mxu0
        %v1871 = vpop.f32.mrb[0].mxu0
        %v1872 = vadd.f32 %v1825, %v1871
        %v1873 = vpop.f32.mrb[0].mxu0
        %1874 = vdwg.mxu0
        %1875 = vrot.lane.b32.xlu0 %v1339, 112
        %v1876 = vpop.permute.xlu0 %1875
        %1877 = vrot.lane.b32.xlu0 %v1339, 80
        %v1878 = vpop.permute.xlu0 %1877
        %v1880 = vsel %vm1343, %v1876, 0
        %v1883 = vsel %vm1343, %v1878, 0
        %1885 = vmatprep.subr.bf16.mxu0 0
        %1886 = vmatpush1.bf16.xpose.msra.mxu0 %v1883
        %1887 = vmatprep.subr.bf16.mxu0 0
        %1888 = vmatpush1.bf16.xpose.msra.mxu0 0
        %1889 = vmatprep.subr.bf16.mxu0 0
        %1890 = vmatpush1.bf16.xpose.msra.mxu0 0
        %1891 = vmatprep.subr.bf16.mxu0 0
        %1892 = vmatpush1.bf16.xpose.msra.mxu0 0
        %1893 = vmatprep.subr.bf16.mxu0 0
        %1894 = vmatpush1.bf16.xpose.msra.mxu0 0
        %1895 = vmatprep.subr.bf16.mxu0 0
        %1896 = vmatpush1.bf16.xpose.msra.mxu0 0
        %1897 = vmatprep.subr.bf16.mxu0 0
        %1898 = vmatpush1.bf16.xpose.msra.mxu0 0
        %1899 = vmatprep.subr.bf16.mxu0 0
        %1900 = vmatpush1.bf16.xpose.msra.mxu0 0
        %1901 = vmatprep.subr.bf16.mxu0 0
        %1902 = vmatpush1.bf16.xpose.msra.mxu0 0
        %1903 = vmatprep.subr.bf16.mxu0 0
        %1904 = vmatpush1.bf16.xpose.msra.mxu0 0
        %1905 = vmatprep.subr.bf16.mxu0 0
        %1906 = vmatpush1.bf16.xpose.msra.mxu0 0
        %1907 = vmatprep.subr.bf16.mxu0 0
        %1908 = vmatpush1.bf16.xpose.msra.mxu0 0
        %1909 = vmatprep.subr.bf16.mxu0 0
        %1910 = vmatpush1.bf16.xpose.msra.mxu0 0
        %1911 = vmatprep.subr.bf16.mxu0 0
        %1912 = vmatpush1.bf16.xpose.msra.mxu0 0
        %1913 = vmatprep.subr.bf16.mxu0 0
        %1914 = vmatpush1.bf16.xpose.msra.mxu0 0
        %1915 = vmatprep.subr.bf16.mxu0 0
        %1916 = vmatpush1.bf16.xpose.msra.mxu0 0
        %1917 = vmatprep.mubr.bf16.mxu0 0
        %1918 = vmatmul.mubr.bf16.gmra.mrb[0].mxu0 %v1880
        %v1919 = vpop.f32.mrb[0].mxu0
        %v1920 = vadd.f32 %v1257, %v1919
        %v1921 = vpop.f32.mrb[0].mxu0
        %v1922 = vpop.f32.mrb[0].mxu0
        %v1923 = vpop.f32.mrb[0].mxu0
        %1924 = vdwg.mxu0
        %1925 = vrot.lane.b32.xlu0 %v1340, 112
        %v1926 = vpop.permute.xlu0 %1925
        %1927 = vrot.lane.b32.xlu0 %v1340, 80
        %v1928 = vpop.permute.xlu0 %1927
        %v1930 = vsel %vm1343, %v1926, 0
        %v1933 = vsel %vm1343, %v1928, 0
        %1935 = vmatprep.subr.bf16.mxu0 0
        %1936 = vmatpush1.bf16.xpose.msra.mxu0 %v1933
        %1937 = vmatprep.subr.bf16.mxu0 0
        %1938 = vmatpush1.bf16.xpose.msra.mxu0 0
        %1939 = vmatprep.subr.bf16.mxu0 0
        %1940 = vmatpush1.bf16.xpose.msra.mxu0 0
        %1941 = vmatprep.subr.bf16.mxu0 0
        %1942 = vmatpush1.bf16.xpose.msra.mxu0 0
        %1943 = vmatprep.subr.bf16.mxu0 0
        %1944 = vmatpush1.bf16.xpose.msra.mxu0 0
        %1945 = vmatprep.subr.bf16.mxu0 0
        %1946 = vmatpush1.bf16.xpose.msra.mxu0 0
        %1947 = vmatprep.subr.bf16.mxu0 0
        %1948 = vmatpush1.bf16.xpose.msra.mxu0 0
        %1949 = vmatprep.subr.bf16.mxu0 0
        %1950 = vmatpush1.bf16.xpose.msra.mxu0 0
        %1951 = vmatprep.subr.bf16.mxu0 0
        %1952 = vmatpush1.bf16.xpose.msra.mxu0 0
        %1953 = vmatprep.subr.bf16.mxu0 0
        %1954 = vmatpush1.bf16.xpose.msra.mxu0 0
        %1955 = vmatprep.subr.bf16.mxu0 0
        %1956 = vmatpush1.bf16.xpose.msra.mxu0 0
        %1957 = vmatprep.subr.bf16.mxu0 0
        %1958 = vmatpush1.bf16.xpose.msra.mxu0 0
        %1959 = vmatprep.subr.bf16.mxu0 0
        %1960 = vmatpush1.bf16.xpose.msra.mxu0 0
        %1961 = vmatprep.subr.bf16.mxu0 0
        %1962 = vmatpush1.bf16.xpose.msra.mxu0 0
        %1963 = vmatprep.subr.bf16.mxu0 0
        %1964 = vmatpush1.bf16.xpose.msra.mxu0 0
        %1965 = vmatprep.subr.bf16.mxu0 0
        %1966 = vmatpush1.bf16.xpose.msra.mxu0 0
        %1967 = vmatprep.mubr.bf16.mxu0 0
        %1968 = vmatmul.mubr.bf16.gmra.mrb[0].mxu0 %v1930
        %v1969 = vpop.f32.mrb[0].mxu0
        %v1970 = vadd.f32 %v1257, %v1969
        %v1971 = vpop.f32.mrb[0].mxu0
        %v1972 = vpop.f32.mrb[0].mxu0
        %v1973 = vpop.f32.mrb[0].mxu0
        %1974 = vdwg.mxu0
        %v1975 = vsel %vm1343, %v1920, -inf
        %1976 = vmax.xlane.f32.xlu0 %v1975
        %v1977 = vpop.xlane.xlu0 %1976
        %v1978 = vsel %vm1343, %v1970, -inf
        %1979 = vmax.xlane.f32.xlu0 %v1978
        %v1980 = vpop.xlane.xlu0 %1979
        %v1981 = vsub.f32 %v1920, %v1977
        %v1982 = vsub.f32 %v1970, %v1980
        %v1983 = vmul.f32 %v1981, 1.442695
        %v1984 = vpow.pop %v1983
        %v1985 = vmul.f32 %v1982, 1.442695
        %v1986 = vpow.pop %v1985
        %v1987 = vsel %vm1343, %v1984, 0.0
        %1988 = vadd.xlane.f32.xlu0 %v1987
        %v1989 = vpop.xlane.xlu0 %1988
        %v1990 = vsel %vm1343, %v1986, 0.0
        %1991 = vadd.xlane.f32.xlu0 %v1990
        %v1992 = vpop.xlane.xlu0 %1991
        %v1993 = vrcp.pop %v1989
        %v1994 = vrcp.pop %v1992
        %v1995 = vmul.f32 %v1984, %v1993
        %v1996 = vmul.f32 %v1986, %v1994
        %v1997 = vpack.c.bf16 %v1995, %v1995
        %v1998 = vpack.c.bf16 %v1996, %v1996
        %1999 = vrot.lane.b32.xlu0 %v1339, 48
        %v2000 = vpop.permute.xlu0 %1999
        %v2002 = vsel %vm1343, %v1997, 0
        %v2005 = vsel %vm1467, %v2000, 0
        %2007 = vmatprep.subr.bf16.mxu0 0
        %2008 = vmatpush1.bf16.msra.mxu0 %v2005
        %2009 = vmatprep.subr.bf16.mxu0 0
        %2010 = vmatpush1.bf16.msra.mxu0 0
        %2011 = vmatprep.subr.bf16.mxu0 0
        %2012 = vmatpush1.bf16.msra.mxu0 0
        %2013 = vmatprep.subr.bf16.mxu0 0
        %2014 = vmatpush1.bf16.msra.mxu0 0
        %2015 = vmatprep.subr.bf16.mxu0 0
        %2016 = vmatpush1.bf16.msra.mxu0 0
        %2017 = vmatprep.subr.bf16.mxu0 0
        %2018 = vmatpush1.bf16.msra.mxu0 0
        %2019 = vmatprep.subr.bf16.mxu0 0
        %2020 = vmatpush1.bf16.msra.mxu0 0
        %2021 = vmatprep.subr.bf16.mxu0 0
        %2022 = vmatpush1.bf16.msra.mxu0 0
        %2023 = vmatprep.subr.bf16.mxu0 0
        %2024 = vmatpush1.bf16.msra.mxu0 0
        %2025 = vmatprep.subr.bf16.mxu0 0
        %2026 = vmatpush1.bf16.msra.mxu0 0
        %2027 = vmatprep.subr.bf16.mxu0 0
        %2028 = vmatpush1.bf16.msra.mxu0 0
        %2029 = vmatprep.subr.bf16.mxu0 0
        %2030 = vmatpush1.bf16.msra.mxu0 0
        %2031 = vmatprep.subr.bf16.mxu0 0
        %2032 = vmatpush1.bf16.msra.mxu0 0
        %2033 = vmatprep.subr.bf16.mxu0 0
        %2034 = vmatpush1.bf16.msra.mxu0 0
        %2035 = vmatprep.subr.bf16.mxu0 0
        %2036 = vmatpush1.bf16.msra.mxu0 0
        %2037 = vmatprep.subr.bf16.mxu0 0
        %2038 = vmatpush1.bf16.msra.mxu0 0
        %2039 = vmatprep.mubr.bf16.mxu0 0
        %2040 = vmatmul.mubr.bf16.gmra.mrb[0].mxu0 %v2002
        %v2041 = vpop.f32.mrb[0].mxu0
        %v2042 = vadd.f32 0.0, %v2041
        %v2043 = vpop.f32.mrb[0].mxu0
        %v2044 = vpop.f32.mrb[0].mxu0
        %v2045 = vpop.f32.mrb[0].mxu0
        %2046 = vdwg.mxu0
        %2047 = vrot.lane.b32.xlu0 %v1340, 48
        %v2048 = vpop.permute.xlu0 %2047
        %v2050 = vsel %vm1343, %v1998, 0
        %v2053 = vsel %vm1467, %v2048, 0
        %2055 = vmatprep.subr.bf16.mxu0 0
        %2056 = vmatpush1.bf16.msra.mxu0 %v2053
        %2057 = vmatprep.subr.bf16.mxu0 0
        %2058 = vmatpush1.bf16.msra.mxu0 0
        %2059 = vmatprep.subr.bf16.mxu0 0
        %2060 = vmatpush1.bf16.msra.mxu0 0
        %2061 = vmatprep.subr.bf16.mxu0 0
        %2062 = vmatpush1.bf16.msra.mxu0 0
        %2063 = vmatprep.subr.bf16.mxu0 0
        %2064 = vmatpush1.bf16.msra.mxu0 0
        %2065 = vmatprep.subr.bf16.mxu0 0
        %2066 = vmatpush1.bf16.msra.mxu0 0
        %2067 = vmatprep.subr.bf16.mxu0 0
        %2068 = vmatpush1.bf16.msra.mxu0 0
        %2069 = vmatprep.subr.bf16.mxu0 0
        %2070 = vmatpush1.bf16.msra.mxu0 0
        %2071 = vmatprep.subr.bf16.mxu0 0
        %2072 = vmatpush1.bf16.msra.mxu0 0
        %2073 = vmatprep.subr.bf16.mxu0 0
        %2074 = vmatpush1.bf16.msra.mxu0 0
        %2075 = vmatprep.subr.bf16.mxu0 0
        %2076 = vmatpush1.bf16.msra.mxu0 0
        %2077 = vmatprep.subr.bf16.mxu0 0
        %2078 = vmatpush1.bf16.msra.mxu0 0
        %2079 = vmatprep.subr.bf16.mxu0 0
        %2080 = vmatpush1.bf16.msra.mxu0 0
        %2081 = vmatprep.subr.bf16.mxu0 0
        %2082 = vmatpush1.bf16.msra.mxu0 0
        %2083 = vmatprep.subr.bf16.mxu0 0
        %2084 = vmatpush1.bf16.msra.mxu0 0
        %2085 = vmatprep.subr.bf16.mxu0 0
        %2086 = vmatpush1.bf16.msra.mxu0 0
        %2087 = vmatprep.mubr.bf16.mxu0 0
        %2088 = vmatmul.mubr.bf16.gmra.mrb[0].mxu0 %v2050
        %v2089 = vpop.f32.mrb[0].mxu0
        %v2090 = vadd.f32 0.0, %v2089
        %v2091 = vpop.f32.mrb[0].mxu0
        %v2092 = vpop.f32.mrb[0].mxu0
        %v2093 = vpop.f32.mrb[0].mxu0
        %2094 = vdwg.mxu0
        %v2095 = vpack.c.bf16 %v2090, %v2042
        %v2097 = vsel %vm1343, %v2095, 0
        %v2100 = vsel %vm1467, %v1332, 0
        %2102 = vmatprep.subr.bf16.mxu0 0
        %2103 = vmatpush1.bf16.msra.mxu0 %v2100
        %2104 = vmatprep.subr.bf16.mxu0 0
        %2105 = vmatpush1.bf16.msra.mxu0 0
        %2106 = vmatprep.subr.bf16.mxu0 0
        %2107 = vmatpush1.bf16.msra.mxu0 0
        %2108 = vmatprep.subr.bf16.mxu0 0
        %2109 = vmatpush1.bf16.msra.mxu0 0
        %2110 = vmatprep.subr.bf16.mxu0 0
        %2111 = vmatpush1.bf16.msra.mxu0 0
        %2112 = vmatprep.subr.bf16.mxu0 0
        %2113 = vmatpush1.bf16.msra.mxu0 0
        %2114 = vmatprep.subr.bf16.mxu0 0
        %2115 = vmatpush1.bf16.msra.mxu0 0
        %2116 = vmatprep.subr.bf16.mxu0 0
        %2117 = vmatpush1.bf16.msra.mxu0 0
        %2118 = vmatprep.subr.bf16.mxu0 0
        %2119 = vmatpush1.bf16.msra.mxu0 0
        %2120 = vmatprep.subr.bf16.mxu0 0
        %2121 = vmatpush1.bf16.msra.mxu0 0
        %2122 = vmatprep.subr.bf16.mxu0 0
        %2123 = vmatpush1.bf16.msra.mxu0 0
        %2124 = vmatprep.subr.bf16.mxu0 0
        %2125 = vmatpush1.bf16.msra.mxu0 0
        %2126 = vmatprep.subr.bf16.mxu0 0
        %2127 = vmatpush1.bf16.msra.mxu0 0
        %2128 = vmatprep.subr.bf16.mxu0 0
        %2129 = vmatpush1.bf16.msra.mxu0 0
        %2130 = vmatprep.subr.bf16.mxu0 0
        %2131 = vmatpush1.bf16.msra.mxu0 0
        %2132 = vmatprep.subr.bf16.mxu0 0
        %2133 = vmatpush1.bf16.msra.mxu0 0
        %2134 = vmatprep.mubr.bf16.mxu0 0
        %2135 = vmatmul.mubr.bf16.gmra.mrb[0].mxu0 %v2097
        %v2136 = vpop.f32.mrb[0].mxu0
        %v2137 = vadd.f32 0.0, %v2136
        %v2138 = vpop.f32.mrb[0].mxu0
        %v2139 = vpop.f32.mrb[0].mxu0
        %v2140 = vadd.f32 0.0, %v2139
        %v2141 = vpop.f32.mrb[0].mxu0
        %2142 = vdwg.mxu0
        %v2143 = vadd.f32 %v1869, %v2137
        %v2144 = vadd.f32 %v1872, %v2140
        %2145 = vrot.lane.b32.xlu0 %v1339, 104
        %v2146 = vpop.permute.xlu0 %2145
        %2147 = vrot.lane.b32.xlu0 %v1339, 72
        %v2148 = vpop.permute.xlu0 %2147
        %v2150 = vsel %vm1343, %v2146, 0
        %v2153 = vsel %vm1343, %v2148, 0
        %2155 = vmatprep.subr.bf16.mxu0 0
        %2156 = vmatpush1.bf16.xpose.msra.mxu0 %v2153
        %2157 = vmatprep.subr.bf16.mxu0 0
        %2158 = vmatpush1.bf16.xpose.msra.mxu0 0
        %2159 = vmatprep.subr.bf16.mxu0 0
        %2160 = vmatpush1.bf16.xpose.msra.mxu0 0
        %2161 = vmatprep.subr.bf16.mxu0 0
        %2162 = vmatpush1.bf16.xpose.msra.mxu0 0
        %2163 = vmatprep.subr.bf16.mxu0 0
        %2164 = vmatpush1.bf16.xpose.msra.mxu0 0
        %2165 = vmatprep.subr.bf16.mxu0 0
        %2166 = vmatpush1.bf16.xpose.msra.mxu0 0
        %2167 = vmatprep.subr.bf16.mxu0 0
        %2168 = vmatpush1.bf16.xpose.msra.mxu0 0
        %2169 = vmatprep.subr.bf16.mxu0 0
        %2170 = vmatpush1.bf16.xpose.msra.mxu0 0
        %2171 = vmatprep.subr.bf16.mxu0 0
        %2172 = vmatpush1.bf16.xpose.msra.mxu0 0
        %2173 = vmatprep.subr.bf16.mxu0 0
        %2174 = vmatpush1.bf16.xpose.msra.mxu0 0
        %2175 = vmatprep.subr.bf16.mxu0 0
        %2176 = vmatpush1.bf16.xpose.msra.mxu0 0
        %2177 = vmatprep.subr.bf16.mxu0 0
        %2178 = vmatpush1.bf16.xpose.msra.mxu0 0
        %2179 = vmatprep.subr.bf16.mxu0 0
        %2180 = vmatpush1.bf16.xpose.msra.mxu0 0
        %2181 = vmatprep.subr.bf16.mxu0 0
        %2182 = vmatpush1.bf16.xpose.msra.mxu0 0
        %2183 = vmatprep.subr.bf16.mxu0 0
        %2184 = vmatpush1.bf16.xpose.msra.mxu0 0
        %2185 = vmatprep.subr.bf16.mxu0 0
        %2186 = vmatpush1.bf16.xpose.msra.mxu0 0
        %2187 = vmatprep.mubr.bf16.mxu0 0
        %2188 = vmatmul.mubr.bf16.gmra.mrb[0].mxu0 %v2150
        %v2189 = vpop.f32.mrb[0].mxu0
        %v2190 = vadd.f32 %v1257, %v2189
        %v2191 = vpop.f32.mrb[0].mxu0
        %v2192 = vpop.f32.mrb[0].mxu0
        %v2193 = vpop.f32.mrb[0].mxu0
        %2194 = vdwg.mxu0
        %2195 = vrot.lane.b32.xlu0 %v1340, 104
        %v2196 = vpop.permute.xlu0 %2195
        %2197 = vrot.lane.b32.xlu0 %v1340, 72
        %v2198 = vpop.permute.xlu0 %2197
        %v2200 = vsel %vm1343, %v2196, 0
        %v2203 = vsel %vm1343, %v2198, 0
        %2205 = vmatprep.subr.bf16.mxu0 0
        %2206 = vmatpush1.bf16.xpose.msra.mxu0 %v2203
        %2207 = vmatprep.subr.bf16.mxu0 0
        %2208 = vmatpush1.bf16.xpose.msra.mxu0 0
        %2209 = vmatprep.subr.bf16.mxu0 0
        %2210 = vmatpush1.bf16.xpose.msra.mxu0 0
        %2211 = vmatprep.subr.bf16.mxu0 0
        %2212 = vmatpush1.bf16.xpose.msra.mxu0 0
        %2213 = vmatprep.subr.bf16.mxu0 0
        %2214 = vmatpush1.bf16.xpose.msra.mxu0 0
        %2215 = vmatprep.subr.bf16.mxu0 0
        %2216 = vmatpush1.bf16.xpose.msra.mxu0 0
        %2217 = vmatprep.subr.bf16.mxu0 0
        %2218 = vmatpush1.bf16.xpose.msra.mxu0 0
        %2219 = vmatprep.subr.bf16.mxu0 0
        %2220 = vmatpush1.bf16.xpose.msra.mxu0 0
        %2221 = vmatprep.subr.bf16.mxu0 0
        %2222 = vmatpush1.bf16.xpose.msra.mxu0 0
        %2223 = vmatprep.subr.bf16.mxu0 0
        %2224 = vmatpush1.bf16.xpose.msra.mxu0 0
        %2225 = vmatprep.subr.bf16.mxu0 0
        %2226 = vmatpush1.bf16.xpose.msra.mxu0 0
        %2227 = vmatprep.subr.bf16.mxu0 0
        %2228 = vmatpush1.bf16.xpose.msra.mxu0 0
        %2229 = vmatprep.subr.bf16.mxu0 0
        %2230 = vmatpush1.bf16.xpose.msra.mxu0 0
        %2231 = vmatprep.subr.bf16.mxu0 0
        %2232 = vmatpush1.bf16.xpose.msra.mxu0 0
        %2233 = vmatprep.subr.bf16.mxu0 0
        %2234 = vmatpush1.bf16.xpose.msra.mxu0 0
        %2235 = vmatprep.subr.bf16.mxu0 0
        %2236 = vmatpush1.bf16.xpose.msra.mxu0 0
        %2237 = vmatprep.mubr.bf16.mxu0 0
        %2238 = vmatmul.mubr.bf16.gmra.mrb[0].mxu0 %v2200
        %v2239 = vpop.f32.mrb[0].mxu0
        %v2240 = vadd.f32 %v1257, %v2239
        %v2241 = vpop.f32.mrb[0].mxu0
        %v2242 = vpop.f32.mrb[0].mxu0
        %v2243 = vpop.f32.mrb[0].mxu0
        %2244 = vdwg.mxu0
        %v2245 = vsel %vm1343, %v2190, -inf
        %2246 = vmax.xlane.f32.xlu0 %v2245
        %v2247 = vpop.xlane.xlu0 %2246
        %v2248 = vsel %vm1343, %v2240, -inf
        %2249 = vmax.xlane.f32.xlu0 %v2248
        %v2250 = vpop.xlane.xlu0 %2249
        %v2251 = vsub.f32 %v2190, %v2247
        %v2252 = vsub.f32 %v2240, %v2250
        %v2253 = vmul.f32 %v2251, 1.442695
        %v2254 = vpow.pop %v2253
        %v2255 = vmul.f32 %v2252, 1.442695
        %v2256 = vpow.pop %v2255
        %v2257 = vsel %vm1343, %v2254, 0.0
        %2258 = vadd.xlane.f32.xlu0 %v2257
        %v2259 = vpop.xlane.xlu0 %2258
        %v2260 = vsel %vm1343, %v2256, 0.0
        %2261 = vadd.xlane.f32.xlu0 %v2260
        %v2262 = vpop.xlane.xlu0 %2261
        %v2263 = vrcp.pop %v2259
        %v2264 = vrcp.pop %v2262
        %v2265 = vmul.f32 %v2254, %v2263
        %v2266 = vmul.f32 %v2256, %v2264
        %v2267 = vpack.c.bf16 %v2265, %v2265
        %v2268 = vpack.c.bf16 %v2266, %v2266
        %2269 = vrot.lane.b32.xlu0 %v1339, 40
        %v2270 = vpop.permute.xlu0 %2269
        %v2272 = vsel %vm1343, %v2267, 0
        %v2275 = vsel %vm1467, %v2270, 0
        %2277 = vmatprep.subr.bf16.mxu0 0
        %2278 = vmatpush1.bf16.msra.mxu0 %v2275
        %2279 = vmatprep.subr.bf16.mxu0 0
        %2280 = vmatpush1.bf16.msra.mxu0 0
        %2281 = vmatprep.subr.bf16.mxu0 0
        %2282 = vmatpush1.bf16.msra.mxu0 0
        %2283 = vmatprep.subr.bf16.mxu0 0
        %2284 = vmatpush1.bf16.msra.mxu0 0
        %2285 = vmatprep.subr.bf16.mxu0 0
        %2286 = vmatpush1.bf16.msra.mxu0 0
        %2287 = vmatprep.subr.bf16.mxu0 0
        %2288 = vmatpush1.bf16.msra.mxu0 0
        %2289 = vmatprep.subr.bf16.mxu0 0
        %2290 = vmatpush1.bf16.msra.mxu0 0
        %2291 = vmatprep.subr.bf16.mxu0 0
        %2292 = vmatpush1.bf16.msra.mxu0 0
        %2293 = vmatprep.subr.bf16.mxu0 0
        %2294 = vmatpush1.bf16.msra.mxu0 0
        %2295 = vmatprep.subr.bf16.mxu0 0
        %2296 = vmatpush1.bf16.msra.mxu0 0
        %2297 = vmatprep.subr.bf16.mxu0 0
        %2298 = vmatpush1.bf16.msra.mxu0 0
        %2299 = vmatprep.subr.bf16.mxu0 0
        %2300 = vmatpush1.bf16.msra.mxu0 0
        %2301 = vmatprep.subr.bf16.mxu0 0
        %2302 = vmatpush1.bf16.msra.mxu0 0
        %2303 = vmatprep.subr.bf16.mxu0 0
        %2304 = vmatpush1.bf16.msra.mxu0 0
        %2305 = vmatprep.subr.bf16.mxu0 0
        %2306 = vmatpush1.bf16.msra.mxu0 0
        %2307 = vmatprep.subr.bf16.mxu0 0
        %2308 = vmatpush1.bf16.msra.mxu0 0
        %2309 = vmatprep.mubr.bf16.mxu0 0
        %2310 = vmatmul.mubr.bf16.gmra.mrb[0].mxu0 %v2272
        %v2311 = vpop.f32.mrb[0].mxu0
        %v2312 = vadd.f32 0.0, %v2311
        %v2313 = vpop.f32.mrb[0].mxu0
        %v2314 = vpop.f32.mrb[0].mxu0
        %v2315 = vpop.f32.mrb[0].mxu0
        %2316 = vdwg.mxu0
        %2317 = vrot.lane.b32.xlu0 %v1340, 40
        %v2318 = vpop.permute.xlu0 %2317
        %v2320 = vsel %vm1343, %v2268, 0
        %v2323 = vsel %vm1467, %v2318, 0
        %2325 = vmatprep.subr.bf16.mxu0 0
        %2326 = vmatpush1.bf16.msra.mxu0 %v2323
        %2327 = vmatprep.subr.bf16.mxu0 0
        %2328 = vmatpush1.bf16.msra.mxu0 0
        %2329 = vmatprep.subr.bf16.mxu0 0
        %2330 = vmatpush1.bf16.msra.mxu0 0
        %2331 = vmatprep.subr.bf16.mxu0 0
        %2332 = vmatpush1.bf16.msra.mxu0 0
        %2333 = vmatprep.subr.bf16.mxu0 0
        %2334 = vmatpush1.bf16.msra.mxu0 0
        %2335 = vmatprep.subr.bf16.mxu0 0
        %2336 = vmatpush1.bf16.msra.mxu0 0
        %2337 = vmatprep.subr.bf16.mxu0 0
        %2338 = vmatpush1.bf16.msra.mxu0 0
        %2339 = vmatprep.subr.bf16.mxu0 0
        %2340 = vmatpush1.bf16.msra.mxu0 0
        %2341 = vmatprep.subr.bf16.mxu0 0
        %2342 = vmatpush1.bf16.msra.mxu0 0
        %2343 = vmatprep.subr.bf16.mxu0 0
        %2344 = vmatpush1.bf16.msra.mxu0 0
        %2345 = vmatprep.subr.bf16.mxu0 0
        %2346 = vmatpush1.bf16.msra.mxu0 0
        %2347 = vmatprep.subr.bf16.mxu0 0
        %2348 = vmatpush1.bf16.msra.mxu0 0
        %2349 = vmatprep.subr.bf16.mxu0 0
        %2350 = vmatpush1.bf16.msra.mxu0 0
        %2351 = vmatprep.subr.bf16.mxu0 0
        %2352 = vmatpush1.bf16.msra.mxu0 0
        %2353 = vmatprep.subr.bf16.mxu0 0
        %2354 = vmatpush1.bf16.msra.mxu0 0
        %2355 = vmatprep.subr.bf16.mxu0 0
        %2356 = vmatpush1.bf16.msra.mxu0 0
        %2357 = vmatprep.mubr.bf16.mxu0 0
        %2358 = vmatmul.mubr.bf16.gmra.mrb[0].mxu0 %v2320
        %v2359 = vpop.f32.mrb[0].mxu0
        %v2360 = vadd.f32 0.0, %v2359
        %v2361 = vpop.f32.mrb[0].mxu0
        %v2362 = vpop.f32.mrb[0].mxu0
        %v2363 = vpop.f32.mrb[0].mxu0
        %2364 = vdwg.mxu0
        %v2365 = vpack.c.bf16 %v2360, %v2312
        %v2367 = vsel %vm1343, %v2365, 0
        %v2370 = vsel %vm1467, %v1333, 0
        %2372 = vmatprep.subr.bf16.mxu0 0
        %2373 = vmatpush1.bf16.msra.mxu0 %v2370
        %2374 = vmatprep.subr.bf16.mxu0 0
        %2375 = vmatpush1.bf16.msra.mxu0 0
        %2376 = vmatprep.subr.bf16.mxu0 0
        %2377 = vmatpush1.bf16.msra.mxu0 0
        %2378 = vmatprep.subr.bf16.mxu0 0
        %2379 = vmatpush1.bf16.msra.mxu0 0
        %2380 = vmatprep.subr.bf16.mxu0 0
        %2381 = vmatpush1.bf16.msra.mxu0 0
        %2382 = vmatprep.subr.bf16.mxu0 0
        %2383 = vmatpush1.bf16.msra.mxu0 0
        %2384 = vmatprep.subr.bf16.mxu0 0
        %2385 = vmatpush1.bf16.msra.mxu0 0
        %2386 = vmatprep.subr.bf16.mxu0 0
        %2387 = vmatpush1.bf16.msra.mxu0 0
        %2388 = vmatprep.subr.bf16.mxu0 0
        %2389 = vmatpush1.bf16.msra.mxu0 0
        %2390 = vmatprep.subr.bf16.mxu0 0
        %2391 = vmatpush1.bf16.msra.mxu0 0
        %2392 = vmatprep.subr.bf16.mxu0 0
        %2393 = vmatpush1.bf16.msra.mxu0 0
        %2394 = vmatprep.subr.bf16.mxu0 0
        %2395 = vmatpush1.bf16.msra.mxu0 0
        %2396 = vmatprep.subr.bf16.mxu0 0
        %2397 = vmatpush1.bf16.msra.mxu0 0
        %2398 = vmatprep.subr.bf16.mxu0 0
        %2399 = vmatpush1.bf16.msra.mxu0 0
        %2400 = vmatprep.subr.bf16.mxu0 0
        %2401 = vmatpush1.bf16.msra.mxu0 0
        %2402 = vmatprep.subr.bf16.mxu0 0
        %2403 = vmatpush1.bf16.msra.mxu0 0
        %2404 = vmatprep.mubr.bf16.mxu0 0
        %2405 = vmatmul.mubr.bf16.gmra.mrb[0].mxu0 %v2367
        %v2406 = vpop.f32.mrb[0].mxu0
        %v2407 = vadd.f32 0.0, %v2406
        %v2408 = vpop.f32.mrb[0].mxu0
        %v2409 = vpop.f32.mrb[0].mxu0
        %v2410 = vadd.f32 0.0, %v2409
        %v2411 = vpop.f32.mrb[0].mxu0
        %2412 = vdwg.mxu0
        %v2413 = vadd.f32 %v2143, %v2407
        %v2414 = vadd.f32 %v2144, %v2410
        %v2416 = vlaneseq
        %v2417 = vshrl.u32 %v2416, 7
        %v2418 = vsub.s32 0, %v2417
        %v2419 = vrot.slane %v1334, %v2418
        %v2421 = vadd.f32 %v2413, %v2419
        %v2422 = vadd.f32 %v2414, %v2419
        %v2423 = vadd.f32 %v2421, %v1253
        %v2424 = vadd.f32 %v2422, %v1254
        %v2425 = vsel %vm1285, %v2423, 0.0
        %2426 = vadd.xlane.f32.xlu0 %v2425
        %v2427 = vpop.xlane.xlu0 %2426
        %v2428 = vsel %vm1285, %v2424, 0.0
        %2429 = vadd.xlane.f32.xlu0 %v2428
        %v2430 = vpop.xlane.xlu0 %2429
        %v2431 = vrcp.pop 32.0
        %v2432 = vmul.f32 %v2427, %v2431
        %v2433 = vmul.f32 %v2430, %v2431
        %v2434 = vsub.f32 %v2423, %v2432
        %v2435 = vsub.f32 %v2424, %v2433
        %v2436 = vmul.f32 %v2434, %v2434
        %v2437 = vmul.f32 %v2435, %v2435
        %v2438 = vsel %vm1285, %v2436, 0.0
        %2439 = vadd.xlane.f32.xlu0 %v2438
        %v2440 = vpop.xlane.xlu0 %2439
        %v2441 = vsel %vm1285, %v2437, 0.0
        %2442 = vadd.xlane.f32.xlu0 %v2441
        %v2443 = vpop.xlane.xlu0 %2442
        %v2444 = vmul.f32 %v2440, %v2431
        %v2445 = vmul.f32 %v2443, %v2431
        %v2446 = vadd.f32 %v2444, 1e-05
        %v2447 = vadd.f32 %v2445, 1e-05
        %v2448 = vrsqrt.pop %v2446
        %v2449 = vrsqrt.pop %v2447
        %v2450 = vmul.f32 %v2434, %v2448
        %v2451 = vmul.f32 %v2435, %v2449
        %v2452 = vlaneseq
        %v2453 = vshrl.u32 %v2452, 7
        %v2454 = vsub.s32 0, %v2453
        %v2455 = vrot.slane %v1258, %v2454
        %v2456 = vmul.f32 %v2450, %v2455
        %v2457 = vmul.f32 %v2451, %v2455
        %v2458 = vlaneseq
        %v2459 = vshrl.u32 %v2458, 7
        %v2460 = vsub.s32 1, %v2459
        %v2461 = vrot.slane %v1258, %v2460
        %v2462 = vadd.f32 %v2456, %v2461
        %v2463 = vadd.f32 %v2457, %v2461
        %v2464 = vpack.c.bf16 %v2463, %v2462
        %v2465 = vpack.c.bf16 %v1256, %v1255
        %v2466 = vld [vmem:[%s1024] sm:$0xf]
        %v2467 = vld [vmem:[%s1024 + $0x4] sm:$0xf]
        %v2468 = vld [vmem:[%s1024 + $0x8] sm:$0xf]
        %v2469 = vld [vmem:[%s1024 + $0xc] sm:$0xf]
        %v2470 = vld [vmem:[%s1032] sm:$0x1]
        %v2472 = vlaneseq
        %v2473 = vshrl.u32 %v2472, 7
        %v2474 = vsub.s32 0, %v2473
        %v2475 = vrot.slane %v2470, %v2474
        %v2481 = vunpack.c.l.b16 %v2466
        %v2482 = vunpack.c.l.b16 %v2467
        %v2483 = vunpack.c.l.b16 %v2468
        %v2484 = vunpack.c.l.b16 %v2469
        %v2485 = vpack.c.b16 %v2482, %v2481
        %v2486 = vpack.c.b16 %v2484, %v2483
        %v2490 = vsel %vm1285, %v2464, 0
        %2492 = vmatprep.subr.bf16.mxu0 0
        %2493 = vmatpush1.bf16.msra.mxu0 %v2485
        %2494 = vmatprep.subr.bf16.mxu0 0
        %2495 = vmatpush1.bf16.msra.mxu0 %v2486
        %2496 = vmatprep.subr.bf16.mxu0 0
        %2497 = vmatpush1.bf16.msra.mxu0 0
        %2498 = vmatprep.subr.bf16.mxu0 0
        %2499 = vmatpush1.bf16.msra.mxu0 0
        %2500 = vmatprep.subr.bf16.mxu0 0
        %2501 = vmatpush1.bf16.msra.mxu0 0
        %2502 = vmatprep.subr.bf16.mxu0 0
        %2503 = vmatpush1.bf16.msra.mxu0 0
        %2504 = vmatprep.subr.bf16.mxu0 0
        %2505 = vmatpush1.bf16.msra.mxu0 0
        %2506 = vmatprep.subr.bf16.mxu0 0
        %2507 = vmatpush1.bf16.msra.mxu0 0
        %2508 = vmatprep.subr.bf16.mxu0 0
        %2509 = vmatpush1.bf16.msra.mxu0 0
        %2510 = vmatprep.subr.bf16.mxu0 0
        %2511 = vmatpush1.bf16.msra.mxu0 0
        %2512 = vmatprep.subr.bf16.mxu0 0
        %2513 = vmatpush1.bf16.msra.mxu0 0
        %2514 = vmatprep.subr.bf16.mxu0 0
        %2515 = vmatpush1.bf16.msra.mxu0 0
        %2516 = vmatprep.subr.bf16.mxu0 0
        %2517 = vmatpush1.bf16.msra.mxu0 0
        %2518 = vmatprep.subr.bf16.mxu0 0
        %2519 = vmatpush1.bf16.msra.mxu0 0
        %2520 = vmatprep.subr.bf16.mxu0 0
        %2521 = vmatpush1.bf16.msra.mxu0 0
        %2522 = vmatprep.subr.bf16.mxu0 0
        %2523 = vmatpush1.bf16.msra.mxu0 0
        %2524 = vmatprep.mubr.bf16.mxu0 0
        %2525 = vmatmul.mubr.bf16.gmra.mrb[0].mxu0 %v2490
        %v2526 = vpop.f32.mrb[0].mxu0
        %v2527 = vadd.f32 %v2475, %v2526
        %v2528 = vpop.f32.mrb[0].mxu0
        %v2529 = vpop.f32.mrb[0].mxu0
        %v2530 = vadd.f32 %v2475, %v2529
        %v2531 = vpop.f32.mrb[0].mxu0
        %2532 = vdwg.mxu0
        %v2533 = vld [vmem:[%s1041] sm:$0xf]
        %v2534 = vld [vmem:[%s1041 + $0x4] sm:$0xf]
        %v2535 = vld [vmem:[%s1041 + $0x8] sm:$0xf]
        %v2536 = vld [vmem:[%s1041 + $0xc] sm:$0xf]
        %v2537 = vld [vmem:[%s1049] sm:$0x1]
        %v2539 = vlaneseq
        %v2540 = vshrl.u32 %v2539, 7
        %v2541 = vsub.s32 0, %v2540
        %v2542 = vrot.slane %v2537, %v2541
        %v2548 = vunpack.c.l.b16 %v2533
        %v2549 = vunpack.c.l.b16 %v2534
        %v2550 = vunpack.c.l.b16 %v2535
        %v2551 = vunpack.c.l.b16 %v2536
        %v2552 = vpack.c.b16 %v2549, %v2548
        %v2553 = vpack.c.b16 %v2551, %v2550
        %v2557 = vsel %vm1285, %v2465, 0
        %2559 = vmatprep.subr.bf16.mxu0 0
        %2560 = vmatpush1.bf16.msra.mxu0 %v2552
        %2561 = vmatprep.subr.bf16.mxu0 0
        %2562 = vmatpush1.bf16.msra.mxu0 %v2553
        %2563 = vmatprep.subr.bf16.mxu0 0
        %2564 = vmatpush1.bf16.msra.mxu0 0
        %2565 = vmatprep.subr.bf16.mxu0 0
        %2566 = vmatpush1.bf16.msra.mxu0 0
        %2567 = vmatprep.subr.bf16.mxu0 0
        %2568 = vmatpush1.bf16.msra.mxu0 0
        %2569 = vmatprep.subr.bf16.mxu0 0
        %2570 = vmatpush1.bf16.msra.mxu0 0
        %2571 = vmatprep.subr.bf16.mxu0 0
        %2572 = vmatpush1.bf16.msra.mxu0 0
        %2573 = vmatprep.subr.bf16.mxu0 0
        %2574 = vmatpush1.bf16.msra.mxu0 0
        %2575 = vmatprep.subr.bf16.mxu0 0
        %2576 = vmatpush1.bf16.msra.mxu0 0
        %2577 = vmatprep.subr.bf16.mxu0 0
        %2578 = vmatpush1.bf16.msra.mxu0 0
        %2579 = vmatprep.subr.bf16.mxu0 0
        %2580 = vmatpush1.bf16.msra.mxu0 0
        %2581 = vmatprep.subr.bf16.mxu0 0
        %2582 = vmatpush1.bf16.msra.mxu0 0
        %2583 = vmatprep.subr.bf16.mxu0 0
        %2584 = vmatpush1.bf16.msra.mxu0 0
        %2585 = vmatprep.subr.bf16.mxu0 0
        %2586 = vmatpush1.bf16.msra.mxu0 0
        %2587 = vmatprep.subr.bf16.mxu0 0
        %2588 = vmatpush1.bf16.msra.mxu0 0
        %2589 = vmatprep.subr.bf16.mxu0 0
        %2590 = vmatpush1.bf16.msra.mxu0 0
        %2591 = vmatprep.mubr.bf16.mxu0 0
        %2592 = vmatmul.mubr.bf16.gmra.mrb[0].mxu0 %v2557
        %v2593 = vpop.f32.mrb[0].mxu0
        %v2594 = vadd.f32 %v2542, %v2593
        %v2595 = vpop.f32.mrb[0].mxu0
        %v2596 = vpop.f32.mrb[0].mxu0
        %v2597 = vadd.f32 %v2542, %v2596
        %v2598 = vpop.f32.mrb[0].mxu0
        %2599 = vdwg.mxu0
        %v2600 = vld [vmem:[%s1058] sm:$0xf]
        %v2601 = vld [vmem:[%s1058 + $0x4] sm:$0xf]
        %v2602 = vld [vmem:[%s1058 + $0x8] sm:$0xf]
        %v2603 = vld [vmem:[%s1058 + $0xc] sm:$0xf]
        %v2604 = vld [vmem:[%s1066] sm:$0x1]
        %v2605 = vpack.c.bf16 %v2530, %v2527
        %v2607 = vunpack.c.l.b16 %v2605
        %v2608 = vunpack.c.h.b16 %v2605
        %v2609 = vpack.c.b16 %v2607, %v2607
        %v2610 = vpack.c.b16 %v2608, %v2608
        %v2611 = vpack.c.bf16 %v2597, %v2594
        %v2613 = vunpack.c.l.b16 %v2611
        %v2614 = vunpack.c.h.b16 %v2611
        %v2615 = vpack.c.b16 %v2613, %v2613
        %v2616 = vpack.c.b16 %v2614, %v2614
        %v2618 = vsel %vm1343, %v2609, 0
        %v2621 = vsel %vm1343, %v2615, 0
        %2623 = vmatprep.subr.bf16.mxu0 0
        %2624 = vmatpush1.bf16.xpose.msra.mxu0 %v2621
        %2625 = vmatprep.subr.bf16.mxu0 0
        %2626 = vmatpush1.bf16.xpose.msra.mxu0 0
        %2627 = vmatprep.subr.bf16.mxu0 0
        %2628 = vmatpush1.bf16.xpose.msra.mxu0 0
        %2629 = vmatprep.subr.bf16.mxu0 0
        %2630 = vmatpush1.bf16.xpose.msra.mxu0 0
        %2631 = vmatprep.subr.bf16.mxu0 0
        %2632 = vmatpush1.bf16.xpose.msra.mxu0 0
        %2633 = vmatprep.subr.bf16.mxu0 0
        %2634 = vmatpush1.bf16.xpose.msra.mxu0 0
        %2635 = vmatprep.subr.bf16.mxu0 0
        %2636 = vmatpush1.bf16.xpose.msra.mxu0 0
        %2637 = vmatprep.subr.bf16.mxu0 0
        %2638 = vmatpush1.bf16.xpose.msra.mxu0 0
        %2639 = vmatprep.subr.bf16.mxu0 0
        %2640 = vmatpush1.bf16.xpose.msra.mxu0 0
        %2641 = vmatprep.subr.bf16.mxu0 0
        %2642 = vmatpush1.bf16.xpose.msra.mxu0 0
        %2643 = vmatprep.subr.bf16.mxu0 0
        %2644 = vmatpush1.bf16.xpose.msra.mxu0 0
        %2645 = vmatprep.subr.bf16.mxu0 0
        %2646 = vmatpush1.bf16.xpose.msra.mxu0 0
        %2647 = vmatprep.subr.bf16.mxu0 0
        %2648 = vmatpush1.bf16.xpose.msra.mxu0 0
        %2649 = vmatprep.subr.bf16.mxu0 0
        %2650 = vmatpush1.bf16.xpose.msra.mxu0 0
        %2651 = vmatprep.subr.bf16.mxu0 0
        %2652 = vmatpush1.bf16.xpose.msra.mxu0 0
        %2653 = vmatprep.subr.bf16.mxu0 0
        %2654 = vmatpush1.bf16.xpose.msra.mxu0 0
        %2655 = vmatprep.mubr.bf16.mxu0 0
        %2656 = vmatmul.mubr.bf16.gmra.mrb[0].mxu0 %v2618
        %v2657 = vpop.f32.mrb[0].mxu0
        %v2658 = vadd.f32 0.0, %v2657
        %v2659 = vpop.f32.mrb[0].mxu0
        %v2660 = vpop.f32.mrb[0].mxu0
        %v2661 = vpop.f32.mrb[0].mxu0
        %2662 = vdwg.mxu0
        %v2664 = vsel %vm1343, %v2610, 0
        %v2667 = vsel %vm1343, %v2616, 0
        %2669 = vmatprep.subr.bf16.mxu0 0
        %2670 = vmatpush1.bf16.xpose.msra.mxu0 %v2667
        %2671 = vmatprep.subr.bf16.mxu0 0
        %2672 = vmatpush1.bf16.xpose.msra.mxu0 0
        %2673 = vmatprep.subr.bf16.mxu0 0
        %2674 = vmatpush1.bf16.xpose.msra.mxu0 0
        %2675 = vmatprep.subr.bf16.mxu0 0
        %2676 = vmatpush1.bf16.xpose.msra.mxu0 0
        %2677 = vmatprep.subr.bf16.mxu0 0
        %2678 = vmatpush1.bf16.xpose.msra.mxu0 0
        %2679 = vmatprep.subr.bf16.mxu0 0
        %2680 = vmatpush1.bf16.xpose.msra.mxu0 0
        %2681 = vmatprep.subr.bf16.mxu0 0
        %2682 = vmatpush1.bf16.xpose.msra.mxu0 0
        %2683 = vmatprep.subr.bf16.mxu0 0
        %2684 = vmatpush1.bf16.xpose.msra.mxu0 0
        %2685 = vmatprep.subr.bf16.mxu0 0
        %2686 = vmatpush1.bf16.xpose.msra.mxu0 0
        %2687 = vmatprep.subr.bf16.mxu0 0
        %2688 = vmatpush1.bf16.xpose.msra.mxu0 0
        %2689 = vmatprep.subr.bf16.mxu0 0
        %2690 = vmatpush1.bf16.xpose.msra.mxu0 0
        %2691 = vmatprep.subr.bf16.mxu0 0
        %2692 = vmatpush1.bf16.xpose.msra.mxu0 0
        %2693 = vmatprep.subr.bf16.mxu0 0
        %2694 = vmatpush1.bf16.xpose.msra.mxu0 0
        %2695 = vmatprep.subr.bf16.mxu0 0
        %2696 = vmatpush1.bf16.xpose.msra.mxu0 0
        %2697 = vmatprep.subr.bf16.mxu0 0
        %2698 = vmatpush1.bf16.xpose.msra.mxu0 0
        %2699 = vmatprep.subr.bf16.mxu0 0
        %2700 = vmatpush1.bf16.xpose.msra.mxu0 0
        %2701 = vmatprep.mubr.bf16.mxu0 0
        %2702 = vmatmul.mubr.bf16.gmra.mrb[0].mxu0 %v2664
        %v2703 = vpop.f32.mrb[0].mxu0
        %v2704 = vadd.f32 0.0, %v2703
        %v2705 = vpop.f32.mrb[0].mxu0
        %v2706 = vpop.f32.mrb[0].mxu0
        %v2707 = vpop.f32.mrb[0].mxu0
        %2708 = vdwg.mxu0
        %v2709 = vsel %vm1343, %v2658, -inf
        %2710 = vmax.xlane.f32.xlu0 %v2709
        %v2711 = vpop.xlane.xlu0 %2710
        %v2712 = vsel %vm1343, %v2704, -inf
        %2713 = vmax.xlane.f32.xlu0 %v2712
        %v2714 = vpop.xlane.xlu0 %2713
        %v2715 = vsub.f32 %v2658, %v2711
        %v2716 = vsub.f32 %v2704, %v2714
        %v2717 = vmul.f32 %v2715, 1.442695
        %v2718 = vpow.pop %v2717
        %v2719 = vmul.f32 %v2716, 1.442695
        %v2720 = vpow.pop %v2719
        %v2721 = vsel %vm1343, %v2718, 0.0
        %2722 = vadd.xlane.f32.xlu0 %v2721
        %v2723 = vpop.xlane.xlu0 %2722
        %v2724 = vsel %vm1343, %v2720, 0.0
        %2725 = vadd.xlane.f32.xlu0 %v2724
        %v2726 = vpop.xlane.xlu0 %2725
        %v2727 = vrcp.pop %v2723
        %v2728 = vrcp.pop %v2726
        %v2729 = vmul.f32 %v2718, %v2727
        %v2730 = vmul.f32 %v2720, %v2728
        %v2731 = vpack.c.bf16 %v2729, %v2729
        %v2732 = vpack.c.bf16 %v2730, %v2730
        %2733 = vrot.lane.b32.xlu0 %v2615, 96
        %v2734 = vpop.permute.xlu0 %2733
        %v2736 = vsel %vm1343, %v2731, 0
        %v2739 = vsel %vm1467, %v2734, 0
        %2741 = vmatprep.subr.bf16.mxu0 0
        %2742 = vmatpush1.bf16.msra.mxu0 %v2739
        %2743 = vmatprep.subr.bf16.mxu0 0
        %2744 = vmatpush1.bf16.msra.mxu0 0
        %2745 = vmatprep.subr.bf16.mxu0 0
        %2746 = vmatpush1.bf16.msra.mxu0 0
        %2747 = vmatprep.subr.bf16.mxu0 0
        %2748 = vmatpush1.bf16.msra.mxu0 0
        %2749 = vmatprep.subr.bf16.mxu0 0
        %2750 = vmatpush1.bf16.msra.mxu0 0
        %2751 = vmatprep.subr.bf16.mxu0 0
        %2752 = vmatpush1.bf16.msra.mxu0 0
        %2753 = vmatprep.subr.bf16.mxu0 0
        %2754 = vmatpush1.bf16.msra.mxu0 0
        %2755 = vmatprep.subr.bf16.mxu0 0
        %2756 = vmatpush1.bf16.msra.mxu0 0
        %2757 = vmatprep.subr.bf16.mxu0 0
        %2758 = vmatpush1.bf16.msra.mxu0 0
        %2759 = vmatprep.subr.bf16.mxu0 0
        %2760 = vmatpush1.bf16.msra.mxu0 0
        %2761 = vmatprep.subr.bf16.mxu0 0
        %2762 = vmatpush1.bf16.msra.mxu0 0
        %2763 = vmatprep.subr.bf16.mxu0 0
        %2764 = vmatpush1.bf16.msra.mxu0 0
        %2765 = vmatprep.subr.bf16.mxu0 0
        %2766 = vmatpush1.bf16.msra.mxu0 0
        %2767 = vmatprep.subr.bf16.mxu0 0
        %2768 = vmatpush1.bf16.msra.mxu0 0
        %2769 = vmatprep.subr.bf16.mxu0 0
        %2770 = vmatpush1.bf16.msra.mxu0 0
        %2771 = vmatprep.subr.bf16.mxu0 0
        %2772 = vmatpush1.bf16.msra.mxu0 0
        %2773 = vmatprep.mubr.bf16.mxu0 0
        %2774 = vmatmul.mubr.bf16.gmra.mrb[0].mxu0 %v2736
        %v2775 = vpop.f32.mrb[0].mxu0
        %v2776 = vadd.f32 0.0, %v2775
        %v2777 = vpop.f32.mrb[0].mxu0
        %v2778 = vpop.f32.mrb[0].mxu0
        %v2779 = vpop.f32.mrb[0].mxu0
        %2780 = vdwg.mxu0
        %2781 = vrot.lane.b32.xlu0 %v2616, 96
        %v2782 = vpop.permute.xlu0 %2781
        %v2784 = vsel %vm1343, %v2732, 0
        %v2787 = vsel %vm1467, %v2782, 0
        %2789 = vmatprep.subr.bf16.mxu0 0
        %2790 = vmatpush1.bf16.msra.mxu0 %v2787
        %2791 = vmatprep.subr.bf16.mxu0 0
        %2792 = vmatpush1.bf16.msra.mxu0 0
        %2793 = vmatprep.subr.bf16.mxu0 0
        %2794 = vmatpush1.bf16.msra.mxu0 0
        %2795 = vmatprep.subr.bf16.mxu0 0
        %2796 = vmatpush1.bf16.msra.mxu0 0
        %2797 = vmatprep.subr.bf16.mxu0 0
        %2798 = vmatpush1.bf16.msra.mxu0 0
        %2799 = vmatprep.subr.bf16.mxu0 0
        %2800 = vmatpush1.bf16.msra.mxu0 0
        %2801 = vmatprep.subr.bf16.mxu0 0
        %2802 = vmatpush1.bf16.msra.mxu0 0
        %2803 = vmatprep.subr.bf16.mxu0 0
        %2804 = vmatpush1.bf16.msra.mxu0 0
        %2805 = vmatprep.subr.bf16.mxu0 0
        %2806 = vmatpush1.bf16.msra.mxu0 0
        %2807 = vmatprep.subr.bf16.mxu0 0
        %2808 = vmatpush1.bf16.msra.mxu0 0
        %2809 = vmatprep.subr.bf16.mxu0 0
        %2810 = vmatpush1.bf16.msra.mxu0 0
        %2811 = vmatprep.subr.bf16.mxu0 0
        %2812 = vmatpush1.bf16.msra.mxu0 0
        %2813 = vmatprep.subr.bf16.mxu0 0
        %2814 = vmatpush1.bf16.msra.mxu0 0
        %2815 = vmatprep.subr.bf16.mxu0 0
        %2816 = vmatpush1.bf16.msra.mxu0 0
        %2817 = vmatprep.subr.bf16.mxu0 0
        %2818 = vmatpush1.bf16.msra.mxu0 0
        %2819 = vmatprep.subr.bf16.mxu0 0
        %2820 = vmatpush1.bf16.msra.mxu0 0
        %2821 = vmatprep.mubr.bf16.mxu0 0
        %2822 = vmatmul.mubr.bf16.gmra.mrb[0].mxu0 %v2784
        %v2823 = vpop.f32.mrb[0].mxu0
        %v2824 = vadd.f32 0.0, %v2823
        %v2825 = vpop.f32.mrb[0].mxu0
        %v2826 = vpop.f32.mrb[0].mxu0
        %v2827 = vpop.f32.mrb[0].mxu0
        %2828 = vdwg.mxu0
        %v2829 = vpack.c.bf16 %v2824, %v2776
        %2830 = vrot.lane.b32.xlu0 %v2609, 120
        %v2831 = vpop.permute.xlu0 %2830
        %2832 = vrot.lane.b32.xlu0 %v2615, 120
        %v2833 = vpop.permute.xlu0 %2832
        %v2835 = vsel %vm1343, %v2831, 0
        %v2838 = vsel %vm1343, %v2833, 0
        %2840 = vmatprep.subr.bf16.mxu0 0
        %2841 = vmatpush1.bf16.xpose.msra.mxu0 %v2838
        %2842 = vmatprep.subr.bf16.mxu0 0
        %2843 = vmatpush1.bf16.xpose.msra.mxu0 0
        %2844 = vmatprep.subr.bf16.mxu0 0
        %2845 = vmatpush1.bf16.xpose.msra.mxu0 0
        %2846 = vmatprep.subr.bf16.mxu0 0
        %2847 = vmatpush1.bf16.xpose.msra.mxu0 0
        %2848 = vmatprep.subr.bf16.mxu0 0
        %2849 = vmatpush1.bf16.xpose.msra.mxu0 0
        %2850 = vmatprep.subr.bf16.mxu0 0
        %2851 = vmatpush1.bf16.xpose.msra.mxu0 0
        %2852 = vmatprep.subr.bf16.mxu0 0
        %2853 = vmatpush1.bf16.xpose.msra.mxu0 0
        %2854 = vmatprep.subr.bf16.mxu0 0
        %2855 = vmatpush1.bf16.xpose.msra.mxu0 0
        %2856 = vmatprep.subr.bf16.mxu0 0
        %2857 = vmatpush1.bf16.xpose.msra.mxu0 0
        %2858 = vmatprep.subr.bf16.mxu0 0
        %2859 = vmatpush1.bf16.xpose.msra.mxu0 0
        %2860 = vmatprep.subr.bf16.mxu0 0
        %2861 = vmatpush1.bf16.xpose.msra.mxu0 0
        %2862 = vmatprep.subr.bf16.mxu0 0
        %2863 = vmatpush1.bf16.xpose.msra.mxu0 0
        %2864 = vmatprep.subr.bf16.mxu0 0
        %2865 = vmatpush1.bf16.xpose.msra.mxu0 0
        %2866 = vmatprep.subr.bf16.mxu0 0
        %2867 = vmatpush1.bf16.xpose.msra.mxu0 0
        %2868 = vmatprep.subr.bf16.mxu0 0
        %2869 = vmatpush1.bf16.xpose.msra.mxu0 0
        %2870 = vmatprep.subr.bf16.mxu0 0
        %2871 = vmatpush1.bf16.xpose.msra.mxu0 0
        %2872 = vmatprep.mubr.bf16.mxu0 0
        %2873 = vmatmul.mubr.bf16.gmra.mrb[0].mxu0 %v2835
        %v2874 = vpop.f32.mrb[0].mxu0
        %v2875 = vadd.f32 0.0, %v2874
        %v2876 = vpop.f32.mrb[0].mxu0
        %v2877 = vpop.f32.mrb[0].mxu0
        %v2878 = vpop.f32.mrb[0].mxu0
        %2879 = vdwg.mxu0
        %2880 = vrot.lane.b32.xlu0 %v2610, 120
        %v2881 = vpop.permute.xlu0 %2880
        %2882 = vrot.lane.b32.xlu0 %v2616, 120
        %v2883 = vpop.permute.xlu0 %2882
        %v2885 = vsel %vm1343, %v2881, 0
        %v2888 = vsel %vm1343, %v2883, 0
        %2890 = vmatprep.subr.bf16.mxu0 0
        %2891 = vmatpush1.bf16.xpose.msra.mxu0 %v2888
        %2892 = vmatprep.subr.bf16.mxu0 0
        %2893 = vmatpush1.bf16.xpose.msra.mxu0 0
        %2894 = vmatprep.subr.bf16.mxu0 0
        %2895 = vmatpush1.bf16.xpose.msra.mxu0 0
        %2896 = vmatprep.subr.bf16.mxu0 0
        %2897 = vmatpush1.bf16.xpose.msra.mxu0 0
        %2898 = vmatprep.subr.bf16.mxu0 0
        %2899 = vmatpush1.bf16.xpose.msra.mxu0 0
        %2900 = vmatprep.subr.bf16.mxu0 0
        %2901 = vmatpush1.bf16.xpose.msra.mxu0 0
        %2902 = vmatprep.subr.bf16.mxu0 0
        %2903 = vmatpush1.bf16.xpose.msra.mxu0 0
        %2904 = vmatprep.subr.bf16.mxu0 0
        %2905 = vmatpush1.bf16.xpose.msra.mxu0 0
        %2906 = vmatprep.subr.bf16.mxu0 0
        %2907 = vmatpush1.bf16.xpose.msra.mxu0 0
        %2908 = vmatprep.subr.bf16.mxu0 0
        %2909 = vmatpush1.bf16.xpose.msra.mxu0 0
        %2910 = vmatprep.subr.bf16.mxu0 0
        %2911 = vmatpush1.bf16.xpose.msra.mxu0 0
        %2912 = vmatprep.subr.bf16.mxu0 0
        %2913 = vmatpush1.bf16.xpose.msra.mxu0 0
        %2914 = vmatprep.subr.bf16.mxu0 0
        %2915 = vmatpush1.bf16.xpose.msra.mxu0 0
        %2916 = vmatprep.subr.bf16.mxu0 0
        %2917 = vmatpush1.bf16.xpose.msra.mxu0 0
        %2918 = vmatprep.subr.bf16.mxu0 0
        %2919 = vmatpush1.bf16.xpose.msra.mxu0 0
        %2920 = vmatprep.subr.bf16.mxu0 0
        %2921 = vmatpush1.bf16.xpose.msra.mxu0 0
        %2922 = vmatprep.mubr.bf16.mxu0 0
        %2923 = vmatmul.mubr.bf16.gmra.mrb[0].mxu0 %v2885
        %v2924 = vpop.f32.mrb[0].mxu0
        %v2925 = vadd.f32 0.0, %v2924
        %v2926 = vpop.f32.mrb[0].mxu0
        %v2927 = vpop.f32.mrb[0].mxu0
        %v2928 = vpop.f32.mrb[0].mxu0
        %2929 = vdwg.mxu0
        %v2930 = vsel %vm1343, %v2875, -inf
        %2931 = vmax.xlane.f32.xlu0 %v2930
        %v2932 = vpop.xlane.xlu0 %2931
        %v2933 = vsel %vm1343, %v2925, -inf
        %2934 = vmax.xlane.f32.xlu0 %v2933
        %v2935 = vpop.xlane.xlu0 %2934
        %v2936 = vsub.f32 %v2875, %v2932
        %v2937 = vsub.f32 %v2925, %v2935
        %v2938 = vmul.f32 %v2936, 1.442695
        %v2939 = vpow.pop %v2938
        %v2940 = vmul.f32 %v2937, 1.442695
        %v2941 = vpow.pop %v2940
        %v2942 = vsel %vm1343, %v2939, 0.0
        %2943 = vadd.xlane.f32.xlu0 %v2942
        %v2944 = vpop.xlane.xlu0 %2943
        %v2945 = vsel %vm1343, %v2941, 0.0
        %2946 = vadd.xlane.f32.xlu0 %v2945
        %v2947 = vpop.xlane.xlu0 %2946
        %v2948 = vrcp.pop %v2944
        %v2949 = vrcp.pop %v2947
        %v2950 = vmul.f32 %v2939, %v2948
        %v2951 = vmul.f32 %v2941, %v2949
        %v2952 = vpack.c.bf16 %v2950, %v2950
        %v2953 = vpack.c.bf16 %v2951, %v2951
        %2954 = vrot.lane.b32.xlu0 %v2615, 88
        %v2955 = vpop.permute.xlu0 %2954
        %v2957 = vsel %vm1343, %v2952, 0
        %v2960 = vsel %vm1467, %v2955, 0
        %2962 = vmatprep.subr.bf16.mxu0 0
        %2963 = vmatpush1.bf16.msra.mxu0 %v2960
        %2964 = vmatprep.subr.bf16.mxu0 0
        %2965 = vmatpush1.bf16.msra.mxu0 0
        %2966 = vmatprep.subr.bf16.mxu0 0
        %2967 = vmatpush1.bf16.msra.mxu0 0
        %2968 = vmatprep.subr.bf16.mxu0 0
        %2969 = vmatpush1.bf16.msra.mxu0 0
        %2970 = vmatprep.subr.bf16.mxu0 0
        %2971 = vmatpush1.bf16.msra.mxu0 0
        %2972 = vmatprep.subr.bf16.mxu0 0
        %2973 = vmatpush1.bf16.msra.mxu0 0
        %2974 = vmatprep.subr.bf16.mxu0 0
        %2975 = vmatpush1.bf16.msra.mxu0 0
        %2976 = vmatprep.subr.bf16.mxu0 0
        %2977 = vmatpush1.bf16.msra.mxu0 0
        %2978 = vmatprep.subr.bf16.mxu0 0
        %2979 = vmatpush1.bf16.msra.mxu0 0
        %2980 = vmatprep.subr.bf16.mxu0 0
        %2981 = vmatpush1.bf16.msra.mxu0 0
        %2982 = vmatprep.subr.bf16.mxu0 0
        %2983 = vmatpush1.bf16.msra.mxu0 0
        %2984 = vmatprep.subr.bf16.mxu0 0
        %2985 = vmatpush1.bf16.msra.mxu0 0
        %2986 = vmatprep.subr.bf16.mxu0 0
        %2987 = vmatpush1.bf16.msra.mxu0 0
        %2988 = vmatprep.subr.bf16.mxu0 0
        %2989 = vmatpush1.bf16.msra.mxu0 0
        %2990 = vmatprep.subr.bf16.mxu0 0
        %2991 = vmatpush1.bf16.msra.mxu0 0
        %2992 = vmatprep.subr.bf16.mxu0 0
        %2993 = vmatpush1.bf16.msra.mxu0 0
        %2994 = vmatprep.mubr.bf16.mxu0 0
        %2995 = vmatmul.mubr.bf16.gmra.mrb[0].mxu0 %v2957
        %v2996 = vpop.f32.mrb[0].mxu0
        %v2997 = vadd.f32 0.0, %v2996
        %v2998 = vpop.f32.mrb[0].mxu0
        %v2999 = vpop.f32.mrb[0].mxu0
        %v3000 = vpop.f32.mrb[0].mxu0
        %3001 = vdwg.mxu0
        %3002 = vrot.lane.b32.xlu0 %v2616, 88
        %v3003 = vpop.permute.xlu0 %3002
        %v3005 = vsel %vm1343, %v2953, 0
        %v3008 = vsel %vm1467, %v3003, 0
        %3010 = vmatprep.subr.bf16.mxu0 0
        %3011 = vmatpush1.bf16.msra.mxu0 %v3008
        %3012 = vmatprep.subr.bf16.mxu0 0
        %3013 = vmatpush1.bf16.msra.mxu0 0
        %3014 = vmatprep.subr.bf16.mxu0 0
        %3015 = vmatpush1.bf16.msra.mxu0 0
        %3016 = vmatprep.subr.bf16.mxu0 0
        %3017 = vmatpush1.bf16.msra.mxu0 0
        %3018 = vmatprep.subr.bf16.mxu0 0
        %3019 = vmatpush1.bf16.msra.mxu0 0
        %3020 = vmatprep.subr.bf16.mxu0 0
        %3021 = vmatpush1.bf16.msra.mxu0 0
        %3022 = vmatprep.subr.bf16.mxu0 0
        %3023 = vmatpush1.bf16.msra.mxu0 0
        %3024 = vmatprep.subr.bf16.mxu0 0
        %3025 = vmatpush1.bf16.msra.mxu0 0
        %3026 = vmatprep.subr.bf16.mxu0 0
        %3027 = vmatpush1.bf16.msra.mxu0 0
        %3028 = vmatprep.subr.bf16.mxu0 0
        %3029 = vmatpush1.bf16.msra.mxu0 0
        %3030 = vmatprep.subr.bf16.mxu0 0
        %3031 = vmatpush1.bf16.msra.mxu0 0
        %3032 = vmatprep.subr.bf16.mxu0 0
        %3033 = vmatpush1.bf16.msra.mxu0 0
        %3034 = vmatprep.subr.bf16.mxu0 0
        %3035 = vmatpush1.bf16.msra.mxu0 0
        %3036 = vmatprep.subr.bf16.mxu0 0
        %3037 = vmatpush1.bf16.msra.mxu0 0
        %3038 = vmatprep.subr.bf16.mxu0 0
        %3039 = vmatpush1.bf16.msra.mxu0 0
        %3040 = vmatprep.subr.bf16.mxu0 0
        %3041 = vmatpush1.bf16.msra.mxu0 0
        %3042 = vmatprep.mubr.bf16.mxu0 0
        %3043 = vmatmul.mubr.bf16.gmra.mrb[0].mxu0 %v3005
        %v3044 = vpop.f32.mrb[0].mxu0
        %v3045 = vadd.f32 0.0, %v3044
        %v3046 = vpop.f32.mrb[0].mxu0
        %v3047 = vpop.f32.mrb[0].mxu0
        %v3048 = vpop.f32.mrb[0].mxu0
        %3049 = vdwg.mxu0
        %v3050 = vpack.c.bf16 %v3045, %v2997
        %v3052 = vsel %vm1343, %v3050, 0
        %v3055 = vsel %vm1467, %v2601, 0
        %3057 = vmatprep.subr.bf16.mxu0 0
        %3058 = vmatpush1.bf16.msra.mxu0 %v3055
        %3059 = vmatprep.subr.bf16.mxu0 0
        %3060 = vmatpush1.bf16.msra.mxu0 0
        %3061 = vmatprep.subr.bf16.mxu0 0
        %3062 = vmatpush1.bf16.msra.mxu0 0
        %3063 = vmatprep.subr.bf16.mxu0 0
        %3064 = vmatpush1.bf16.msra.mxu0 0
        %3065 = vmatprep.subr.bf16.mxu0 0
        %3066 = vmatpush1.bf16.msra.mxu0 0
        %3067 = vmatprep.subr.bf16.mxu0 0
        %3068 = vmatpush1.bf16.msra.mxu0 0
        %3069 = vmatprep.subr.bf16.mxu0 0
        %3070 = vmatpush1.bf16.msra.mxu0 0
        %3071 = vmatprep.subr.bf16.mxu0 0
        %3072 = vmatpush1.bf16.msra.mxu0 0
        %3073 = vmatprep.subr.bf16.mxu0 0
        %3074 = vmatpush1.bf16.msra.mxu0 0
        %3075 = vmatprep.subr.bf16.mxu0 0
        %3076 = vmatpush1.bf16.msra.mxu0 0
        %3077 = vmatprep.subr.bf16.mxu0 0
        %3078 = vmatpush1.bf16.msra.mxu0 0
        %3079 = vmatprep.subr.bf16.mxu0 0
        %3080 = vmatpush1.bf16.msra.mxu0 0
        %3081 = vmatprep.subr.bf16.mxu0 0
        %3082 = vmatpush1.bf16.msra.mxu0 0
        %3083 = vmatprep.subr.bf16.mxu0 0
        %3084 = vmatpush1.bf16.msra.mxu0 0
        %3085 = vmatprep.subr.bf16.mxu0 0
        %3086 = vmatpush1.bf16.msra.mxu0 0
        %3087 = vmatprep.subr.bf16.mxu0 0
        %3088 = vmatpush1.bf16.msra.mxu0 0
        %3089 = vmatprep.mubr.bf16.mxu0 0
        %3090 = vmatmul.mubr.bf16.gmra.mrb[0].mxu0 %v3052
        %v3091 = vpop.f32.mrb[0].mxu0
        %v3092 = vadd.f32 0.0, %v3091
        %v3093 = vpop.f32.mrb[0].mxu0
        %v3094 = vpop.f32.mrb[0].mxu0
        %v3095 = vadd.f32 0.0, %v3094
        %v3096 = vpop.f32.mrb[0].mxu0
        %3097 = vdwg.mxu0
        %v3099 = vsel %vm1343, %v2829, 0
        %v3102 = vsel %vm1467, %v2600, 0
        %3104 = vmatprep.subr.bf16.mxu0 0
        %3105 = vmatpush1.bf16.msra.mxu0 %v3102
        %3106 = vmatprep.subr.bf16.mxu0 0
        %3107 = vmatpush1.bf16.msra.mxu0 0
        %3108 = vmatprep.subr.bf16.mxu0 0
        %3109 = vmatpush1.bf16.msra.mxu0 0
        %3110 = vmatprep.subr.bf16.mxu0 0
        %3111 = vmatpush1.bf16.msra.mxu0 0
        %3112 = vmatprep.subr.bf16.mxu0 0
        %3113 = vmatpush1.bf16.msra.mxu0 0
        %3114 = vmatprep.subr.bf16.mxu0 0
        %3115 = vmatpush1.bf16.msra.mxu0 0
        %3116 = vmatprep.subr.bf16.mxu0 0
        %3117 = vmatpush1.bf16.msra.mxu0 0
        %3118 = vmatprep.subr.bf16.mxu0 0
        %3119 = vmatpush1.bf16.msra.mxu0 0
        %3120 = vmatprep.subr.bf16.mxu0 0
        %3121 = vmatpush1.bf16.msra.mxu0 0
        %3122 = vmatprep.subr.bf16.mxu0 0
        %3123 = vmatpush1.bf16.msra.mxu0 0
        %3124 = vmatprep.subr.bf16.mxu0 0
        %3125 = vmatpush1.bf16.msra.mxu0 0
        %3126 = vmatprep.subr.bf16.mxu0 0
        %3127 = vmatpush1.bf16.msra.mxu0 0
        %3128 = vmatprep.subr.bf16.mxu0 0
        %3129 = vmatpush1.bf16.msra.mxu0 0
        %3130 = vmatprep.subr.bf16.mxu0 0
        %3131 = vmatpush1.bf16.msra.mxu0 0
        %3132 = vmatprep.subr.bf16.mxu0 0
        %3133 = vmatpush1.bf16.msra.mxu0 0
        %3134 = vmatprep.subr.bf16.mxu0 0
        %3135 = vmatpush1.bf16.msra.mxu0 0
        %3136 = vmatprep.mubr.bf16.mxu0 0
        %3137 = vmatmul.mubr.bf16.gmra.mrb[0].mxu0 %v3099
        %v3138 = vpop.f32.mrb[0].mxu0
        %v3139 = vadd.f32 %v3092, %v3138
        %v3140 = vpop.f32.mrb[0].mxu0
        %v3141 = vpop.f32.mrb[0].mxu0
        %v3142 = vadd.f32 %v3095, %v3141
        %v3143 = vpop.f32.mrb[0].mxu0
        %3144 = vdwg.mxu0
        %3145 = vrot.lane.b32.xlu0 %v2609, 112
        %v3146 = vpop.permute.xlu0 %3145
        %3147 = vrot.lane.b32.xlu0 %v2615, 112
        %v3148 = vpop.permute.xlu0 %3147
        %v3150 = vsel %vm1343, %v3146, 0
        %v3153 = vsel %vm1343, %v3148, 0
        %3155 = vmatprep.subr.bf16.mxu0 0
        %3156 = vmatpush1.bf16.xpose.msra.mxu0 %v3153
        %3157 = vmatprep.subr.bf16.mxu0 0
        %3158 = vmatpush1.bf16.xpose.msra.mxu0 0
        %3159 = vmatprep.subr.bf16.mxu0 0
        %3160 = vmatpush1.bf16.xpose.msra.mxu0 0
        %3161 = vmatprep.subr.bf16.mxu0 0
        %3162 = vmatpush1.bf16.xpose.msra.mxu0 0
        %3163 = vmatprep.subr.bf16.mxu0 0
        %3164 = vmatpush1.bf16.xpose.msra.mxu0 0
        %3165 = vmatprep.subr.bf16.mxu0 0
        %3166 = vmatpush1.bf16.xpose.msra.mxu0 0
        %3167 = vmatprep.subr.bf16.mxu0 0
        %3168 = vmatpush1.bf16.xpose.msra.mxu0 0
        %3169 = vmatprep.subr.bf16.mxu0 0
        %3170 = vmatpush1.bf16.xpose.msra.mxu0 0
        %3171 = vmatprep.subr.bf16.mxu0 0
        %3172 = vmatpush1.bf16.xpose.msra.mxu0 0
        %3173 = vmatprep.subr.bf16.mxu0 0
        %3174 = vmatpush1.bf16.xpose.msra.mxu0 0
        %3175 = vmatprep.subr.bf16.mxu0 0
        %3176 = vmatpush1.bf16.xpose.msra.mxu0 0
        %3177 = vmatprep.subr.bf16.mxu0 0
        %3178 = vmatpush1.bf16.xpose.msra.mxu0 0
        %3179 = vmatprep.subr.bf16.mxu0 0
        %3180 = vmatpush1.bf16.xpose.msra.mxu0 0
        %3181 = vmatprep.subr.bf16.mxu0 0
        %3182 = vmatpush1.bf16.xpose.msra.mxu0 0
        %3183 = vmatprep.subr.bf16.mxu0 0
        %3184 = vmatpush1.bf16.xpose.msra.mxu0 0
        %3185 = vmatprep.subr.bf16.mxu0 0
        %3186 = vmatpush1.bf16.xpose.msra.mxu0 0
        %3187 = vmatprep.mubr.bf16.mxu0 0
        %3188 = vmatmul.mubr.bf16.gmra.mrb[0].mxu0 %v3150
        %v3189 = vpop.f32.mrb[0].mxu0
        %v3190 = vadd.f32 0.0, %v3189
        %v3191 = vpop.f32.mrb[0].mxu0
        %v3192 = vpop.f32.mrb[0].mxu0
        %v3193 = vpop.f32.mrb[0].mxu0
        %3194 = vdwg.mxu0
        %3195 = vrot.lane.b32.xlu0 %v2610, 112
        %v3196 = vpop.permute.xlu0 %3195
        %3197 = vrot.lane.b32.xlu0 %v2616, 112
        %v3198 = vpop.permute.xlu0 %3197
        %v3200 = vsel %vm1343, %v3196, 0
        %v3203 = vsel %vm1343, %v3198, 0
        %3205 = vmatprep.subr.bf16.mxu0 0
        %3206 = vmatpush1.bf16.xpose.msra.mxu0 %v3203
        %3207 = vmatprep.subr.bf16.mxu0 0
        %3208 = vmatpush1.bf16.xpose.msra.mxu0 0
        %3209 = vmatprep.subr.bf16.mxu0 0
        %3210 = vmatpush1.bf16.xpose.msra.mxu0 0
        %3211 = vmatprep.subr.bf16.mxu0 0
        %3212 = vmatpush1.bf16.xpose.msra.mxu0 0
        %3213 = vmatprep.subr.bf16.mxu0 0
        %3214 = vmatpush1.bf16.xpose.msra.mxu0 0
        %3215 = vmatprep.subr.bf16.mxu0 0
        %3216 = vmatpush1.bf16.xpose.msra.mxu0 0
        %3217 = vmatprep.subr.bf16.mxu0 0
        %3218 = vmatpush1.bf16.xpose.msra.mxu0 0
        %3219 = vmatprep.subr.bf16.mxu0 0
        %3220 = vmatpush1.bf16.xpose.msra.mxu0 0
        %3221 = vmatprep.subr.bf16.mxu0 0
        %3222 = vmatpush1.bf16.xpose.msra.mxu0 0
        %3223 = vmatprep.subr.bf16.mxu0 0
        %3224 = vmatpush1.bf16.xpose.msra.mxu0 0
        %3225 = vmatprep.subr.bf16.mxu0 0
        %3226 = vmatpush1.bf16.xpose.msra.mxu0 0
        %3227 = vmatprep.subr.bf16.mxu0 0
        %3228 = vmatpush1.bf16.xpose.msra.mxu0 0
        %3229 = vmatprep.subr.bf16.mxu0 0
        %3230 = vmatpush1.bf16.xpose.msra.mxu0 0
        %3231 = vmatprep.subr.bf16.mxu0 0
        %3232 = vmatpush1.bf16.xpose.msra.mxu0 0
        %3233 = vmatprep.subr.bf16.mxu0 0
        %3234 = vmatpush1.bf16.xpose.msra.mxu0 0
        %3235 = vmatprep.subr.bf16.mxu0 0
        %3236 = vmatpush1.bf16.xpose.msra.mxu0 0
        %3237 = vmatprep.mubr.bf16.mxu0 0
        %3238 = vmatmul.mubr.bf16.gmra.mrb[0].mxu0 %v3200
        %v3239 = vpop.f32.mrb[0].mxu0
        %v3240 = vadd.f32 0.0, %v3239
        %v3241 = vpop.f32.mrb[0].mxu0
        %v3242 = vpop.f32.mrb[0].mxu0
        %v3243 = vpop.f32.mrb[0].mxu0
        %3244 = vdwg.mxu0
        %v3245 = vsel %vm1343, %v3190, -inf
        %3246 = vmax.xlane.f32.xlu0 %v3245
        %v3247 = vpop.xlane.xlu0 %3246
        %v3248 = vsel %vm1343, %v3240, -inf
        %3249 = vmax.xlane.f32.xlu0 %v3248
        %v3250 = vpop.xlane.xlu0 %3249
        %v3251 = vsub.f32 %v3190, %v3247
        %v3252 = vsub.f32 %v3240, %v3250
        %v3253 = vmul.f32 %v3251, 1.442695
        %v3254 = vpow.pop %v3253
        %v3255 = vmul.f32 %v3252, 1.442695
        %v3256 = vpow.pop %v3255
        %v3257 = vsel %vm1343, %v3254, 0.0
        %3258 = vadd.xlane.f32.xlu0 %v3257
        %v3259 = vpop.xlane.xlu0 %3258
        %v3260 = vsel %vm1343, %v3256, 0.0
        %3261 = vadd.xlane.f32.xlu0 %v3260
        %v3262 = vpop.xlane.xlu0 %3261
        %v3263 = vrcp.pop %v3259
        %v3264 = vrcp.pop %v3262
        %v3265 = vmul.f32 %v3254, %v3263
        %v3266 = vmul.f32 %v3256, %v3264
        %v3267 = vpack.c.bf16 %v3265, %v3265
        %v3268 = vpack.c.bf16 %v3266, %v3266
        %3269 = vrot.lane.b32.xlu0 %v2615, 80
        %v3270 = vpop.permute.xlu0 %3269
        %v3272 = vsel %vm1343, %v3267, 0
        %v3275 = vsel %vm1467, %v3270, 0
        %3277 = vmatprep.subr.bf16.mxu0 0
        %3278 = vmatpush1.bf16.msra.mxu0 %v3275
        %3279 = vmatprep.subr.bf16.mxu0 0
        %3280 = vmatpush1.bf16.msra.mxu0 0
        %3281 = vmatprep.subr.bf16.mxu0 0
        %3282 = vmatpush1.bf16.msra.mxu0 0
        %3283 = vmatprep.subr.bf16.mxu0 0
        %3284 = vmatpush1.bf16.msra.mxu0 0
        %3285 = vmatprep.subr.bf16.mxu0 0
        %3286 = vmatpush1.bf16.msra.mxu0 0
        %3287 = vmatprep.subr.bf16.mxu0 0
        %3288 = vmatpush1.bf16.msra.mxu0 0
        %3289 = vmatprep.subr.bf16.mxu0 0
        %3290 = vmatpush1.bf16.msra.mxu0 0
        %3291 = vmatprep.subr.bf16.mxu0 0
        %3292 = vmatpush1.bf16.msra.mxu0 0
        %3293 = vmatprep.subr.bf16.mxu0 0
        %3294 = vmatpush1.bf16.msra.mxu0 0
        %3295 = vmatprep.subr.bf16.mxu0 0
        %3296 = vmatpush1.bf16.msra.mxu0 0
        %3297 = vmatprep.subr.bf16.mxu0 0
        %3298 = vmatpush1.bf16.msra.mxu0 0
        %3299 = vmatprep.subr.bf16.mxu0 0
        %3300 = vmatpush1.bf16.msra.mxu0 0
        %3301 = vmatprep.subr.bf16.mxu0 0
        %3302 = vmatpush1.bf16.msra.mxu0 0
        %3303 = vmatprep.subr.bf16.mxu0 0
        %3304 = vmatpush1.bf16.msra.mxu0 0
        %3305 = vmatprep.subr.bf16.mxu0 0
        %3306 = vmatpush1.bf16.msra.mxu0 0
        %3307 = vmatprep.subr.bf16.mxu0 0
        %3308 = vmatpush1.bf16.msra.mxu0 0
        %3309 = vmatprep.mubr.bf16.mxu0 0
        %3310 = vmatmul.mubr.bf16.gmra.mrb[0].mxu0 %v3272
        %v3311 = vpop.f32.mrb[0].mxu0
        %v3312 = vadd.f32 0.0, %v3311
        %v3313 = vpop.f32.mrb[0].mxu0
        %v3314 = vpop.f32.mrb[0].mxu0
        %v3315 = vpop.f32.mrb[0].mxu0
        %3316 = vdwg.mxu0
        %3317 = vrot.lane.b32.xlu0 %v2616, 80
        %v3318 = vpop.permute.xlu0 %3317
        %v3320 = vsel %vm1343, %v3268, 0
        %v3323 = vsel %vm1467, %v3318, 0
        %3325 = vmatprep.subr.bf16.mxu0 0
        %3326 = vmatpush1.bf16.msra.mxu0 %v3323
        %3327 = vmatprep.subr.bf16.mxu0 0
        %3328 = vmatpush1.bf16.msra.mxu0 0
        %3329 = vmatprep.subr.bf16.mxu0 0
        %3330 = vmatpush1.bf16.msra.mxu0 0
        %3331 = vmatprep.subr.bf16.mxu0 0
        %3332 = vmatpush1.bf16.msra.mxu0 0
        %3333 = vmatprep.subr.bf16.mxu0 0
        %3334 = vmatpush1.bf16.msra.mxu0 0
        %3335 = vmatprep.subr.bf16.mxu0 0
        %3336 = vmatpush1.bf16.msra.mxu0 0
        %3337 = vmatprep.subr.bf16.mxu0 0
        %3338 = vmatpush1.bf16.msra.mxu0 0
        %3339 = vmatprep.subr.bf16.mxu0 0
        %3340 = vmatpush1.bf16.msra.mxu0 0
        %3341 = vmatprep.subr.bf16.mxu0 0
        %3342 = vmatpush1.bf16.msra.mxu0 0
        %3343 = vmatprep.subr.bf16.mxu0 0
        %3344 = vmatpush1.bf16.msra.mxu0 0
        %3345 = vmatprep.subr.bf16.mxu0 0
        %3346 = vmatpush1.bf16.msra.mxu0 0
        %3347 = vmatprep.subr.bf16.mxu0 0
        %3348 = vmatpush1.bf16.msra.mxu0 0
        %3349 = vmatprep.subr.bf16.mxu0 0
        %3350 = vmatpush1.bf16.msra.mxu0 0
        %3351 = vmatprep.subr.bf16.mxu0 0
        %3352 = vmatpush1.bf16.msra.mxu0 0
        %3353 = vmatprep.subr.bf16.mxu0 0
        %3354 = vmatpush1.bf16.msra.mxu0 0
        %3355 = vmatprep.subr.bf16.mxu0 0
        %3356 = vmatpush1.bf16.msra.mxu0 0
        %3357 = vmatprep.mubr.bf16.mxu0 0
        %3358 = vmatmul.mubr.bf16.gmra.mrb[0].mxu0 %v3320
        %v3359 = vpop.f32.mrb[0].mxu0
        %v3360 = vadd.f32 0.0, %v3359
        %v3361 = vpop.f32.mrb[0].mxu0
        %v3362 = vpop.f32.mrb[0].mxu0
        %v3363 = vpop.f32.mrb[0].mxu0
        %3364 = vdwg.mxu0
        %v3365 = vpack.c.bf16 %v3360, %v3312
        %v3367 = vsel %vm1343, %v3365, 0
        %v3370 = vsel %vm1467, %v2602, 0
        %3372 = vmatprep.subr.bf16.mxu0 0
        %3373 = vmatpush1.bf16.msra.mxu0 %v3370
        %3374 = vmatprep.subr.bf16.mxu0 0
        %3375 = vmatpush1.bf16.msra.mxu0 0
        %3376 = vmatprep.subr.bf16.mxu0 0
        %3377 = vmatpush1.bf16.msra.mxu0 0
        %3378 = vmatprep.subr.bf16.mxu0 0
        %3379 = vmatpush1.bf16.msra.mxu0 0
        %3380 = vmatprep.subr.bf16.mxu0 0
        %3381 = vmatpush1.bf16.msra.mxu0 0
        %3382 = vmatprep.subr.bf16.mxu0 0
        %3383 = vmatpush1.bf16.msra.mxu0 0
        %3384 = vmatprep.subr.bf16.mxu0 0
        %3385 = vmatpush1.bf16.msra.mxu0 0
        %3386 = vmatprep.subr.bf16.mxu0 0
        %3387 = vmatpush1.bf16.msra.mxu0 0
        %3388 = vmatprep.subr.bf16.mxu0 0
        %3389 = vmatpush1.bf16.msra.mxu0 0
        %3390 = vmatprep.subr.bf16.mxu0 0
        %3391 = vmatpush1.bf16.msra.mxu0 0
        %3392 = vmatprep.subr.bf16.mxu0 0
        %3393 = vmatpush1.bf16.msra.mxu0 0
        %3394 = vmatprep.subr.bf16.mxu0 0
        %3395 = vmatpush1.bf16.msra.mxu0 0
        %3396 = vmatprep.subr.bf16.mxu0 0
        %3397 = vmatpush1.bf16.msra.mxu0 0
        %3398 = vmatprep.subr.bf16.mxu0 0
        %3399 = vmatpush1.bf16.msra.mxu0 0
        %3400 = vmatprep.subr.bf16.mxu0 0
        %3401 = vmatpush1.bf16.msra.mxu0 0
        %3402 = vmatprep.subr.bf16.mxu0 0
        %3403 = vmatpush1.bf16.msra.mxu0 0
        %3404 = vmatprep.mubr.bf16.mxu0 0
        %3405 = vmatmul.mubr.bf16.gmra.mrb[0].mxu0 %v3367
        %v3406 = vpop.f32.mrb[0].mxu0
        %v3407 = vadd.f32 0.0, %v3406
        %v3408 = vpop.f32.mrb[0].mxu0
        %v3409 = vpop.f32.mrb[0].mxu0
        %v3410 = vadd.f32 0.0, %v3409
        %v3411 = vpop.f32.mrb[0].mxu0
        %3412 = vdwg.mxu0
        %v3413 = vadd.f32 %v3139, %v3407
        %v3414 = vadd.f32 %v3142, %v3410
        %3415 = vrot.lane.b32.xlu0 %v2609, 104
        %v3416 = vpop.permute.xlu0 %3415
        %3417 = vrot.lane.b32.xlu0 %v2615, 104
        %v3418 = vpop.permute.xlu0 %3417
        %v3420 = vsel %vm1343, %v3416, 0
        %v3423 = vsel %vm1343, %v3418, 0
        %3425 = vmatprep.subr.bf16.mxu0 0
        %3426 = vmatpush1.bf16.xpose.msra.mxu0 %v3423
        %3427 = vmatprep.subr.bf16.mxu0 0
        %3428 = vmatpush1.bf16.xpose.msra.mxu0 0
        %3429 = vmatprep.subr.bf16.mxu0 0
        %3430 = vmatpush1.bf16.xpose.msra.mxu0 0
        %3431 = vmatprep.subr.bf16.mxu0 0
        %3432 = vmatpush1.bf16.xpose.msra.mxu0 0
        %3433 = vmatprep.subr.bf16.mxu0 0
        %3434 = vmatpush1.bf16.xpose.msra.mxu0 0
        %3435 = vmatprep.subr.bf16.mxu0 0
        %3436 = vmatpush1.bf16.xpose.msra.mxu0 0
        %3437 = vmatprep.subr.bf16.mxu0 0
        %3438 = vmatpush1.bf16.xpose.msra.mxu0 0
        %3439 = vmatprep.subr.bf16.mxu0 0
        %3440 = vmatpush1.bf16.xpose.msra.mxu0 0
        %3441 = vmatprep.subr.bf16.mxu0 0
        %3442 = vmatpush1.bf16.xpose.msra.mxu0 0
        %3443 = vmatprep.subr.bf16.mxu0 0
        %3444 = vmatpush1.bf16.xpose.msra.mxu0 0
        %3445 = vmatprep.subr.bf16.mxu0 0
        %3446 = vmatpush1.bf16.xpose.msra.mxu0 0
        %3447 = vmatprep.subr.bf16.mxu0 0
        %3448 = vmatpush1.bf16.xpose.msra.mxu0 0
        %3449 = vmatprep.subr.bf16.mxu0 0
        %3450 = vmatpush1.bf16.xpose.msra.mxu0 0
        %3451 = vmatprep.subr.bf16.mxu0 0
        %3452 = vmatpush1.bf16.xpose.msra.mxu0 0
        %3453 = vmatprep.subr.bf16.mxu0 0
        %3454 = vmatpush1.bf16.xpose.msra.mxu0 0
        %3455 = vmatprep.subr.bf16.mxu0 0
        %3456 = vmatpush1.bf16.xpose.msra.mxu0 0
        %3457 = vmatprep.mubr.bf16.mxu0 0
        %3458 = vmatmul.mubr.bf16.gmra.mrb[0].mxu0 %v3420
        %v3459 = vpop.f32.mrb[0].mxu0
        %v3460 = vadd.f32 0.0, %v3459
        %v3461 = vpop.f32.mrb[0].mxu0
        %v3462 = vpop.f32.mrb[0].mxu0
        %v3463 = vpop.f32.mrb[0].mxu0
        %3464 = vdwg.mxu0
        %3465 = vrot.lane.b32.xlu0 %v2610, 104
        %v3466 = vpop.permute.xlu0 %3465
        %3467 = vrot.lane.b32.xlu0 %v2616, 104
        %v3468 = vpop.permute.xlu0 %3467
        %v3470 = vsel %vm1343, %v3466, 0
        %v3473 = vsel %vm1343, %v3468, 0
        %3475 = vmatprep.subr.bf16.mxu0 0
        %3476 = vmatpush1.bf16.xpose.msra.mxu0 %v3473
        %3477 = vmatprep.subr.bf16.mxu0 0
        %3478 = vmatpush1.bf16.xpose.msra.mxu0 0
        %3479 = vmatprep.subr.bf16.mxu0 0
        %3480 = vmatpush1.bf16.xpose.msra.mxu0 0
        %3481 = vmatprep.subr.bf16.mxu0 0
        %3482 = vmatpush1.bf16.xpose.msra.mxu0 0
        %3483 = vmatprep.subr.bf16.mxu0 0
        %3484 = vmatpush1.bf16.xpose.msra.mxu0 0
        %3485 = vmatprep.subr.bf16.mxu0 0
        %3486 = vmatpush1.bf16.xpose.msra.mxu0 0
        %3487 = vmatprep.subr.bf16.mxu0 0
        %3488 = vmatpush1.bf16.xpose.msra.mxu0 0
        %3489 = vmatprep.subr.bf16.mxu0 0
        %3490 = vmatpush1.bf16.xpose.msra.mxu0 0
        %3491 = vmatprep.subr.bf16.mxu0 0
        %3492 = vmatpush1.bf16.xpose.msra.mxu0 0
        %3493 = vmatprep.subr.bf16.mxu0 0
        %3494 = vmatpush1.bf16.xpose.msra.mxu0 0
        %3495 = vmatprep.subr.bf16.mxu0 0
        %3496 = vmatpush1.bf16.xpose.msra.mxu0 0
        %3497 = vmatprep.subr.bf16.mxu0 0
        %3498 = vmatpush1.bf16.xpose.msra.mxu0 0
        %3499 = vmatprep.subr.bf16.mxu0 0
        %3500 = vmatpush1.bf16.xpose.msra.mxu0 0
        %3501 = vmatprep.subr.bf16.mxu0 0
        %3502 = vmatpush1.bf16.xpose.msra.mxu0 0
        %3503 = vmatprep.subr.bf16.mxu0 0
        %3504 = vmatpush1.bf16.xpose.msra.mxu0 0
        %3505 = vmatprep.subr.bf16.mxu0 0
        %3506 = vmatpush1.bf16.xpose.msra.mxu0 0
        %3507 = vmatprep.mubr.bf16.mxu0 0
        %3508 = vmatmul.mubr.bf16.gmra.mrb[0].mxu0 %v3470
        %v3509 = vpop.f32.mrb[0].mxu0
        %v3510 = vadd.f32 0.0, %v3509
        %v3511 = vpop.f32.mrb[0].mxu0
        %v3512 = vpop.f32.mrb[0].mxu0
        %v3513 = vpop.f32.mrb[0].mxu0
        %3514 = vdwg.mxu0
        %v3515 = vsel %vm1343, %v3460, -inf
        %3516 = vmax.xlane.f32.xlu0 %v3515
        %v3517 = vpop.xlane.xlu0 %3516
        %v3518 = vsel %vm1343, %v3510, -inf
        %3519 = vmax.xlane.f32.xlu0 %v3518
        %v3520 = vpop.xlane.xlu0 %3519
        %v3521 = vsub.f32 %v3460, %v3517
        %v3522 = vsub.f32 %v3510, %v3520
        %v3523 = vmul.f32 %v3521, 1.442695
        %v3524 = vpow.pop %v3523
        %v3525 = vmul.f32 %v3522, 1.442695
        %v3526 = vpow.pop %v3525
        %v3527 = vsel %vm1343, %v3524, 0.0
        %3528 = vadd.xlane.f32.xlu0 %v3527
        %v3529 = vpop.xlane.xlu0 %3528
        %v3530 = vsel %vm1343, %v3526, 0.0
        %3531 = vadd.xlane.f32.xlu0 %v3530
        %v3532 = vpop.xlane.xlu0 %3531
        %v3533 = vrcp.pop %v3529
        %v3534 = vrcp.pop %v3532
        %v3535 = vmul.f32 %v3524, %v3533
        %v3536 = vmul.f32 %v3526, %v3534
        %v3537 = vpack.c.bf16 %v3535, %v3535
        %v3538 = vpack.c.bf16 %v3536, %v3536
        %3539 = vrot.lane.b32.xlu0 %v2615, 72
        %v3540 = vpop.permute.xlu0 %3539
        %v3542 = vsel %vm1343, %v3537, 0
        %v3545 = vsel %vm1467, %v3540, 0
        %3547 = vmatprep.subr.bf16.mxu0 0
        %3548 = vmatpush1.bf16.msra.mxu0 %v3545
        %3549 = vmatprep.subr.bf16.mxu0 0
        %3550 = vmatpush1.bf16.msra.mxu0 0
        %3551 = vmatprep.subr.bf16.mxu0 0
        %3552 = vmatpush1.bf16.msra.mxu0 0
        %3553 = vmatprep.subr.bf16.mxu0 0
        %3554 = vmatpush1.bf16.msra.mxu0 0
        %3555 = vmatprep.subr.bf16.mxu0 0
        %3556 = vmatpush1.bf16.msra.mxu0 0
        %3557 = vmatprep.subr.bf16.mxu0 0
        %3558 = vmatpush1.bf16.msra.mxu0 0
        %3559 = vmatprep.subr.bf16.mxu0 0
        %3560 = vmatpush1.bf16.msra.mxu0 0
        %3561 = vmatprep.subr.bf16.mxu0 0
        %3562 = vmatpush1.bf16.msra.mxu0 0
        %3563 = vmatprep.subr.bf16.mxu0 0
        %3564 = vmatpush1.bf16.msra.mxu0 0
        %3565 = vmatprep.subr.bf16.mxu0 0
        %3566 = vmatpush1.bf16.msra.mxu0 0
        %3567 = vmatprep.subr.bf16.mxu0 0
        %3568 = vmatpush1.bf16.msra.mxu0 0
        %3569 = vmatprep.subr.bf16.mxu0 0
        %3570 = vmatpush1.bf16.msra.mxu0 0
        %3571 = vmatprep.subr.bf16.mxu0 0
        %3572 = vmatpush1.bf16.msra.mxu0 0
        %3573 = vmatprep.subr.bf16.mxu0 0
        %3574 = vmatpush1.bf16.msra.mxu0 0
        %3575 = vmatprep.subr.bf16.mxu0 0
        %3576 = vmatpush1.bf16.msra.mxu0 0
        %3577 = vmatprep.subr.bf16.mxu0 0
        %3578 = vmatpush1.bf16.msra.mxu0 0
        %3579 = vmatprep.mubr.bf16.mxu0 0
        %3580 = vmatmul.mubr.bf16.gmra.mrb[0].mxu0 %v3542
        %v3581 = vpop.f32.mrb[0].mxu0
        %v3582 = vadd.f32 0.0, %v3581
        %v3583 = vpop.f32.mrb[0].mxu0
        %v3584 = vpop.f32.mrb[0].mxu0
        %v3585 = vpop.f32.mrb[0].mxu0
        %3586 = vdwg.mxu0
        %3587 = vrot.lane.b32.xlu0 %v2616, 72
        %v3588 = vpop.permute.xlu0 %3587
        %v3590 = vsel %vm1343, %v3538, 0
        %v3593 = vsel %vm1467, %v3588, 0
        %3595 = vmatprep.subr.bf16.mxu0 0
        %3596 = vmatpush1.bf16.msra.mxu0 %v3593
        %3597 = vmatprep.subr.bf16.mxu0 0
        %3598 = vmatpush1.bf16.msra.mxu0 0
        %3599 = vmatprep.subr.bf16.mxu0 0
        %3600 = vmatpush1.bf16.msra.mxu0 0
        %3601 = vmatprep.subr.bf16.mxu0 0
        %3602 = vmatpush1.bf16.msra.mxu0 0
        %3603 = vmatprep.subr.bf16.mxu0 0
        %3604 = vmatpush1.bf16.msra.mxu0 0
        %3605 = vmatprep.subr.bf16.mxu0 0
        %3606 = vmatpush1.bf16.msra.mxu0 0
        %3607 = vmatprep.subr.bf16.mxu0 0
        %3608 = vmatpush1.bf16.msra.mxu0 0
        %3609 = vmatprep.subr.bf16.mxu0 0
        %3610 = vmatpush1.bf16.msra.mxu0 0
        %3611 = vmatprep.subr.bf16.mxu0 0
        %3612 = vmatpush1.bf16.msra.mxu0 0
        %3613 = vmatprep.subr.bf16.mxu0 0
        %3614 = vmatpush1.bf16.msra.mxu0 0
        %3615 = vmatprep.subr.bf16.mxu0 0
        %3616 = vmatpush1.bf16.msra.mxu0 0
        %3617 = vmatprep.subr.bf16.mxu0 0
        %3618 = vmatpush1.bf16.msra.mxu0 0
        %3619 = vmatprep.subr.bf16.mxu0 0
        %3620 = vmatpush1.bf16.msra.mxu0 0
        %3621 = vmatprep.subr.bf16.mxu0 0
        %3622 = vmatpush1.bf16.msra.mxu0 0
        %3623 = vmatprep.subr.bf16.mxu0 0
        %3624 = vmatpush1.bf16.msra.mxu0 0
        %3625 = vmatprep.subr.bf16.mxu0 0
        %3626 = vmatpush1.bf16.msra.mxu0 0
        %3627 = vmatprep.mubr.bf16.mxu0 0
        %3628 = vmatmul.mubr.bf16.gmra.mrb[0].mxu0 %v3590
        %v3629 = vpop.f32.mrb[0].mxu0
        %v3630 = vadd.f32 0.0, %v3629
        %v3631 = vpop.f32.mrb[0].mxu0
        %v3632 = vpop.f32.mrb[0].mxu0
        %v3633 = vpop.f32.mrb[0].mxu0
        %3634 = vdwg.mxu0
        %v3635 = vpack.c.bf16 %v3630, %v3582
        %v3637 = vsel %vm1343, %v3635, 0
        %v3640 = vsel %vm1467, %v2603, 0
        %3642 = vmatprep.subr.bf16.mxu0 0
        %3643 = vmatpush1.bf16.msra.mxu0 %v3640
        %3644 = vmatprep.subr.bf16.mxu0 0
        %3645 = vmatpush1.bf16.msra.mxu0 0
        %3646 = vmatprep.subr.bf16.mxu0 0
        %3647 = vmatpush1.bf16.msra.mxu0 0
        %3648 = vmatprep.subr.bf16.mxu0 0
        %3649 = vmatpush1.bf16.msra.mxu0 0
        %3650 = vmatprep.subr.bf16.mxu0 0
        %3651 = vmatpush1.bf16.msra.mxu0 0
        %3652 = vmatprep.subr.bf16.mxu0 0
        %3653 = vmatpush1.bf16.msra.mxu0 0
        %3654 = vmatprep.subr.bf16.mxu0 0
        %3655 = vmatpush1.bf16.msra.mxu0 0
        %3656 = vmatprep.subr.bf16.mxu0 0
        %3657 = vmatpush1.bf16.msra.mxu0 0
        %3658 = vmatprep.subr.bf16.mxu0 0
        %3659 = vmatpush1.bf16.msra.mxu0 0
        %3660 = vmatprep.subr.bf16.mxu0 0
        %3661 = vmatpush1.bf16.msra.mxu0 0
        %3662 = vmatprep.subr.bf16.mxu0 0
        %3663 = vmatpush1.bf16.msra.mxu0 0
        %3664 = vmatprep.subr.bf16.mxu0 0
        %3665 = vmatpush1.bf16.msra.mxu0 0
        %3666 = vmatprep.subr.bf16.mxu0 0
        %3667 = vmatpush1.bf16.msra.mxu0 0
        %3668 = vmatprep.subr.bf16.mxu0 0
        %3669 = vmatpush1.bf16.msra.mxu0 0
        %3670 = vmatprep.subr.bf16.mxu0 0
        %3671 = vmatpush1.bf16.msra.mxu0 0
        %3672 = vmatprep.subr.bf16.mxu0 0
        %3673 = vmatpush1.bf16.msra.mxu0 0
        %3674 = vmatprep.mubr.bf16.mxu0 0
        %3675 = vmatmul.mubr.bf16.gmra.mrb[0].mxu0 %v3637
        %v3676 = vpop.f32.mrb[0].mxu0
        %v3677 = vadd.f32 0.0, %v3676
        %v3678 = vpop.f32.mrb[0].mxu0
        %v3679 = vpop.f32.mrb[0].mxu0
        %v3680 = vadd.f32 0.0, %v3679
        %v3681 = vpop.f32.mrb[0].mxu0
        %3682 = vdwg.mxu0
        %v3683 = vadd.f32 %v3413, %v3677
        %v3684 = vadd.f32 %v3414, %v3680
        %v3686 = vlaneseq
        %v3687 = vshrl.u32 %v3686, 7
        %v3688 = vsub.s32 0, %v3687
        %v3689 = vrot.slane %v2604, %v3688
        %v3691 = vadd.f32 %v3683, %v3689
        %v3692 = vadd.f32 %v3684, %v3689
        %v3693 = vadd.f32 %v3691, %v2462
        %v3694 = vadd.f32 %v3692, %v2463
        %v3695 = vsel %vm1285, %v3693, 0.0
        %3696 = vadd.xlane.f32.xlu0 %v3695
        %v3697 = vpop.xlane.xlu0 %3696
        %v3698 = vsel %vm1285, %v3694, 0.0
        %3699 = vadd.xlane.f32.xlu0 %v3698
        %v3700 = vpop.xlane.xlu0 %3699
        %v3701 = vmul.f32 %v3697, %v2431
        %v3702 = vmul.f32 %v3700, %v2431
        %v3703 = vsub.f32 %v3693, %v3701
        %v3704 = vsub.f32 %v3694, %v3702
        %v3705 = vmul.f32 %v3703, %v3703
        %v3706 = vmul.f32 %v3704, %v3704
        %v3707 = vsel %vm1285, %v3705, 0.0
        %3708 = vadd.xlane.f32.xlu0 %v3707
        %v3709 = vpop.xlane.xlu0 %3708
        %v3710 = vsel %vm1285, %v3706, 0.0
        %3711 = vadd.xlane.f32.xlu0 %v3710
        %v3712 = vpop.xlane.xlu0 %3711
        %v3713 = vmul.f32 %v3709, %v2431
        %v3714 = vmul.f32 %v3712, %v2431
        %v3715 = vadd.f32 %v3713, 1e-05
        %v3716 = vadd.f32 %v3714, 1e-05
        %v3717 = vrsqrt.pop %v3715
        %v3718 = vrsqrt.pop %v3716
        %v3719 = vmul.f32 %v3703, %v3717
        %v3720 = vmul.f32 %v3704, %v3718
        %v3721 = vlaneseq
        %v3722 = vshrl.u32 %v3721, 7
        %v3723 = vsub.s32 0, %v3722
        %v3724 = vrot.slane %v1259, %v3723
        %v3725 = vmul.f32 %v3719, %v3724
        %v3726 = vmul.f32 %v3720, %v3724
        %v3727 = vlaneseq
        %v3728 = vshrl.u32 %v3727, 7
        %v3729 = vsub.s32 1, %v3728
        %v3730 = vrot.slane %v1259, %v3729
        %v3731 = vadd.f32 %v3725, %v3730
        %v3732 = vadd.f32 %v3726, %v3730
        %v3733 = vpack.c.bf16 %v3732, %v3731
        %v3734 = vld [vmem:[%s1084] sm:$0xf]
        %v3735 = vld [vmem:[%s1084 + $0x4] sm:$0xf]
        %v3736 = vld [vmem:[%s1084 + $0x8] sm:$0xf]
        %v3737 = vld [vmem:[%s1084 + $0xc] sm:$0xf]
        %v3738 = vld [vmem:[%s1092] sm:$0x1]
        %v3740 = vlaneseq
        %v3741 = vshrl.u32 %v3740, 7
        %v3742 = vsub.s32 0, %v3741
        %v3743 = vrot.slane %v3738, %v3742
        %v3749 = vunpack.c.l.b16 %v3734
        %v3750 = vunpack.c.l.b16 %v3735
        %v3751 = vunpack.c.l.b16 %v3736
        %v3752 = vunpack.c.l.b16 %v3737
        %v3753 = vpack.c.b16 %v3750, %v3749
        %v3754 = vpack.c.b16 %v3752, %v3751
        %v3758 = vsel %vm1285, %v3733, 0
        %3760 = vmatprep.subr.bf16.mxu0 0
        %3761 = vmatpush1.bf16.msra.mxu0 %v3753
        %3762 = vmatprep.subr.bf16.mxu0 0
        %3763 = vmatpush1.bf16.msra.mxu0 %v3754
        %3764 = vmatprep.subr.bf16.mxu0 0
        %3765 = vmatpush1.bf16.msra.mxu0 0
        %3766 = vmatprep.subr.bf16.mxu0 0
        %3767 = vmatpush1.bf16.msra.mxu0 0
        %3768 = vmatprep.subr.bf16.mxu0 0
        %3769 = vmatpush1.bf16.msra.mxu0 0
        %3770 = vmatprep.subr.bf16.mxu0 0
        %3771 = vmatpush1.bf16.msra.mxu0 0
        %3772 = vmatprep.subr.bf16.mxu0 0
        %3773 = vmatpush1.bf16.msra.mxu0 0
        %3774 = vmatprep.subr.bf16.mxu0 0
        %3775 = vmatpush1.bf16.msra.mxu0 0
        %3776 = vmatprep.subr.bf16.mxu0 0
        %3777 = vmatpush1.bf16.msra.mxu0 0
        %3778 = vmatprep.subr.bf16.mxu0 0
        %3779 = vmatpush1.bf16.msra.mxu0 0
        %3780 = vmatprep.subr.bf16.mxu0 0
        %3781 = vmatpush1.bf16.msra.mxu0 0
        %3782 = vmatprep.subr.bf16.mxu0 0
        %3783 = vmatpush1.bf16.msra.mxu0 0
        %3784 = vmatprep.subr.bf16.mxu0 0
        %3785 = vmatpush1.bf16.msra.mxu0 0
        %3786 = vmatprep.subr.bf16.mxu0 0
        %3787 = vmatpush1.bf16.msra.mxu0 0
        %3788 = vmatprep.subr.bf16.mxu0 0
        %3789 = vmatpush1.bf16.msra.mxu0 0
        %3790 = vmatprep.subr.bf16.mxu0 0
        %3791 = vmatpush1.bf16.msra.mxu0 0
        %3792 = vmatprep.mubr.bf16.mxu0 0
        %3793 = vmatmul.mubr.bf16.gmra.mrb[0].mxu0 %v3758
        %v3794 = vpop.f32.mrb[0].mxu0
        %v3795 = vadd.f32 %v3743, %v3794
        %v3796 = vpop.f32.mrb[0].mxu0
        %v3797 = vpop.f32.mrb[0].mxu0
        %v3798 = vadd.f32 %v3743, %v3797
        %v3799 = vpop.f32.mrb[0].mxu0
        %3800 = vdwg.mxu0
        %v3801 = vmax.f32 %v3795, 0.0
        %v3802 = vmax.f32 %v3798, 0.0
        %v3803 = vpack.c.bf16 %v3802, %v3801
        %v3804 = vld [vmem:[%s1101] sm:$0xf]
        %v3805 = vld [vmem:[%s1101 + $0x4] sm:$0xf]
        %v3806 = vld [vmem:[%s1101 + $0x8] sm:$0xf]
        %v3807 = vld [vmem:[%s1101 + $0xc] sm:$0xf]
        %v3808 = vld [vmem:[%s1101 + $0x10] sm:$0xf]
        %v3809 = vld [vmem:[%s1101 + $0x14] sm:$0xf]
        %v3810 = vld [vmem:[%s1101 + $0x18] sm:$0xf]
        %v3811 = vld [vmem:[%s1101 + $0x1c] sm:$0xf]
        %v3812 = vld [vmem:[%s1101 + $0x20] sm:$0xf]
        %v3813 = vld [vmem:[%s1101 + $0x24] sm:$0xf]
        %v3814 = vld [vmem:[%s1101 + $0x28] sm:$0xf]
        %v3815 = vld [vmem:[%s1101 + $0x2c] sm:$0xf]
        %v3816 = vld [vmem:[%s1101 + $0x30] sm:$0xf]
        %v3817 = vld [vmem:[%s1101 + $0x34] sm:$0xf]
        %v3818 = vld [vmem:[%s1101 + $0x38] sm:$0xf]
        %v3819 = vld [vmem:[%s1101 + $0x3c] sm:$0xf]
        %v3820 = vld [vmem:[%s1109] sm:$0x1]
        %v3822 = vlaneseq
        %v3823 = vshrl.u32 %v3822, 7
        %v3824 = vsub.s32 0, %v3823
        %v3825 = vrot.slane %v3820, %v3824
        %v3843 = vunpack.c.l.b16 %v3804
        %v3844 = vunpack.c.l.b16 %v3805
        %v3845 = vunpack.c.l.b16 %v3806
        %v3846 = vunpack.c.l.b16 %v3807
        %v3847 = vunpack.c.l.b16 %v3808
        %v3848 = vunpack.c.l.b16 %v3809
        %v3849 = vunpack.c.l.b16 %v3810
        %v3850 = vunpack.c.l.b16 %v3811
        %v3851 = vunpack.c.l.b16 %v3812
        %v3852 = vunpack.c.l.b16 %v3813
        %v3853 = vunpack.c.l.b16 %v3814
        %v3854 = vunpack.c.l.b16 %v3815
        %v3855 = vunpack.c.l.b16 %v3816
        %v3856 = vunpack.c.l.b16 %v3817
        %v3857 = vunpack.c.l.b16 %v3818
        %v3858 = vunpack.c.l.b16 %v3819
        %v3859 = vpack.c.b16 %v3844, %v3843
        %v3860 = vpack.c.b16 %v3846, %v3845
        %v3861 = vpack.c.b16 %v3848, %v3847
        %v3862 = vpack.c.b16 %v3850, %v3849
        %v3863 = vpack.c.b16 %v3852, %v3851
        %v3864 = vpack.c.b16 %v3854, %v3853
        %v3865 = vpack.c.b16 %v3856, %v3855
        %v3866 = vpack.c.b16 %v3858, %v3857
        %3875 = vmatprep.subr.bf16.mxu0 0
        %3876 = vmatpush1.bf16.msra.mxu0 %v3859
        %3877 = vmatprep.subr.bf16.mxu0 0
        %3878 = vmatpush1.bf16.msra.mxu0 %v3860
        %3879 = vmatprep.subr.bf16.mxu0 0
        %3880 = vmatpush1.bf16.msra.mxu0 %v3861
        %3881 = vmatprep.subr.bf16.mxu0 0
        %3882 = vmatpush1.bf16.msra.mxu0 %v3862
        %3883 = vmatprep.subr.bf16.mxu0 0
        %3884 = vmatpush1.bf16.msra.mxu0 %v3863
        %3885 = vmatprep.subr.bf16.mxu0 0
        %3886 = vmatpush1.bf16.msra.mxu0 %v3864
        %3887 = vmatprep.subr.bf16.mxu0 0
        %3888 = vmatpush1.bf16.msra.mxu0 %v3865
        %3889 = vmatprep.subr.bf16.mxu0 0
        %3890 = vmatpush1.bf16.msra.mxu0 %v3866
        %3891 = vmatprep.subr.bf16.mxu0 0
        %3892 = vmatpush1.bf16.msra.mxu0 0
        %3893 = vmatprep.subr.bf16.mxu0 0
        %3894 = vmatpush1.bf16.msra.mxu0 0
        %3895 = vmatprep.subr.bf16.mxu0 0
        %3896 = vmatpush1.bf16.msra.mxu0 0
        %3897 = vmatprep.subr.bf16.mxu0 0
        %3898 = vmatpush1.bf16.msra.mxu0 0
        %3899 = vmatprep.subr.bf16.mxu0 0
        %3900 = vmatpush1.bf16.msra.mxu0 0
        %3901 = vmatprep.subr.bf16.mxu0 0
        %3902 = vmatpush1.bf16.msra.mxu0 0
        %3903 = vmatprep.subr.bf16.mxu0 0
        %3904 = vmatpush1.bf16.msra.mxu0 0
        %3905 = vmatprep.subr.bf16.mxu0 0
        %3906 = vmatpush1.bf16.msra.mxu0 0
        %3907 = vmatprep.mubr.bf16.mxu0 0
        %3908 = vmatmul.mubr.bf16.gmra.mrb[0].mxu0 %v3803
        %v3909 = vpop.f32.mrb[0].mxu0
        %v3910 = vadd.f32 %v3825, %v3909
        %v3911 = vpop.f32.mrb[0].mxu0
        %v3912 = vpop.f32.mrb[0].mxu0
        %v3913 = vadd.f32 %v3825, %v3912
        %v3914 = vpop.f32.mrb[0].mxu0
        %3915 = vdwg.mxu0
        %v3916 = vadd.f32 %v3910, %v3731
        %v3917 = vadd.f32 %v3913, %v3732
        %v3918 = vsel %vm1285, %v3916, 0.0
        %3919 = vadd.xlane.f32.xlu0 %v3918
        %v3920 = vpop.xlane.xlu0 %3919
        %v3921 = vsel %vm1285, %v3917, 0.0
        %3922 = vadd.xlane.f32.xlu0 %v3921
        %v3923 = vpop.xlane.xlu0 %3922
        %v3924 = vmul.f32 %v3920, %v2431
        %v3925 = vmul.f32 %v3923, %v2431
        %v3926 = vsub.f32 %v3916, %v3924
        %v3927 = vsub.f32 %v3917, %v3925
        %v3928 = vmul.f32 %v3926, %v3926
        %v3929 = vmul.f32 %v3927, %v3927
        %v3930 = vsel %vm1285, %v3928, 0.0
        %3931 = vadd.xlane.f32.xlu0 %v3930
        %v3932 = vpop.xlane.xlu0 %3931
        %v3933 = vsel %vm1285, %v3929, 0.0
        %3934 = vadd.xlane.f32.xlu0 %v3933
        %v3935 = vpop.xlane.xlu0 %3934
        %v3936 = vmul.f32 %v3932, %v2431
        %v3937 = vmul.f32 %v3935, %v2431
        %v3938 = vadd.f32 %v3936, 1e-05
        %v3939 = vadd.f32 %v3937, 1e-05
        %v3940 = vrsqrt.pop %v3938
        %v3941 = vrsqrt.pop %v3939
        %v3942 = vmul.f32 %v3926, %v3940
        %v3943 = vmul.f32 %v3927, %v3941
        %v3944 = vlaneseq
        %v3945 = vshrl.u32 %v3944, 7
        %v3946 = vsub.s32 0, %v3945
        %v3947 = vrot.slane %v1260, %v3946
        %v3948 = vmul.f32 %v3942, %v3947
        %v3949 = vmul.f32 %v3943, %v3947
        %v3950 = vlaneseq
        %v3951 = vshrl.u32 %v3950, 7
        %v3952 = vsub.s32 1, %v3951
        %v3953 = vrot.slane %v1260, %v3952
        %v3954 = vadd.f32 %v3948, %v3953
        %v3955 = vadd.f32 %v3949, %v3953
        %3956 = vst.msk [vmem:[#allocation2] sm:$0xff] %vm1285, %v3954
        %3957 = vst.msk [vmem:[#allocation2 + $0x8] sm:$0xff] %vm1285, %v3955
        %p3958 = scmp.eq.s32.totalorder %s61, 1
        // Predicated region
        $region185: #{decoder_forward.1} parent=99 // pred_check
          %p3959 = pneg %p3958
        $region186: #{decoder_forward.1} parent=99 // pred_check_branch
          %3961 = sbr.rel (%p3959) target = $region188
        $region187: #{decoder_forward.1} parent=99 // pred_region
          %3962 = vst.msk [vmem:[#allocation35] sm:$0xff] %vm1285, %v3954
          %3963 = vst.msk [vmem:[#allocation35 + $0x8] sm:$0xff] %vm1285, %v3955
        $region188: #{decoder_forward.1} parent=99 // pred_fallthru
          _
        // Predicated region
        $region189: #{decoder_forward.1} parent=99 // pred_check
          %p3964 = pneg %p579
        $region190: #{decoder_forward.1} parent=99 // pred_check_branch
          %3966 = sbr.rel (%p3964) target = $region192
        $region191: #{decoder_forward.1} parent=99 // pred_region
          %s3968 = ssub.s32 256, 256
          %3969 = vsyncadd [#allocation5], %s3968
          %s3970 = sshll.u32 [#allocation35], 4
          %s3971 = int_to_ptr.vmem [resolvable:$true] %s3970
          %3976 = dma.vmem_to_hbm [thread:$0]  %s3971, 256, %s20, [#allocation5], 128, 128, 8
        $region192: #{decoder_forward.1} parent=99 // pred_fallthru
          _
        // Predicated region
        $region193: #{decoder_forward.1} parent=99 // pred_check
          %p3977 = pneg %p579
        $region194: #{decoder_forward.1} parent=99 // pred_check_branch
          %3979 = sbr.rel (%p3977) target = $region196
        $region195: #{decoder_forward.1} parent=99 // pred_region
          %3980 = dma.done [#allocation5], 256
        $region196: #{decoder_forward.1} parent=99 // pred_fallthru
          _
      $region100: #{decoder_forward.1} parent=5 // pred_fallthru
        _
      %p3981 = scmp.le.s32.totalorder 2, %s56
      // Predicated region
      $region197: #{decoder_forward.1} parent=5 // pred_check
        %p3982 = pneg %p3981
      $region198: #{decoder_forward.1} parent=5 // pred_check_branch
        %3984 = sbr.rel (%p3982) target = $region200
      $region199: #{decoder_forward.1} parent=5 // pred_region
        %s3985 = ssub.s32 %s56, 2
      $region200: #{decoder_forward.1} parent=5 // pred_fallthru
        _
    $region6: #{decoder_forward.1} parent=1 // loop_footer
      %s60 = sadd.s32 1, %s56
    $region7: #{decoder_forward.1} parent=1 // loop_footer_branch
      %55 = sbr.rel target = $region3
    $region8: #{decoder_forward.1} parent=1 // loop_exit
      _
    %3986 = vsyncpa [#allocation4], 1
    %s3987 = scalar_lea.sflag [#allocation4], 1
    %3988 = vsyncpa %s3987, 1
    %3989 = vsyncpa [#allocation7], 1
    %3990 = vsyncpa [#allocation10], 1
    %s3991 = scalar_lea.sflag [#allocation10], 1
    %3992 = vsyncpa %s3991, 1
    %3993 = vsyncpa [#allocation13], 1
    %s3994 = scalar_lea.sflag [#allocation13], 1
    %3995 = vsyncpa %s3994, 1
    %3996 = vsyncpa [#allocation16], 1
    %s3997 = scalar_lea.sflag [#allocation16], 1
    %3998 = vsyncpa %s3997, 1
    %3999 = vsyncpa [#allocation19], 1
    %s4000 = scalar_lea.sflag [#allocation19], 1
    %4001 = vsyncpa %s4000, 1
    %4002 = vsyncpa [#allocation22], 1
    %s4003 = scalar_lea.sflag [#allocation22], 1
    %4004 = vsyncpa %s4003, 1
    %4005 = vsyncpa [#allocation25], 1
    %s4006 = scalar_lea.sflag [#allocation25], 1
    %4007 = vsyncpa %s4006, 1
    %4008 = vsyncpa [#allocation28], 1
    %s4009 = scalar_lea.sflag [#allocation28], 1
    %4010 = vsyncpa %s4009, 1
    %4011 = vsyncpa [#allocation31], 1
    %s4012 = scalar_lea.sflag [#allocation31], 1
    %4013 = vsyncpa %s4012, 1
    %4014 = vsyncpa [#allocation34], 1
    %s4015 = scalar_lea.sflag [#allocation34], 1
    %4016 = vsyncpa %s4015, 1
    %4017 = vsyncpa [#allocation5], 1
    %s4018 = scalar_lea.sflag [#allocation5], 1
    %4019 = vsyncpa %s4018, 1

</llo_original>
